<compile_context>
chip_gen: v7x
topology: tpu7x:2x2x1
jax: 0.10.0
libtpu: 0.0.40
codegen_flags: <defaults>
</compile_context>

<pallas_src>
import functools
import math

import jax
import jax.numpy as jnp
from jax.experimental import pallas as pl
from jax.experimental.pallas import tpu as pltpu

EPS = 1e-5
LANE = 128

H1, H1_PAD = 1000, 1024
H2, H2_PAD = 500, 512
N_CLASSES, OUT_PAD = 101, 128

MAX_K_TILE = 2048  # bf16 W1 K-tile = 2048*1024*2B = 4 MiB per buffer


def _round_up(v, m):
    return (v + m - 1) // m * m


def _plan_k(f):
    """Padded feature size, K-tile size and K-tile count for Linear #1."""
    f_pad = _round_up(f, LANE)
    if f_pad <= MAX_K_TILE:
        return f_pad, f_pad, 1
    f_pad = _round_up(f, MAX_K_TILE)
    return f_pad, MAX_K_TILE, f_pad // MAX_K_TILE


def _classifier_kernel(
    n_rows,                                   # static: real (unpadded) batch size
    x_ref,
    w1_ref, b1_ref, g1_ref, be1_ref,
    w2_ref, b2_ref, g2_ref, be2_ref,
    w3_ref, b3_ref,
    o_ref,
    acc_ref,
):
    k = pl.program_id(0)

    @pl.when(k == 0)
    def _init():
        acc_ref[...] = jnp.zeros_like(acc_ref)

    # ---- ReLU(x) @ W1, accumulated over K tiles (bf16 inputs, f32 acc) ----
    xk = jnp.maximum(x_ref[...], 0.0).astype(jnp.bfloat16)
    acc_ref[...] += jnp.dot(xk, w1_ref[...], preferred_element_type=jnp.float32)

    @pl.when(k == pl.num_programs(0) - 1)
    def _finish():
        b_pad = acc_ref.shape[0]
        inv_n = 1.0 / n_rows

        # Padded batch rows must not pollute the BN batch statistics.
        if b_pad != n_rows:
            row_ids = jax.lax.broadcasted_iota(jnp.int32, (b_pad, 1), 0)
            row_mask = (row_ids < n_rows).astype(jnp.float32)
        else:
            row_mask = None

        def batchnorm(h, g, be):
            """Training-mode BatchNorm1d (current-batch mean, biased var), f32."""
            hm = h if row_mask is None else h * row_mask
            mean = jnp.sum(hm, axis=0, keepdims=True) * inv_n
            c = h - mean
            cm = c if row_mask is None else c * row_mask
            var = jnp.sum(cm * cm, axis=0, keepdims=True) * inv_n
            scale = g * jax.lax.rsqrt(var + EPS)   # fold gamma into the scale
            return h * scale + (be - mean * scale)

        # ---- Linear(F, 1000) epilogue + BN + ReLU ----
        h = acc_ref[...] + b1_ref[...]
        h = jnp.maximum(batchnorm(h, g1_ref[...], be1_ref[...]), 0.0)

        # ---- Linear(1000, 500) + BN + ReLU ----
        h = jnp.dot(h.astype(jnp.bfloat16), w2_ref[...],
                    preferred_element_type=jnp.float32) + b2_ref[...]
        h = jnp.maximum(batchnorm(h, g2_ref[...], be2_ref[...]), 0.0)

        # ---- Linear(500, 101) ----
        logits = jnp.dot(h.astype(jnp.bfloat16), w3_ref[...],
                         preferred_element_type=jnp.float32) + b3_ref[...]

        # ---- Softmax over the 101 real classes (padded lanes masked out) ----
        lane_ids = jax.lax.broadcasted_iota(jnp.int32, logits.shape, 1)
        logits = jnp.where(lane_ids < N_CLASSES, logits,
                           jnp.finfo(jnp.float32).min)
        m = jnp.max(logits, axis=1, keepdims=True)
        e = jnp.exp(logits - m)
        denom = jnp.sum(e, axis=1, keepdims=True)
        o_ref[...] = e * pl.reciprocal(denom, approx=True)


@jax.jit
def food101k_classifier(x, kparams):
    """x: (B, F) float32.  kparams: padded/bf16 params from prepare_params.

    Returns (B, 101) float32 probabilities (softmax over dim=1)."""
    b, f = x.shape
    f_pad, tk, nk = _plan_k(f)
    if kparams["w1"].shape != (f_pad, H1_PAD):
        raise ValueError("params were not prepared for this ft_concat_size")
    b_pad = _round_up(max(b, 8), 8)

    xp = jnp.pad(x, ((0, b_pad - b), (0, f_pad - f)))

    operands = (
        xp,
        kparams["w1"], kparams["b1"], kparams["g1"], kparams["be1"],
        kparams["w2"], kparams["b2"], kparams["g2"], kparams["be2"],
        kparams["w3"], kparams["b3"],
    )

    k_tiled_x = lambda k: (0, k)
    k_tiled_w = lambda k: (k, 0)
    const2 = lambda k: (0, 0)
    spec_defs = [
        ((b_pad, tk), k_tiled_x),          # x: K-tiled
        ((tk, H1_PAD), k_tiled_w),         # W1: K-tiled
        ((1, H1_PAD), const2),             # b1
        ((1, H1_PAD), const2),             # gamma1
        ((1, H1_PAD), const2),             # beta1
        ((H1_PAD, H2_PAD), const2),        # W2 (resident)
        ((1, H2_PAD), const2),             # b2
        ((1, H2_PAD), const2),             # gamma2
        ((1, H2_PAD), const2),             # beta2
        ((H2_PAD, OUT_PAD), const2),       # W3 (resident)
        ((1, OUT_PAD), const2),            # b3
    ]
    in_specs = [pl.BlockSpec(shape, imap) for shape, imap in spec_defs]
    out_spec = pl.BlockSpec((b_pad, OUT_PAD), lambda k: (0, 0))

    # Right-size the scoped VMEM limit from the actual working set
    # (2 pipeline buffers per operand + f32 accumulator + headroom), and never
    # ask for more than v7x's 64 MiB of physical VMEM.
    vmem = b_pad * H1_PAD * 4                              # accumulator scratch
    for (shape, _), op in zip(spec_defs, operands):
        vmem += 2 * math.prod(shape) * op.dtype.itemsize
    vmem += 2 * b_pad * OUT_PAD * 4                        # output block
    vmem_limit = int(min(64 << 20, max(16 << 20, vmem + (4 << 20))))

    out = pl.pallas_call(
        functools.partial(_classifier_kernel, b),
        out_shape=jax.ShapeDtypeStruct((b_pad, OUT_PAD), jnp.float32),
        grid=(nk,),
        in_specs=in_specs,
        out_specs=out_spec,
        scratch_shapes=[pltpu.VMEM((b_pad, H1_PAD), jnp.float32)],
        compiler_params=pltpu.CompilerParams(
            dimension_semantics=("arbitrary",),   # K is a reduction axis
            vmem_limit_bytes=vmem_limit,
        ),
    )(*operands)
    return out[:b, :N_CLASSES]


def init_params(key, ft_concat_size):
    """Unpadded f32 parameters matching the PyTorch module's shapes/init.

    Linear weights are stored (in_features, out_features) so the forward is
    x @ W + b (equivalent to PyTorch's x @ W.T with W stored (out, in))."""
    dims = [(ft_concat_size, H1), (H1, H2), (H2, N_CLASSES)]
    params = {}
    for i, (k, (fin, fout)) in enumerate(zip(jax.random.split(key, 3), dims),
                                         start=1):
        bound = 1.0 / math.sqrt(fin)
        kw, kb = jax.random.split(k)
        params[f"w{i}"] = jax.random.uniform(kw, (fin, fout), jnp.float32,
                                             -bound, bound)
        params[f"b{i}"] = jax.random.uniform(kb, (1, fout), jnp.float32,
                                             -bound, bound)
    params["g1"] = jnp.ones((1, H1), jnp.float32)
    params["be1"] = jnp.zeros((1, H1), jnp.float32)
    params["g2"] = jnp.ones((1, H2), jnp.float32)
    params["be2"] = jnp.zeros((1, H2), jnp.float32)
    return params


def prepare_params(params):
    """Pad to lane-aligned shapes; cast matmul weights to bf16 (one-time).

    Zero padding is exact: padded hidden features stay 0 through bias/BN/ReLU
    and contribute nothing to the next matmul; padded class lanes are masked
    out of the softmax inside the kernel."""
    f_pad, _, _ = _plan_k(params["w1"].shape[0])

    def pad2(a, rows, cols, dtype=None):
        a = jnp.pad(a, ((0, rows - a.shape[0]), (0, cols - a.shape[1])))
        return a.astype(dtype) if dtype is not None else a

    return {
        "w1": pad2(params["w1"], f_pad, H1_PAD, jnp.bfloat16),
        "b1": pad2(params["b1"], 1, H1_PAD),
        "g1": pad2(params["g1"], 1, H1_PAD),
        "be1": pad2(params["be1"], 1, H1_PAD),
        "w2": pad2(params["w2"], H1_PAD, H2_PAD, jnp.bfloat16),
        "b2": pad2(params["b2"], 1, H2_PAD),
        "g2": pad2(params["g2"], 1, H2_PAD),
        "be2": pad2(params["be2"], 1, H2_PAD),
        "w3": pad2(params["w3"], H2_PAD, OUT_PAD, jnp.bfloat16),
        "b3": pad2(params["b3"], 1, OUT_PAD),
    }


def reference_forward(x, params):
    """Pure-JAX reference with matching bf16-matmul / f32-BN numerics."""
    def bn(h, g, be):
        mean = jnp.mean(h, axis=0, keepdims=True)
        var = jnp.mean((h - mean) ** 2, axis=0, keepdims=True)
        return (h - mean) * jax.lax.rsqrt(var + EPS) * g + be

    def lin(h, w, b):
        return jnp.dot(h.astype(jnp.bfloat16), w.astype(jnp.bfloat16),
                       preferred_element_type=jnp.float32) + b

    h = jnp.maximum(x, 0.0)
    h = jnp.maximum(bn(lin(h, params["w1"], params["b1"]),
                       params["g1"], params["be1"]), 0.0)
    h = jnp.maximum(bn(lin(h, params["w2"], params["b2"]),
                       params["g2"], params["be2"]), 0.0)
    logits = lin(h, params["w3"], params["b3"])
    return jax.nn.softmax(logits, axis=1)


if __name__ == "__main__":
    key = jax.random.PRNGKey(0)
    kx, kp = jax.random.split(key)

    batch = 12             # exercises batch padding (12 -> 16) + BN row masking
    ft_concat_size = 512   # small, kernel-friendly concat-feature size

    x = jax.random.normal(kx, (batch, ft_concat_size), jnp.float32)
    params = init_params(kp, ft_concat_size)
    kparams = prepare_params(params)

    probs = food101k_classifier(x, kparams)
    probs = jax.block_until_ready(probs)

    assert probs.shape == (batch, N_CLASSES)
    row_sums = jnp.sum(probs, axis=1)
    assert bool(jnp.all(jnp.abs(row_sums - 1.0) < 5e-3))

    ref = reference_forward(x, params)
    max_err = float(jnp.max(jnp.abs(probs - ref)))
    assert max_err < 5e-3, f"max |probs - ref| = {max_err}"

    print("KERNEL_OK")
</pallas_src>

<mosaic_0001>
module attributes {stable_mosaic.version = 11 : i64} {
  func.func @_classifier_kernel(%arg0: i32, %arg1: memref<16x512xf32, #tpu.memory_space<vmem>>, %arg2: memref<512x1024xbf16, #tpu.memory_space<vmem>>, %arg3: memref<1x1024xf32, #tpu.memory_space<vmem>>, %arg4: memref<1x1024xf32, #tpu.memory_space<vmem>>, %arg5: memref<1x1024xf32, #tpu.memory_space<vmem>>, %arg6: memref<1024x512xbf16, #tpu.memory_space<vmem>>, %arg7: memref<1x512xf32, #tpu.memory_space<vmem>>, %arg8: memref<1x512xf32, #tpu.memory_space<vmem>>, %arg9: memref<1x512xf32, #tpu.memory_space<vmem>>, %arg10: memref<512x128xbf16, #tpu.memory_space<vmem>>, %arg11: memref<1x128xf32, #tpu.memory_space<vmem>>, %arg12: memref<16x128xf32, #tpu.memory_space<vmem>>, %arg13: memref<16x1024xf32, #tpu.memory_space<vmem>>) attributes {dimension_semantics = [#tpu.dimension_semantics<arbitrary>], iteration_bounds = array<i64: 1>, scalar_prefetch = 0 : i64, scratch_operands = 1 : i64, tpu.core_type = #tpu.core_type<tc>, window_params = [{transform_indices = @transform_0, window_bounds = array<i64: 16, 512>}, {transform_indices = @transform_1, window_bounds = array<i64: 512, 1024>}, {pipeline_mode = #tpu.pipeline_mode<synchronous>, transform_indices = @transform_2, window_bounds = array<i64: 1, 1024>}, {pipeline_mode = #tpu.pipeline_mode<synchronous>, transform_indices = @transform_3, window_bounds = array<i64: 1, 1024>}, {pipeline_mode = #tpu.pipeline_mode<synchronous>, transform_indices = @transform_4, window_bounds = array<i64: 1, 1024>}, {pipeline_mode = #tpu.pipeline_mode<synchronous>, transform_indices = @transform_5, window_bounds = array<i64: 1024, 512>}, {pipeline_mode = #tpu.pipeline_mode<synchronous>, transform_indices = @transform_6, window_bounds = array<i64: 1, 512>}, {pipeline_mode = #tpu.pipeline_mode<synchronous>, transform_indices = @transform_7, window_bounds = array<i64: 1, 512>}, {pipeline_mode = #tpu.pipeline_mode<synchronous>, transform_indices = @transform_8, window_bounds = array<i64: 1, 512>}, {pipeline_mode = #tpu.pipeline_mode<synchronous>, transform_indices = @transform_9, window_bounds = array<i64: 512, 128>}, {pipeline_mode = #tpu.pipeline_mode<synchronous>, transform_indices = @transform_10, window_bounds = array<i64: 1, 128>}, {pipeline_mode = #tpu.pipeline_mode<synchronous>, transform_indices = @transform_11, window_bounds = array<i64: 16, 128>}]} {
    %c0_i32 = arith.constant 0 : i32
    %0 = arith.cmpi eq, %arg0, %c0_i32 : i32
    %1 = arith.extui %0 : i1 to i32
    %c0_i32_0 = arith.constant 0 : i32
    %2 = arith.cmpi ne, %1, %c0_i32_0 : i32
    scf.if %2 {
      %cst_11 = arith.constant 0.000000e+00 : f32
      %15 = vector.broadcast %cst_11 : f32 to vector<16x1024xf32>
      %c0_12 = arith.constant 0 : index
      %c0_13 = arith.constant 0 : index
      %16 = vector.load %arg13[%c0_12, %c0_13] : memref<16x1024xf32, #tpu.memory_space<vmem>>, vector<16x1024xf32>
      tpu.vector_store %arg13[%c0_12, %c0_13], %15 {strides = array<i32>} : memref<16x1024xf32, #tpu.memory_space<vmem>>, vector<16x1024xf32>,
    } else {
    }
    %c0 = arith.constant 0 : index
    %c0_1 = arith.constant 0 : index
    %3 = vector.load %arg1[%c0, %c0_1] : memref<16x512xf32, #tpu.memory_space<vmem>>, vector<16x512xf32>
    %cst = arith.constant 0.000000e+00 : f32
    %4 = vector.broadcast %cst : f32 to vector<16x512xf32>
    %5 = arith.maximumf %3, %4 : vector<16x512xf32>
    %6 = arith.truncf %5 : vector<16x512xf32> to vector<16x512xbf16>
    %c0_2 = arith.constant 0 : index
    %c0_3 = arith.constant 0 : index
    %7 = vector.load %arg13[%c0_2, %c0_3] : memref<16x1024xf32, #tpu.memory_space<vmem>>, vector<16x1024xf32>
    %c0_4 = arith.constant 0 : index
    %c0_5 = arith.constant 0 : index
    %8 = vector.load %arg2[%c0_4, %c0_5] : memref<512x1024xbf16, #tpu.memory_space<vmem>>, vector<512x1024xbf16>
    %cst_6 = arith.constant dense<0.000000e+00> : vector<16x1024xf32>
    %9 = tpu.matmul %6, %8, %cst_6 {dimension_numbers = #tpu.dot_dimension_numbers<[1], [0], [0], [1], [0, 0, 1, 1], [], []>} : vector<16x512xbf16>, vector<512x1024xbf16>, vector<16x1024xf32> -> vector<16x1024xf32>
    %10 = arith.addf %7, %9 : vector<16x1024xf32>
    %c0_7 = arith.constant 0 : index
    %c0_8 = arith.constant 0 : index
    %11 = vector.load %arg13[%c0_7, %c0_8] : memref<16x1024xf32, #tpu.memory_space<vmem>>, vector<16x1024xf32>
    tpu.vector_store %arg13[%c0_7, %c0_8], %10 {strides = array<i32>} : memref<16x1024xf32, #tpu.memory_space<vmem>>, vector<16x1024xf32>,
    %c0_i32_9 = arith.constant 0 : i32
    %12 = arith.cmpi eq, %arg0, %c0_i32_9 : i32
    %13 = arith.extui %12 : i1 to i32
    %c0_i32_10 = arith.constant 0 : i32
    %14 = arith.cmpi ne, %13, %c0_i32_10 : i32
    scf.if %14 {
      %15 = tpu.iota {dimensions = array<i32: 0>} : vector<16x1xi32>
      %c12_i32 = arith.constant 12 : i32
      %16 = vector.broadcast %c12_i32 : i32 to vector<16x1xi32>
      %17 = arith.cmpi slt, %15, %16 : vector<16x1xi32>
      %18 = arith.extui %17 : vector<16x1xi1> to vector<16x1xi32>
      %19 = arith.sitofp %18 : vector<16x1xi32> to vector<16x1xf32>
      %c0_11 = arith.constant 0 : index
      %c0_12 = arith.constant 0 : index
      %20 = vector.load %arg13[%c0_11, %c0_12] : memref<16x1024xf32, #tpu.memory_space<vmem>>, vector<16x1024xf32>
      %c0_13 = arith.constant 0 : index
      %c0_14 = arith.constant 0 : index
      %21 = vector.load %arg3[%c0_13, %c0_14] : memref<1x1024xf32, #tpu.memory_space<vmem>>, vector<1x1024xf32>
      %22 = vector.broadcast %21 : vector<1x1024xf32> to vector<16x1024xf32>
      %23 = arith.addf %20, %22 : vector<16x1024xf32>
      %c0_15 = arith.constant 0 : index
      %c0_16 = arith.constant 0 : index
      %24 = vector.load %arg4[%c0_15, %c0_16] : memref<1x1024xf32, #tpu.memory_space<vmem>>, vector<1x1024xf32>
      %c0_17 = arith.constant 0 : index
      %c0_18 = arith.constant 0 : index
      %25 = vector.load %arg5[%c0_17, %c0_18] : memref<1x1024xf32, #tpu.memory_space<vmem>>, vector<1x1024xf32>
      %26 = vector.broadcast %19 : vector<16x1xf32> to vector<16x1024xf32>
      %27 = arith.mulf %23, %26 : vector<16x1024xf32>
      %cst_19 = arith.constant dense<0.000000e+00> : vector<1024xf32>
      %28 = vector.multi_reduction <add>, %27, %cst_19 [0] : vector<16x1024xf32> to vector<1024xf32>
      %29 = vector.shape_cast %28 : vector<1024xf32> to vector<1x1024xf32>
      %cst_20 = arith.constant 0.0833333358 : f32
      %30 = vector.broadcast %cst_20 : f32 to vector<1x1024xf32>
      %31 = arith.mulf %29, %30 : vector<1x1024xf32>
      %32 = vector.broadcast %31 : vector<1x1024xf32> to vector<16x1024xf32>
      %33 = arith.subf %23, %32 : vector<16x1024xf32>
      %34 = vector.broadcast %19 : vector<16x1xf32> to vector<16x1024xf32>
      %35 = arith.mulf %33, %34 : vector<16x1024xf32>
      %36 = arith.mulf %35, %35 : vector<16x1024xf32>
      %cst_21 = arith.constant dense<0.000000e+00> : vector<1024xf32>
      %37 = vector.multi_reduction <add>, %36, %cst_21 [0] : vector<16x1024xf32> to vector<1024xf32>
      %38 = vector.shape_cast %37 : vector<1024xf32> to vector<1x1024xf32>
      %cst_22 = arith.constant 0.0833333358 : f32
      %39 = vector.broadcast %cst_22 : f32 to vector<1x1024xf32>
      %40 = arith.mulf %38, %39 : vector<1x1024xf32>
      %cst_23 = arith.constant 9.99999974E-6 : f32
      %41 = vector.broadcast %cst_23 : f32 to vector<1x1024xf32>
      %42 = arith.addf %40, %41 : vector<1x1024xf32>
      %43 = math.rsqrt %42 : vector<1x1024xf32>
      %44 = arith.mulf %24, %43 : vector<1x1024xf32>
      %45 = vector.broadcast %44 : vector<1x1024xf32> to vector<16x1024xf32>
      %46 = arith.mulf %23, %45 : vector<16x1024xf32>
      %47 = arith.mulf %31, %44 : vector<1x1024xf32>
      %48 = arith.subf %25, %47 : vector<1x1024xf32>
      %49 = vector.broadcast %48 : vector<1x1024xf32> to vector<16x1024xf32>
      %50 = arith.addf %46, %49 : vector<16x1024xf32>
      %cst_24 = arith.constant 0.000000e+00 : f32
      %51 = vector.broadcast %cst_24 : f32 to vector<16x1024xf32>
      %52 = arith.maximumf %50, %51 : vector<16x1024xf32>
      %53 = arith.truncf %52 : vector<16x1024xf32> to vector<16x1024xbf16>
      %c0_25 = arith.constant 0 : index
      %c0_26 = arith.constant 0 : index
      %54 = vector.load %arg6[%c0_25, %c0_26] : memref<1024x512xbf16, #tpu.memory_space<vmem>>, vector<1024x512xbf16>
      %cst_27 = arith.constant dense<0.000000e+00> : vector<16x512xf32>
      %55 = tpu.matmul %53, %54, %cst_27 {dimension_numbers = #tpu.dot_dimension_numbers<[1], [0], [0], [1], [0, 0, 1, 1], [], []>} : vector<16x1024xbf16>, vector<1024x512xbf16>, vector<16x512xf32> -> vector<16x512xf32>
      %c0_28 = arith.constant 0 : index
      %c0_29 = arith.constant 0 : index
      %56 = vector.load %arg7[%c0_28, %c0_29] : memref<1x512xf32, #tpu.memory_space<vmem>>, vector<1x512xf32>
      %57 = vector.broadcast %56 : vector<1x512xf32> to vector<16x512xf32>
      %58 = arith.addf %55, %57 : vector<16x512xf32>
      %c0_30 = arith.constant 0 : index
      %c0_31 = arith.constant 0 : index
      %59 = vector.load %arg8[%c0_30, %c0_31] : memref<1x512xf32, #tpu.memory_space<vmem>>, vector<1x512xf32>
      %c0_32 = arith.constant 0 : index
      %c0_33 = arith.constant 0 : index
      %60 = vector.load %arg9[%c0_32, %c0_33] : memref<1x512xf32, #tpu.memory_space<vmem>>, vector<1x512xf32>
      %61 = vector.broadcast %19 : vector<16x1xf32> to vector<16x512xf32>
      %62 = arith.mulf %58, %61 : vector<16x512xf32>
      %cst_34 = arith.constant dense<0.000000e+00> : vector<512xf32>
      %63 = vector.multi_reduction <add>, %62, %cst_34 [0] : vector<16x512xf32> to vector<512xf32>
      %64 = vector.shape_cast %63 : vector<512xf32> to vector<1x512xf32>
      %cst_35 = arith.constant 0.0833333358 : f32
      %65 = vector.broadcast %cst_35 : f32 to vector<1x512xf32>
      %66 = arith.mulf %64, %65 : vector<1x512xf32>
      %67 = vector.broadcast %66 : vector<1x512xf32> to vector<16x512xf32>
      %68 = arith.subf %58, %67 : vector<16x512xf32>
      %69 = vector.broadcast %19 : vector<16x1xf32> to vector<16x512xf32>
      %70 = arith.mulf %68, %69 : vector<16x512xf32>
      %71 = arith.mulf %70, %70 : vector<16x512xf32>
      %cst_36 = arith.constant dense<0.000000e+00> : vector<512xf32>
      %72 = vector.multi_reduction <add>, %71, %cst_36 [0] : vector<16x512xf32> to vector<512xf32>
      %73 = vector.shape_cast %72 : vector<512xf32> to vector<1x512xf32>
      %cst_37 = arith.constant 0.0833333358 : f32
      %74 = vector.broadcast %cst_37 : f32 to vector<1x512xf32>
      %75 = arith.mulf %73, %74 : vector<1x512xf32>
      %cst_38 = arith.constant 9.99999974E-6 : f32
      %76 = vector.broadcast %cst_38 : f32 to vector<1x512xf32>
      %77 = arith.addf %75, %76 : vector<1x512xf32>
      %78 = math.rsqrt %77 : vector<1x512xf32>
      %79 = arith.mulf %59, %78 : vector<1x512xf32>
      %80 = vector.broadcast %79 : vector<1x512xf32> to vector<16x512xf32>
      %81 = arith.mulf %58, %80 : vector<16x512xf32>
      %82 = arith.mulf %66, %79 : vector<1x512xf32>
      %83 = arith.subf %60, %82 : vector<1x512xf32>
      %84 = vector.broadcast %83 : vector<1x512xf32> to vector<16x512xf32>
      %85 = arith.addf %81, %84 : vector<16x512xf32>
      %cst_39 = arith.constant 0.000000e+00 : f32
      %86 = vector.broadcast %cst_39 : f32 to vector<16x512xf32>
      %87 = arith.maximumf %85, %86 : vector<16x512xf32>
      %88 = arith.truncf %87 : vector<16x512xf32> to vector<16x512xbf16>
      %c0_40 = arith.constant 0 : index
      %c0_41 = arith.constant 0 : index
      %89 = vector.load %arg10[%c0_40, %c0_41] : memref<512x128xbf16, #tpu.memory_space<vmem>>, vector<512x128xbf16>
      %cst_42 = arith.constant dense<0.000000e+00> : vector<16x128xf32>
      %90 = tpu.matmul %88, %89, %cst_42 {dimension_numbers = #tpu.dot_dimension_numbers<[1], [0], [0], [1], [0, 0, 1, 1], [], []>} : vector<16x512xbf16>, vector<512x128xbf16>, vector<16x128xf32> -> vector<16x128xf32>
      %c0_43 = arith.constant 0 : index
      %c0_44 = arith.constant 0 : index
      %91 = vector.load %arg11[%c0_43, %c0_44] : memref<1x128xf32, #tpu.memory_space<vmem>>, vector<1x128xf32>
      %92 = vector.broadcast %91 : vector<1x128xf32> to vector<16x128xf32>
      %93 = arith.addf %90, %92 : vector<16x128xf32>
      %94 = tpu.iota {dimensions = array<i32: 1>} : vector<16x128xi32>
      %c101_i32 = arith.constant 101 : i32
      %95 = vector.broadcast %c101_i32 : i32 to vector<16x128xi32>
      %96 = arith.cmpi slt, %94, %95 : vector<16x128xi32>
      %cst_45 = arith.constant -3.40282347E+38 : f32
      %97 = vector.broadcast %cst_45 : f32 to vector<16x128xf32>
      %98 = arith.select %96, %93, %97 : vector<16x128xi1>, vector<16x128xf32>
      %cst_46 = arith.constant dense<0xFF800000> : vector<16xf32>
      %99 = vector.multi_reduction <maximumf>, %98, %cst_46 [1] : vector<16x128xf32> to vector<16xf32>
      %100 = vector.shape_cast %99 : vector<16xf32> to vector<16x1xf32>
      %101 = vector.broadcast %100 : vector<16x1xf32> to vector<16x128xf32>
      %102 = arith.subf %98, %101 : vector<16x128xf32>
      %103 = math.exp %102 : vector<16x128xf32>
      %cst_47 = arith.constant dense<0.000000e+00> : vector<16xf32>
      %104 = vector.multi_reduction <add>, %103, %cst_47 [1] : vector<16x128xf32> to vector<16xf32>
      %105 = vector.shape_cast %104 : vector<16xf32> to vector<16x1xf32>
      %106 = tpu.reciprocal %105 {approx = true} : vector<16x1xf32> -> vector<16x1xf32>
      %107 = vector.broadcast %106 : vector<16x1xf32> to vector<16x128xf32>
      %108 = arith.mulf %103, %107 : vector<16x128xf32>
      %c0_48 = arith.constant 0 : index
      %c0_49 = arith.constant 0 : index
      %109 = vector.load %arg12[%c0_48, %c0_49] : memref<16x128xf32, #tpu.memory_space<vmem>>, vector<16x128xf32>
      tpu.vector_store %arg12[%c0_48, %c0_49], %108 {strides = array<i32>} : memref<16x128xf32, #tpu.memory_space<vmem>>, vector<16x128xf32>,
    } else {
    }
    return
  }
  func.func @transform_0(%arg0: i32) -> (i32, i32) {
    %c0_i32 = arith.constant 0 : i32
    %c0_i32_0 = arith.constant 0 : i32
    return %c0_i32, %arg0 : i32, i32
  }
  func.func @transform_1(%arg0: i32) -> (i32, i32) {
    %c0_i32 = arith.constant 0 : i32
    %c0_i32_0 = arith.constant 0 : i32
    return %arg0, %c0_i32 : i32, i32
  }
  func.func @transform_2(%arg0: i32) -> (i32, i32) {
    %c0_i32 = arith.constant 0 : i32
    %c0_i32_0 = arith.constant 0 : i32
    %c0_i32_1 = arith.constant 0 : i32
    return %c0_i32, %c0_i32_0 : i32, i32
  }
  func.func @transform_3(%arg0: i32) -> (i32, i32) {
    %c0_i32 = arith.constant 0 : i32
    %c0_i32_0 = arith.constant 0 : i32
    %c0_i32_1 = arith.constant 0 : i32
    return %c0_i32, %c0_i32_0 : i32, i32
  }
  func.func @transform_4(%arg0: i32) -> (i32, i32) {
    %c0_i32 = arith.constant 0 : i32
    %c0_i32_0 = arith.constant 0 : i32
    %c0_i32_1 = arith.constant 0 : i32
    return %c0_i32, %c0_i32_0 : i32, i32
  }
  func.func @transform_5(%arg0: i32) -> (i32, i32) {
    %c0_i32 = arith.constant 0 : i32
    %c0_i32_0 = arith.constant 0 : i32
    %c0_i32_1 = arith.constant 0 : i32
    return %c0_i32, %c0_i32_0 : i32, i32
  }
  func.func @transform_6(%arg0: i32) -> (i32, i32) {
    %c0_i32 = arith.constant 0 : i32
    %c0_i32_0 = arith.constant 0 : i32
    %c0_i32_1 = arith.constant 0 : i32
    return %c0_i32, %c0_i32_0 : i32, i32
  }
  func.func @transform_7(%arg0: i32) -> (i32, i32) {
    %c0_i32 = arith.constant 0 : i32
    %c0_i32_0 = arith.constant 0 : i32
    %c0_i32_1 = arith.constant 0 : i32
    return %c0_i32, %c0_i32_0 : i32, i32
  }
  func.func @transform_8(%arg0: i32) -> (i32, i32) {
    %c0_i32 = arith.constant 0 : i32
    %c0_i32_0 = arith.constant 0 : i32
    %c0_i32_1 = arith.constant 0 : i32
    return %c0_i32, %c0_i32_0 : i32, i32
  }
  func.func @transform_9(%arg0: i32) -> (i32, i32) {
    %c0_i32 = arith.constant 0 : i32
    %c0_i32_0 = arith.constant 0 : i32
    %c0_i32_1 = arith.constant 0 : i32
    return %c0_i32, %c0_i32_0 : i32, i32
  }
  func.func @transform_10(%arg0: i32) -> (i32, i32) {
    %c0_i32 = arith.constant 0 : i32
    %c0_i32_0 = arith.constant 0 : i32
    %c0_i32_1 = arith.constant 0 : i32
    return %c0_i32, %c0_i32_0 : i32, i32
  }
  func.func @transform_11(%arg0: i32) -> (i32, i32) {
    %c0_i32 = arith.constant 0 : i32
    %c0_i32_0 = arith.constant 0 : i32
    %c0_i32_1 = arith.constant 0 : i32
    return %c0_i32, %c0_i32_0 : i32, i32
  }
}

</mosaic_0001>

<llo_original>
// kernel: food101k_classifier.1
$region0: #{food101k_classifier.1}
  #allocation0 [shape = 'u32[]', space=smem, size = 0x4, offset = 0x4, fixed_abs, tag = 'smem constant byte address 0x4 - core index']
  #allocation1 [shape = 'u32[144,128]{1,0:T(1,128)}', space=vmem, size = 0x12000, scoped, tag = 'internal scratch']
  #allocation2 [shape = 'f32[16,1024]{1,0:T(8,128)}', space=vmem, size = 0x10000, scoped, tag = 'scratch operand']
  %s0 = inlined_call_operand.vmem [shape: f32[16,512], index: 0, kind: input, shape index: {}]
  %s1 = inlined_call_operand.hbm [shape: bf16[512,1024], index: 1, kind: input, shape index: {}]
  %s2 = inlined_call_operand.vmem [shape: f32[1,1024], index: 2, kind: input, shape index: {}]
  %s3 = inlined_call_operand.vmem [shape: f32[1,1024], index: 3, kind: input, shape index: {}]
  %s4 = inlined_call_operand.vmem [shape: f32[1,1024], index: 4, kind: input, shape index: {}]
  %s5 = inlined_call_operand.hbm [shape: bf16[1024,512], index: 5, kind: input, shape index: {}]
  %s6 = inlined_call_operand.vmem [shape: f32[1,512], index: 6, kind: input, shape index: {}]
  %s7 = inlined_call_operand.vmem [shape: f32[1,512], index: 7, kind: input, shape index: {}]
  %s8 = inlined_call_operand.vmem [shape: f32[1,512], index: 8, kind: input, shape index: {}]
  %s9 = inlined_call_operand.hbm [shape: bf16[512,128], index: 9, kind: input, shape index: {}]
  %s10 = inlined_call_operand.vmem [shape: f32[1,128], index: 10, kind: input, shape index: {}]
  %s11 = inlined_call_operand.hbm [shape: f32[16,128], index: 11, kind: output, shape index: {}]
  %s12 = sld [smem:[#allocation0]]
  $region74: #{food101k_classifier.1} parent=0
    _
  %s14 = ssub.s32 1, %s12
  %s15 = scalar_select 0, %s14, %s12
  $region1: #{food101k_classifier.1} parent=0
    #allocation3 [shape = 'u8[1048576]{0}', space=vmem, size = 0x100000, scoped, tag = 'input window, operand 1, single buffered']
    #allocation4 [shape = 's32[1]{0}', space=sflag, size = 0x4, scoped, tag = 'scoped memory for food101k_classifier.1']
    #allocation5 [shape = 's32[1]{0}', space=sflag, size = 0x4, scoped, tag = 'scoped memory for food101k_classifier.1']
    #allocation6 [shape = 'u8[1048576]{0}', space=vmem, size = 0x100000, scoped, tag = 'input window, operand 5, single buffered']
    #allocation7 [shape = 's32[1]{0}', space=sflag, size = 0x4, scoped, tag = 'scoped memory for food101k_classifier.1']
    #allocation8 [shape = 'u8[131072]{0}', space=vmem, size = 0x20000, scoped, tag = 'input window, operand 9, single buffered']
    #allocation9 [shape = 'u8[8192]{0}', space=vmem, size = 0x2000, scoped, tag = 'output window, operand 0, single buffered']
    %16 = vsyncpa [#allocation4], 0
    %17 = vsyncpa [#allocation7], 0
    %18 = vsyncpa [#allocation5], 0
    // Predicated region
    $region2: #{food101k_classifier.1} parent=1 // pred_check
      _
    $region3: #{food101k_classifier.1} parent=1 // pred_check_branch
      %20 = sbr.rel (0) target = $region5
    $region4: #{food101k_classifier.1} parent=1 // pred_region
      _
    $region5: #{food101k_classifier.1} parent=1 // pred_fallthru
      _
    // Predicated region
    $region6: #{food101k_classifier.1} parent=1 // pred_check
      _
    $region7: #{food101k_classifier.1} parent=1 // pred_check_branch
      %22 = sbr.rel (0) target = $region9
    $region8: #{food101k_classifier.1} parent=1 // pred_region
      %s24 = ssub.s32 32768, 32768
      %25 = vsyncadd [#allocation4], %s24
      %s26 = sshll.u32 [#allocation3], 4
      %s27 = int_to_ptr.vmem [resolvable:$true] %s26
      %32 = dma.hbm_to_vmem [thread:$0]  %s1, 32768, %s27, [#allocation4], 512, 512, 32
    $region9: #{food101k_classifier.1} parent=1 // pred_fallthru
      _
    // Predicated region
    $region10: #{food101k_classifier.1} parent=1 // pred_check
      _
    $region11: #{food101k_classifier.1} parent=1 // pred_check_branch
      %34 = sbr.rel (0) target = $region13
    $region12: #{food101k_classifier.1} parent=1 // pred_region
      _
    $region13: #{food101k_classifier.1} parent=1 // pred_fallthru
      _
    // Predicated region
    $region14: #{food101k_classifier.1} parent=1 // pred_check
      _
    $region15: #{food101k_classifier.1} parent=1 // pred_check_branch
      %36 = sbr.rel (0) target = $region17
    $region16: #{food101k_classifier.1} parent=1 // pred_region
      _
    $region17: #{food101k_classifier.1} parent=1 // pred_fallthru
      _
    // Predicated region
    $region18: #{food101k_classifier.1} parent=1 // pred_check
      _
    $region19: #{food101k_classifier.1} parent=1 // pred_check_branch
      %38 = sbr.rel (0) target = $region21
    $region20: #{food101k_classifier.1} parent=1 // pred_region
      _
    $region21: #{food101k_classifier.1} parent=1 // pred_fallthru
      _
    // Predicated region
    $region22: #{food101k_classifier.1} parent=1 // pred_check
      _
    $region23: #{food101k_classifier.1} parent=1 // pred_check_branch
      %40 = sbr.rel (0) target = $region25
    $region24: #{food101k_classifier.1} parent=1 // pred_region
      %s42 = ssub.s32 32768, 32768
      %43 = vsyncadd [#allocation7], %s42
      %s44 = sshll.u32 [#allocation6], 4
      %s45 = int_to_ptr.vmem [resolvable:$true] %s44
      %50 = dma.hbm_to_vmem [thread:$0]  %s5, 32768, %s45, [#allocation7], 256, 256, 16
    $region25: #{food101k_classifier.1} parent=1 // pred_fallthru
      _
    // Predicated region
    $region26: #{food101k_classifier.1} parent=1 // pred_check
      _
    $region27: #{food101k_classifier.1} parent=1 // pred_check_branch
      %52 = sbr.rel (0) target = $region29
    $region28: #{food101k_classifier.1} parent=1 // pred_region
      _
    $region29: #{food101k_classifier.1} parent=1 // pred_fallthru
      _
    // Predicated region
    $region30: #{food101k_classifier.1} parent=1 // pred_check
      _
    $region31: #{food101k_classifier.1} parent=1 // pred_check_branch
      %54 = sbr.rel (0) target = $region33
    $region32: #{food101k_classifier.1} parent=1 // pred_region
      _
    $region33: #{food101k_classifier.1} parent=1 // pred_fallthru
      _
    // Predicated region
    $region34: #{food101k_classifier.1} parent=1 // pred_check
      _
    $region35: #{food101k_classifier.1} parent=1 // pred_check_branch
      %56 = sbr.rel (0) target = $region37
    $region36: #{food101k_classifier.1} parent=1 // pred_region
      _
    $region37: #{food101k_classifier.1} parent=1 // pred_fallthru
      _
    // Predicated region
    $region38: #{food101k_classifier.1} parent=1 // pred_check
      _
    $region39: #{food101k_classifier.1} parent=1 // pred_check_branch
      %58 = sbr.rel (0) target = $region41
    $region40: #{food101k_classifier.1} parent=1 // pred_region
      %s60 = ssub.s32 4096, 4096
      %61 = vsyncadd [#allocation7], %s60
      %s62 = sshll.u32 [#allocation8], 4
      %s63 = int_to_ptr.vmem [resolvable:$true] %s62
      %68 = dma.hbm_to_vmem [thread:$0]  %s9, 4096, %s63, [#allocation7], 64, 64, 4
    $region41: #{food101k_classifier.1} parent=1 // pred_fallthru
      _
    // Predicated region
    $region42: #{food101k_classifier.1} parent=1 // pred_check
      _
    $region43: #{food101k_classifier.1} parent=1 // pred_check_branch
      %70 = sbr.rel (0) target = $region45
    $region44: #{food101k_classifier.1} parent=1 // pred_region
      _
    $region45: #{food101k_classifier.1} parent=1 // pred_fallthru
      _
    // Predicated region
    $region46: #{food101k_classifier.1} parent=1 // pred_check
      _
    $region47: #{food101k_classifier.1} parent=1 // pred_check_branch
      %72 = sbr.rel (0) target = $region49
    $region48: #{food101k_classifier.1} parent=1 // pred_region
      %73 = dma.done [#allocation4], 32768
    $region49: #{food101k_classifier.1} parent=1 // pred_fallthru
      _
    // Predicated region
    $region50: #{food101k_classifier.1} parent=1 // pred_check
      _
    $region51: #{food101k_classifier.1} parent=1 // pred_check_branch
      %75 = sbr.rel (0) target = $region53
    $region52: #{food101k_classifier.1} parent=1 // pred_region
      %76 = dma.done [#allocation7], 32768
    $region53: #{food101k_classifier.1} parent=1 // pred_fallthru
      _
    // Predicated region
    $region54: #{food101k_classifier.1} parent=1 // pred_check
      _
    $region55: #{food101k_classifier.1} parent=1 // pred_check_branch
      %78 = sbr.rel (0) target = $region57
    $region56: #{food101k_classifier.1} parent=1 // pred_region
      %79 = dma.done [#allocation7], 4096
    $region57: #{food101k_classifier.1} parent=1 // pred_fallthru
      _
    %p81 = scmp.eq.s32.totalorder 0, 0
    // Predicated region
    $region58: #{food101k_classifier.1} parent=1 // pred_check
      %p82 = pneg %p81
    $region59: #{food101k_classifier.1} parent=1 // pred_check_branch
      %84 = sbr.rel (%p82) target = $region61
    $region60: #{food101k_classifier.1} parent=1 // pred_region
      %85 = vst [vmem:[#allocation2] sm:$0xff] 0.0
      %86 = vst [vmem:[#allocation2 + $0x8] sm:$0xff] 0.0
      %87 = vst [vmem:[#allocation2 + $0x10] sm:$0xff] 0.0
      %88 = vst [vmem:[#allocation2 + $0x18] sm:$0xff] 0.0
      %89 = vst [vmem:[#allocation2 + $0x20] sm:$0xff] 0.0
      %90 = vst [vmem:[#allocation2 + $0x28] sm:$0xff] 0.0
      %91 = vst [vmem:[#allocation2 + $0x30] sm:$0xff] 0.0
      %92 = vst [vmem:[#allocation2 + $0x38] sm:$0xff] 0.0
      %93 = vst [vmem:[#allocation2 + $0x40] sm:$0xff] 0.0
      %94 = vst [vmem:[#allocation2 + $0x48] sm:$0xff] 0.0
      %95 = vst [vmem:[#allocation2 + $0x50] sm:$0xff] 0.0
      %96 = vst [vmem:[#allocation2 + $0x58] sm:$0xff] 0.0
      %97 = vst [vmem:[#allocation2 + $0x60] sm:$0xff] 0.0
      %98 = vst [vmem:[#allocation2 + $0x68] sm:$0xff] 0.0
      %99 = vst [vmem:[#allocation2 + $0x70] sm:$0xff] 0.0
      %100 = vst [vmem:[#allocation2 + $0x78] sm:$0xff] 0.0
    $region61: #{food101k_classifier.1} parent=1 // pred_fallthru
      _
    %v101 = vld [vmem:[%s0] sm:$0xff]
    %v102 = vld [vmem:[%s0 + $0x8] sm:$0xff]
    %v103 = vld [vmem:[%s0 + $0x10] sm:$0xff]
    %v104 = vld [vmem:[%s0 + $0x18] sm:$0xff]
    %v105 = vld [vmem:[%s0 + $0x20] sm:$0xff]
    %v106 = vld [vmem:[%s0 + $0x28] sm:$0xff]
    %v107 = vld [vmem:[%s0 + $0x30] sm:$0xff]
    %v108 = vld [vmem:[%s0 + $0x38] sm:$0xff]
    %v109 = vmax.f32 %v101, 0.0
    %v110 = vmax.f32 %v102, 0.0
    %v111 = vmax.f32 %v103, 0.0
    %v112 = vmax.f32 %v104, 0.0
    %v113 = vmax.f32 %v105, 0.0
    %v114 = vmax.f32 %v106, 0.0
    %v115 = vmax.f32 %v107, 0.0
    %v116 = vmax.f32 %v108, 0.0
    %v117 = vpack.c.bf16 %v113, %v109
    %v118 = vpack.c.bf16 %v114, %v110
    %v119 = vpack.c.bf16 %v115, %v111
    %v120 = vpack.c.bf16 %v116, %v112
    %v121 = vld [vmem:[#allocation2] sm:$0xff]
    %v122 = vld [vmem:[#allocation2 + $0x8] sm:$0xff]
    %v123 = vld [vmem:[#allocation2 + $0x10] sm:$0xff]
    %v124 = vld [vmem:[#allocation2 + $0x18] sm:$0xff]
    %v125 = vld [vmem:[#allocation2 + $0x20] sm:$0xff]
    %v126 = vld [vmem:[#allocation2 + $0x28] sm:$0xff]
    %v127 = vld [vmem:[#allocation2 + $0x30] sm:$0xff]
    %v128 = vld [vmem:[#allocation2 + $0x38] sm:$0xff]
    %v129 = vld [vmem:[#allocation2 + $0x40] sm:$0xff]
    %v130 = vld [vmem:[#allocation2 + $0x48] sm:$0xff]
    %v131 = vld [vmem:[#allocation2 + $0x50] sm:$0xff]
    %v132 = vld [vmem:[#allocation2 + $0x58] sm:$0xff]
    %v133 = vld [vmem:[#allocation2 + $0x60] sm:$0xff]
    %v134 = vld [vmem:[#allocation2 + $0x68] sm:$0xff]
    %v135 = vld [vmem:[#allocation2 + $0x70] sm:$0xff]
    %v136 = vld [vmem:[#allocation2 + $0x78] sm:$0xff]
    %v137 = vld [vmem:[#allocation3] sm:$0xff]
    %v138 = vld [vmem:[#allocation3 + $0x8] sm:$0xff]
    %v139 = vld [vmem:[#allocation3 + $0x10] sm:$0xff]
    %v140 = vld [vmem:[#allocation3 + $0x18] sm:$0xff]
    %v141 = vld [vmem:[#allocation3 + $0x20] sm:$0xff]
    %v142 = vld [vmem:[#allocation3 + $0x28] sm:$0xff]
    %v143 = vld [vmem:[#allocation3 + $0x30] sm:$0xff]
    %v144 = vld [vmem:[#allocation3 + $0x38] sm:$0xff]
    %v145 = vld [vmem:[#allocation3 + $0x40] sm:$0xff]
    %v146 = vld [vmem:[#allocation3 + $0x48] sm:$0xff]
    %v147 = vld [vmem:[#allocation3 + $0x50] sm:$0xff]
    %v148 = vld [vmem:[#allocation3 + $0x58] sm:$0xff]
    %v149 = vld [vmem:[#allocation3 + $0x60] sm:$0xff]
    %v150 = vld [vmem:[#allocation3 + $0x68] sm:$0xff]
    %v151 = vld [vmem:[#allocation3 + $0x70] sm:$0xff]
    %v152 = vld [vmem:[#allocation3 + $0x78] sm:$0xff]
    %v153 = vld [vmem:[#allocation3 + $0x80] sm:$0xff]
    %v154 = vld [vmem:[#allocation3 + $0x88] sm:$0xff]
    %v155 = vld [vmem:[#allocation3 + $0x90] sm:$0xff]
    %v156 = vld [vmem:[#allocation3 + $0x98] sm:$0xff]
    %v157 = vld [vmem:[#allocation3 + $0xa0] sm:$0xff]
    %v158 = vld [vmem:[#allocation3 + $0xa8] sm:$0xff]
    %v159 = vld [vmem:[#allocation3 + $0xb0] sm:$0xff]
    %v160 = vld [vmem:[#allocation3 + $0xb8] sm:$0xff]
    %v161 = vld [vmem:[#allocation3 + $0xc0] sm:$0xff]
    %v162 = vld [vmem:[#allocation3 + $0xc8] sm:$0xff]
    %v163 = vld [vmem:[#allocation3 + $0xd0] sm:$0xff]
    %v164 = vld [vmem:[#allocation3 + $0xd8] sm:$0xff]
    %v165 = vld [vmem:[#allocation3 + $0xe0] sm:$0xff]
    %v166 = vld [vmem:[#allocation3 + $0xe8] sm:$0xff]
    %v167 = vld [vmem:[#allocation3 + $0xf0] sm:$0xff]
    %v168 = vld [vmem:[#allocation3 + $0xf8] sm:$0xff]
    %v169 = vld [vmem:[#allocation3 + $0x100] sm:$0xff]
    %v170 = vld [vmem:[#allocation3 + $0x108] sm:$0xff]
    %v171 = vld [vmem:[#allocation3 + $0x110] sm:$0xff]
    %v172 = vld [vmem:[#allocation3 + $0x118] sm:$0xff]
    %v173 = vld [vmem:[#allocation3 + $0x120] sm:$0xff]
    %v174 = vld [vmem:[#allocation3 + $0x128] sm:$0xff]
    %v175 = vld [vmem:[#allocation3 + $0x130] sm:$0xff]
    %v176 = vld [vmem:[#allocation3 + $0x138] sm:$0xff]
    %v177 = vld [vmem:[#allocation3 + $0x140] sm:$0xff]
    %v178 = vld [vmem:[#allocation3 + $0x148] sm:$0xff]
    %v179 = vld [vmem:[#allocation3 + $0x150] sm:$0xff]
    %v180 = vld [vmem:[#allocation3 + $0x158] sm:$0xff]
    %v181 = vld [vmem:[#allocation3 + $0x160] sm:$0xff]
    %v182 = vld [vmem:[#allocation3 + $0x168] sm:$0xff]
    %v183 = vld [vmem:[#allocation3 + $0x170] sm:$0xff]
    %v184 = vld [vmem:[#allocation3 + $0x178] sm:$0xff]
    %v185 = vld [vmem:[#allocation3 + $0x180] sm:$0xff]
    %v186 = vld [vmem:[#allocation3 + $0x188] sm:$0xff]
    %v187 = vld [vmem:[#allocation3 + $0x190] sm:$0xff]
    %v188 = vld [vmem:[#allocation3 + $0x198] sm:$0xff]
    %v189 = vld [vmem:[#allocation3 + $0x1a0] sm:$0xff]
    %v190 = vld [vmem:[#allocation3 + $0x1a8] sm:$0xff]
    %v191 = vld [vmem:[#allocation3 + $0x1b0] sm:$0xff]
    %v192 = vld [vmem:[#allocation3 + $0x1b8] sm:$0xff]
    %v193 = vld [vmem:[#allocation3 + $0x1c0] sm:$0xff]
    %v194 = vld [vmem:[#allocation3 + $0x1c8] sm:$0xff]
    %v195 = vld [vmem:[#allocation3 + $0x1d0] sm:$0xff]
    %v196 = vld [vmem:[#allocation3 + $0x1d8] sm:$0xff]
    %v197 = vld [vmem:[#allocation3 + $0x1e0] sm:$0xff]
    %v198 = vld [vmem:[#allocation3 + $0x1e8] sm:$0xff]
    %v199 = vld [vmem:[#allocation3 + $0x1f0] sm:$0xff]
    %v200 = vld [vmem:[#allocation3 + $0x1f8] sm:$0xff]
    %v201 = vld [vmem:[#allocation3 + $0x200] sm:$0xff]
    %v202 = vld [vmem:[#allocation3 + $0x208] sm:$0xff]
    %v203 = vld [vmem:[#allocation3 + $0x210] sm:$0xff]
    %v204 = vld [vmem:[#allocation3 + $0x218] sm:$0xff]
    %v205 = vld [vmem:[#allocation3 + $0x220] sm:$0xff]
    %v206 = vld [vmem:[#allocation3 + $0x228] sm:$0xff]
    %v207 = vld [vmem:[#allocation3 + $0x230] sm:$0xff]
    %v208 = vld [vmem:[#allocation3 + $0x238] sm:$0xff]
    %v209 = vld [vmem:[#allocation3 + $0x240] sm:$0xff]
    %v210 = vld [vmem:[#allocation3 + $0x248] sm:$0xff]
    %v211 = vld [vmem:[#allocation3 + $0x250] sm:$0xff]
    %v212 = vld [vmem:[#allocation3 + $0x258] sm:$0xff]
    %v213 = vld [vmem:[#allocation3 + $0x260] sm:$0xff]
    %v214 = vld [vmem:[#allocation3 + $0x268] sm:$0xff]
    %v215 = vld [vmem:[#allocation3 + $0x270] sm:$0xff]
    %v216 = vld [vmem:[#allocation3 + $0x278] sm:$0xff]
    %v217 = vld [vmem:[#allocation3 + $0x280] sm:$0xff]
    %v218 = vld [vmem:[#allocation3 + $0x288] sm:$0xff]
    %v219 = vld [vmem:[#allocation3 + $0x290] sm:$0xff]
    %v220 = vld [vmem:[#allocation3 + $0x298] sm:$0xff]
    %v221 = vld [vmem:[#allocation3 + $0x2a0] sm:$0xff]
    %v222 = vld [vmem:[#allocation3 + $0x2a8] sm:$0xff]
    %v223 = vld [vmem:[#allocation3 + $0x2b0] sm:$0xff]
    %v224 = vld [vmem:[#allocation3 + $0x2b8] sm:$0xff]
    %v225 = vld [vmem:[#allocation3 + $0x2c0] sm:$0xff]
    %v226 = vld [vmem:[#allocation3 + $0x2c8] sm:$0xff]
    %v227 = vld [vmem:[#allocation3 + $0x2d0] sm:$0xff]
    %v228 = vld [vmem:[#allocation3 + $0x2d8] sm:$0xff]
    %v229 = vld [vmem:[#allocation3 + $0x2e0] sm:$0xff]
    %v230 = vld [vmem:[#allocation3 + $0x2e8] sm:$0xff]
    %v231 = vld [vmem:[#allocation3 + $0x2f0] sm:$0xff]
    %v232 = vld [vmem:[#allocation3 + $0x2f8] sm:$0xff]
    %v233 = vld [vmem:[#allocation3 + $0x300] sm:$0xff]
    %v234 = vld [vmem:[#allocation3 + $0x308] sm:$0xff]
    %v235 = vld [vmem:[#allocation3 + $0x310] sm:$0xff]
    %v236 = vld [vmem:[#allocation3 + $0x318] sm:$0xff]
    %v237 = vld [vmem:[#allocation3 + $0x320] sm:$0xff]
    %v238 = vld [vmem:[#allocation3 + $0x328] sm:$0xff]
    %v239 = vld [vmem:[#allocation3 + $0x330] sm:$0xff]
    %v240 = vld [vmem:[#allocation3 + $0x338] sm:$0xff]
    %v241 = vld [vmem:[#allocation3 + $0x340] sm:$0xff]
    %v242 = vld [vmem:[#allocation3 + $0x348] sm:$0xff]
    %v243 = vld [vmem:[#allocation3 + $0x350] sm:$0xff]
    %v244 = vld [vmem:[#allocation3 + $0x358] sm:$0xff]
    %v245 = vld [vmem:[#allocation3 + $0x360] sm:$0xff]
    %v246 = vld [vmem:[#allocation3 + $0x368] sm:$0xff]
    %v247 = vld [vmem:[#allocation3 + $0x370] sm:$0xff]
    %v248 = vld [vmem:[#allocation3 + $0x378] sm:$0xff]
    %v249 = vld [vmem:[#allocation3 + $0x380] sm:$0xff]
    %v250 = vld [vmem:[#allocation3 + $0x388] sm:$0xff]
    %v251 = vld [vmem:[#allocation3 + $0x390] sm:$0xff]
    %v252 = vld [vmem:[#allocation3 + $0x398] sm:$0xff]
    %v253 = vld [vmem:[#allocation3 + $0x3a0] sm:$0xff]
    %v254 = vld [vmem:[#allocation3 + $0x3a8] sm:$0xff]
    %v255 = vld [vmem:[#allocation3 + $0x3b0] sm:$0xff]
    %v256 = vld [vmem:[#allocation3 + $0x3b8] sm:$0xff]
    %v257 = vld [vmem:[#allocation3 + $0x3c0] sm:$0xff]
    %v258 = vld [vmem:[#allocation3 + $0x3c8] sm:$0xff]
    %v259 = vld [vmem:[#allocation3 + $0x3d0] sm:$0xff]
    %v260 = vld [vmem:[#allocation3 + $0x3d8] sm:$0xff]
    %v261 = vld [vmem:[#allocation3 + $0x3e0] sm:$0xff]
    %v262 = vld [vmem:[#allocation3 + $0x3e8] sm:$0xff]
    %v263 = vld [vmem:[#allocation3 + $0x3f0] sm:$0xff]
    %v264 = vld [vmem:[#allocation3 + $0x3f8] sm:$0xff]
    %v265 = vld [vmem:[#allocation3 + $0x400] sm:$0xff]
    %v266 = vld [vmem:[#allocation3 + $0x408] sm:$0xff]
    %v267 = vld [vmem:[#allocation3 + $0x410] sm:$0xff]
    %v268 = vld [vmem:[#allocation3 + $0x418] sm:$0xff]
    %v269 = vld [vmem:[#allocation3 + $0x420] sm:$0xff]
    %v270 = vld [vmem:[#allocation3 + $0x428] sm:$0xff]
    %v271 = vld [vmem:[#allocation3 + $0x430] sm:$0xff]
    %v272 = vld [vmem:[#allocation3 + $0x438] sm:$0xff]
    %v273 = vld [vmem:[#allocation3 + $0x440] sm:$0xff]
    %v274 = vld [vmem:[#allocation3 + $0x448] sm:$0xff]
    %v275 = vld [vmem:[#allocation3 + $0x450] sm:$0xff]
    %v276 = vld [vmem:[#allocation3 + $0x458] sm:$0xff]
    %v277 = vld [vmem:[#allocation3 + $0x460] sm:$0xff]
    %v278 = vld [vmem:[#allocation3 + $0x468] sm:$0xff]
    %v279 = vld [vmem:[#allocation3 + $0x470] sm:$0xff]
    %v280 = vld [vmem:[#allocation3 + $0x478] sm:$0xff]
    %v281 = vld [vmem:[#allocation3 + $0x480] sm:$0xff]
    %v282 = vld [vmem:[#allocation3 + $0x488] sm:$0xff]
    %v283 = vld [vmem:[#allocation3 + $0x490] sm:$0xff]
    %v284 = vld [vmem:[#allocation3 + $0x498] sm:$0xff]
    %v285 = vld [vmem:[#allocation3 + $0x4a0] sm:$0xff]
    %v286 = vld [vmem:[#allocation3 + $0x4a8] sm:$0xff]
    %v287 = vld [vmem:[#allocation3 + $0x4b0] sm:$0xff]
    %v288 = vld [vmem:[#allocation3 + $0x4b8] sm:$0xff]
    %v289 = vld [vmem:[#allocation3 + $0x4c0] sm:$0xff]
    %v290 = vld [vmem:[#allocation3 + $0x4c8] sm:$0xff]
    %v291 = vld [vmem:[#allocation3 + $0x4d0] sm:$0xff]
    %v292 = vld [vmem:[#allocation3 + $0x4d8] sm:$0xff]
    %v293 = vld [vmem:[#allocation3 + $0x4e0] sm:$0xff]
    %v294 = vld [vmem:[#allocation3 + $0x4e8] sm:$0xff]
    %v295 = vld [vmem:[#allocation3 + $0x4f0] sm:$0xff]
    %v296 = vld [vmem:[#allocation3 + $0x4f8] sm:$0xff]
    %v297 = vld [vmem:[#allocation3 + $0x500] sm:$0xff]
    %v298 = vld [vmem:[#allocation3 + $0x508] sm:$0xff]
    %v299 = vld [vmem:[#allocation3 + $0x510] sm:$0xff]
    %v300 = vld [vmem:[#allocation3 + $0x518] sm:$0xff]
    %v301 = vld [vmem:[#allocation3 + $0x520] sm:$0xff]
    %v302 = vld [vmem:[#allocation3 + $0x528] sm:$0xff]
    %v303 = vld [vmem:[#allocation3 + $0x530] sm:$0xff]
    %v304 = vld [vmem:[#allocation3 + $0x538] sm:$0xff]
    %v305 = vld [vmem:[#allocation3 + $0x540] sm:$0xff]
    %v306 = vld [vmem:[#allocation3 + $0x548] sm:$0xff]
    %v307 = vld [vmem:[#allocation3 + $0x550] sm:$0xff]
    %v308 = vld [vmem:[#allocation3 + $0x558] sm:$0xff]
    %v309 = vld [vmem:[#allocation3 + $0x560] sm:$0xff]
    %v310 = vld [vmem:[#allocation3 + $0x568] sm:$0xff]
    %v311 = vld [vmem:[#allocation3 + $0x570] sm:$0xff]
    %v312 = vld [vmem:[#allocation3 + $0x578] sm:$0xff]
    %v313 = vld [vmem:[#allocation3 + $0x580] sm:$0xff]
    %v314 = vld [vmem:[#allocation3 + $0x588] sm:$0xff]
    %v315 = vld [vmem:[#allocation3 + $0x590] sm:$0xff]
    %v316 = vld [vmem:[#allocation3 + $0x598] sm:$0xff]
    %v317 = vld [vmem:[#allocation3 + $0x5a0] sm:$0xff]
    %v318 = vld [vmem:[#allocation3 + $0x5a8] sm:$0xff]
    %v319 = vld [vmem:[#allocation3 + $0x5b0] sm:$0xff]
    %v320 = vld [vmem:[#allocation3 + $0x5b8] sm:$0xff]
    %v321 = vld [vmem:[#allocation3 + $0x5c0] sm:$0xff]
    %v322 = vld [vmem:[#allocation3 + $0x5c8] sm:$0xff]
    %v323 = vld [vmem:[#allocation3 + $0x5d0] sm:$0xff]
    %v324 = vld [vmem:[#allocation3 + $0x5d8] sm:$0xff]
    %v325 = vld [vmem:[#allocation3 + $0x5e0] sm:$0xff]
    %v326 = vld [vmem:[#allocation3 + $0x5e8] sm:$0xff]
    %v327 = vld [vmem:[#allocation3 + $0x5f0] sm:$0xff]
    %v328 = vld [vmem:[#allocation3 + $0x5f8] sm:$0xff]
    %v329 = vld [vmem:[#allocation3 + $0x600] sm:$0xff]
    %v330 = vld [vmem:[#allocation3 + $0x608] sm:$0xff]
    %v331 = vld [vmem:[#allocation3 + $0x610] sm:$0xff]
    %v332 = vld [vmem:[#allocation3 + $0x618] sm:$0xff]
    %v333 = vld [vmem:[#allocation3 + $0x620] sm:$0xff]
    %v334 = vld [vmem:[#allocation3 + $0x628] sm:$0xff]
    %v335 = vld [vmem:[#allocation3 + $0x630] sm:$0xff]
    %v336 = vld [vmem:[#allocation3 + $0x638] sm:$0xff]
    %v337 = vld [vmem:[#allocation3 + $0x640] sm:$0xff]
    %v338 = vld [vmem:[#allocation3 + $0x648] sm:$0xff]
    %v339 = vld [vmem:[#allocation3 + $0x650] sm:$0xff]
    %v340 = vld [vmem:[#allocation3 + $0x658] sm:$0xff]
    %v341 = vld [vmem:[#allocation3 + $0x660] sm:$0xff]
    %v342 = vld [vmem:[#allocation3 + $0x668] sm:$0xff]
    %v343 = vld [vmem:[#allocation3 + $0x670] sm:$0xff]
    %v344 = vld [vmem:[#allocation3 + $0x678] sm:$0xff]
    %v345 = vld [vmem:[#allocation3 + $0x680] sm:$0xff]
    %v346 = vld [vmem:[#allocation3 + $0x688] sm:$0xff]
    %v347 = vld [vmem:[#allocation3 + $0x690] sm:$0xff]
    %v348 = vld [vmem:[#allocation3 + $0x698] sm:$0xff]
    %v349 = vld [vmem:[#allocation3 + $0x6a0] sm:$0xff]
    %v350 = vld [vmem:[#allocation3 + $0x6a8] sm:$0xff]
    %v351 = vld [vmem:[#allocation3 + $0x6b0] sm:$0xff]
    %v352 = vld [vmem:[#allocation3 + $0x6b8] sm:$0xff]
    %v353 = vld [vmem:[#allocation3 + $0x6c0] sm:$0xff]
    %v354 = vld [vmem:[#allocation3 + $0x6c8] sm:$0xff]
    %v355 = vld [vmem:[#allocation3 + $0x6d0] sm:$0xff]
    %v356 = vld [vmem:[#allocation3 + $0x6d8] sm:$0xff]
    %v357 = vld [vmem:[#allocation3 + $0x6e0] sm:$0xff]
    %v358 = vld [vmem:[#allocation3 + $0x6e8] sm:$0xff]
    %v359 = vld [vmem:[#allocation3 + $0x6f0] sm:$0xff]
    %v360 = vld [vmem:[#allocation3 + $0x6f8] sm:$0xff]
    %v361 = vld [vmem:[#allocation3 + $0x700] sm:$0xff]
    %v362 = vld [vmem:[#allocation3 + $0x708] sm:$0xff]
    %v363 = vld [vmem:[#allocation3 + $0x710] sm:$0xff]
    %v364 = vld [vmem:[#allocation3 + $0x718] sm:$0xff]
    %v365 = vld [vmem:[#allocation3 + $0x720] sm:$0xff]
    %v366 = vld [vmem:[#allocation3 + $0x728] sm:$0xff]
    %v367 = vld [vmem:[#allocation3 + $0x730] sm:$0xff]
    %v368 = vld [vmem:[#allocation3 + $0x738] sm:$0xff]
    %v369 = vld [vmem:[#allocation3 + $0x740] sm:$0xff]
    %v370 = vld [vmem:[#allocation3 + $0x748] sm:$0xff]
    %v371 = vld [vmem:[#allocation3 + $0x750] sm:$0xff]
    %v372 = vld [vmem:[#allocation3 + $0x758] sm:$0xff]
    %v373 = vld [vmem:[#allocation3 + $0x760] sm:$0xff]
    %v374 = vld [vmem:[#allocation3 + $0x768] sm:$0xff]
    %v375 = vld [vmem:[#allocation3 + $0x770] sm:$0xff]
    %v376 = vld [vmem:[#allocation3 + $0x778] sm:$0xff]
    %v377 = vld [vmem:[#allocation3 + $0x780] sm:$0xff]
    %v378 = vld [vmem:[#allocation3 + $0x788] sm:$0xff]
    %v379 = vld [vmem:[#allocation3 + $0x790] sm:$0xff]
    %v380 = vld [vmem:[#allocation3 + $0x798] sm:$0xff]
    %v381 = vld [vmem:[#allocation3 + $0x7a0] sm:$0xff]
    %v382 = vld [vmem:[#allocation3 + $0x7a8] sm:$0xff]
    %v383 = vld [vmem:[#allocation3 + $0x7b0] sm:$0xff]
    %v384 = vld [vmem:[#allocation3 + $0x7b8] sm:$0xff]
    %v385 = vld [vmem:[#allocation3 + $0x7c0] sm:$0xff]
    %v386 = vld [vmem:[#allocation3 + $0x7c8] sm:$0xff]
    %v387 = vld [vmem:[#allocation3 + $0x7d0] sm:$0xff]
    %v388 = vld [vmem:[#allocation3 + $0x7d8] sm:$0xff]
    %v389 = vld [vmem:[#allocation3 + $0x7e0] sm:$0xff]
    %v390 = vld [vmem:[#allocation3 + $0x7e8] sm:$0xff]
    %v391 = vld [vmem:[#allocation3 + $0x7f0] sm:$0xff]
    %v392 = vld [vmem:[#allocation3 + $0x7f8] sm:$0xff]
    %v649 = vunpack.c.l.b16 %v137
    %v650 = vunpack.c.h.b16 %v137
    %v651 = vunpack.c.l.b16 %v138
    %v652 = vunpack.c.h.b16 %v138
    %v653 = vunpack.c.l.b16 %v139
    %v654 = vunpack.c.h.b16 %v139
    %v655 = vunpack.c.l.b16 %v140
    %v656 = vunpack.c.h.b16 %v140
    %v657 = vunpack.c.l.b16 %v141
    %v658 = vunpack.c.h.b16 %v141
    %v659 = vunpack.c.l.b16 %v142
    %v660 = vunpack.c.h.b16 %v142
    %v661 = vunpack.c.l.b16 %v143
    %v662 = vunpack.c.h.b16 %v143
    %v663 = vunpack.c.l.b16 %v144
    %v664 = vunpack.c.h.b16 %v144
    %v665 = vunpack.c.l.b16 %v145
    %v666 = vunpack.c.h.b16 %v145
    %v667 = vunpack.c.l.b16 %v146
    %v668 = vunpack.c.h.b16 %v146
    %v669 = vunpack.c.l.b16 %v147
    %v670 = vunpack.c.h.b16 %v147
    %v671 = vunpack.c.l.b16 %v148
    %v672 = vunpack.c.h.b16 %v148
    %v673 = vunpack.c.l.b16 %v149
    %v674 = vunpack.c.h.b16 %v149
    %v675 = vunpack.c.l.b16 %v150
    %v676 = vunpack.c.h.b16 %v150
    %v677 = vunpack.c.l.b16 %v151
    %v678 = vunpack.c.h.b16 %v151
    %v679 = vunpack.c.l.b16 %v152
    %v680 = vunpack.c.h.b16 %v152
    %v681 = vunpack.c.l.b16 %v153
    %v682 = vunpack.c.h.b16 %v153
    %v683 = vunpack.c.l.b16 %v154
    %v684 = vunpack.c.h.b16 %v154
    %v685 = vunpack.c.l.b16 %v155
    %v686 = vunpack.c.h.b16 %v155
    %v687 = vunpack.c.l.b16 %v156
    %v688 = vunpack.c.h.b16 %v156
    %v689 = vunpack.c.l.b16 %v157
    %v690 = vunpack.c.h.b16 %v157
    %v691 = vunpack.c.l.b16 %v158
    %v692 = vunpack.c.h.b16 %v158
    %v693 = vunpack.c.l.b16 %v159
    %v694 = vunpack.c.h.b16 %v159
    %v695 = vunpack.c.l.b16 %v160
    %v696 = vunpack.c.h.b16 %v160
    %v697 = vunpack.c.l.b16 %v161
    %v698 = vunpack.c.h.b16 %v161
    %v699 = vunpack.c.l.b16 %v162
    %v700 = vunpack.c.h.b16 %v162
    %v701 = vunpack.c.l.b16 %v163
    %v702 = vunpack.c.h.b16 %v163
    %v703 = vunpack.c.l.b16 %v164
    %v704 = vunpack.c.h.b16 %v164
    %v705 = vunpack.c.l.b16 %v165
    %v706 = vunpack.c.h.b16 %v165
    %v707 = vunpack.c.l.b16 %v166
    %v708 = vunpack.c.h.b16 %v166
    %v709 = vunpack.c.l.b16 %v167
    %v710 = vunpack.c.h.b16 %v167
    %v711 = vunpack.c.l.b16 %v168
    %v712 = vunpack.c.h.b16 %v168
    %v713 = vunpack.c.l.b16 %v169
    %v714 = vunpack.c.h.b16 %v169
    %v715 = vunpack.c.l.b16 %v170
    %v716 = vunpack.c.h.b16 %v170
    %v717 = vunpack.c.l.b16 %v171
    %v718 = vunpack.c.h.b16 %v171
    %v719 = vunpack.c.l.b16 %v172
    %v720 = vunpack.c.h.b16 %v172
    %v721 = vunpack.c.l.b16 %v173
    %v722 = vunpack.c.h.b16 %v173
    %v723 = vunpack.c.l.b16 %v174
    %v724 = vunpack.c.h.b16 %v174
    %v725 = vunpack.c.l.b16 %v175
    %v726 = vunpack.c.h.b16 %v175
    %v727 = vunpack.c.l.b16 %v176
    %v728 = vunpack.c.h.b16 %v176
    %v729 = vunpack.c.l.b16 %v177
    %v730 = vunpack.c.h.b16 %v177
    %v731 = vunpack.c.l.b16 %v178
    %v732 = vunpack.c.h.b16 %v178
    %v733 = vunpack.c.l.b16 %v179
    %v734 = vunpack.c.h.b16 %v179
    %v735 = vunpack.c.l.b16 %v180
    %v736 = vunpack.c.h.b16 %v180
    %v737 = vunpack.c.l.b16 %v181
    %v738 = vunpack.c.h.b16 %v181
    %v739 = vunpack.c.l.b16 %v182
    %v740 = vunpack.c.h.b16 %v182
    %v741 = vunpack.c.l.b16 %v183
    %v742 = vunpack.c.h.b16 %v183
    %v743 = vunpack.c.l.b16 %v184
    %v744 = vunpack.c.h.b16 %v184
    %v745 = vunpack.c.l.b16 %v185
    %v746 = vunpack.c.h.b16 %v185
    %v747 = vunpack.c.l.b16 %v186
    %v748 = vunpack.c.h.b16 %v186
    %v749 = vunpack.c.l.b16 %v187
    %v750 = vunpack.c.h.b16 %v187
    %v751 = vunpack.c.l.b16 %v188
    %v752 = vunpack.c.h.b16 %v188
    %v753 = vunpack.c.l.b16 %v189
    %v754 = vunpack.c.h.b16 %v189
    %v755 = vunpack.c.l.b16 %v190
    %v756 = vunpack.c.h.b16 %v190
    %v757 = vunpack.c.l.b16 %v191
    %v758 = vunpack.c.h.b16 %v191
    %v759 = vunpack.c.l.b16 %v192
    %v760 = vunpack.c.h.b16 %v192
    %v761 = vunpack.c.l.b16 %v193
    %v762 = vunpack.c.h.b16 %v193
    %v763 = vunpack.c.l.b16 %v194
    %v764 = vunpack.c.h.b16 %v194
    %v765 = vunpack.c.l.b16 %v195
    %v766 = vunpack.c.h.b16 %v195
    %v767 = vunpack.c.l.b16 %v196
    %v768 = vunpack.c.h.b16 %v196
    %v769 = vunpack.c.l.b16 %v197
    %v770 = vunpack.c.h.b16 %v197
    %v771 = vunpack.c.l.b16 %v198
    %v772 = vunpack.c.h.b16 %v198
    %v773 = vunpack.c.l.b16 %v199
    %v774 = vunpack.c.h.b16 %v199
    %v775 = vunpack.c.l.b16 %v200
    %v776 = vunpack.c.h.b16 %v200
    %v777 = vunpack.c.l.b16 %v201
    %v778 = vunpack.c.h.b16 %v201
    %v779 = vunpack.c.l.b16 %v202
    %v780 = vunpack.c.h.b16 %v202
    %v781 = vunpack.c.l.b16 %v203
    %v782 = vunpack.c.h.b16 %v203
    %v783 = vunpack.c.l.b16 %v204
    %v784 = vunpack.c.h.b16 %v204
    %v785 = vunpack.c.l.b16 %v205
    %v786 = vunpack.c.h.b16 %v205
    %v787 = vunpack.c.l.b16 %v206
    %v788 = vunpack.c.h.b16 %v206
    %v789 = vunpack.c.l.b16 %v207
    %v790 = vunpack.c.h.b16 %v207
    %v791 = vunpack.c.l.b16 %v208
    %v792 = vunpack.c.h.b16 %v208
    %v793 = vunpack.c.l.b16 %v209
    %v794 = vunpack.c.h.b16 %v209
    %v795 = vunpack.c.l.b16 %v210
    %v796 = vunpack.c.h.b16 %v210
    %v797 = vunpack.c.l.b16 %v211
    %v798 = vunpack.c.h.b16 %v211
    %v799 = vunpack.c.l.b16 %v212
    %v800 = vunpack.c.h.b16 %v212
    %v801 = vunpack.c.l.b16 %v213
    %v802 = vunpack.c.h.b16 %v213
    %v803 = vunpack.c.l.b16 %v214
    %v804 = vunpack.c.h.b16 %v214
    %v805 = vunpack.c.l.b16 %v215
    %v806 = vunpack.c.h.b16 %v215
    %v807 = vunpack.c.l.b16 %v216
    %v808 = vunpack.c.h.b16 %v216
    %v809 = vunpack.c.l.b16 %v217
    %v810 = vunpack.c.h.b16 %v217
    %v811 = vunpack.c.l.b16 %v218
    %v812 = vunpack.c.h.b16 %v218
    %v813 = vunpack.c.l.b16 %v219
    %v814 = vunpack.c.h.b16 %v219
    %v815 = vunpack.c.l.b16 %v220
    %v816 = vunpack.c.h.b16 %v220
    %v817 = vunpack.c.l.b16 %v221
    %v818 = vunpack.c.h.b16 %v221
    %v819 = vunpack.c.l.b16 %v222
    %v820 = vunpack.c.h.b16 %v222
    %v821 = vunpack.c.l.b16 %v223
    %v822 = vunpack.c.h.b16 %v223
    %v823 = vunpack.c.l.b16 %v224
    %v824 = vunpack.c.h.b16 %v224
    %v825 = vunpack.c.l.b16 %v225
    %v826 = vunpack.c.h.b16 %v225
    %v827 = vunpack.c.l.b16 %v226
    %v828 = vunpack.c.h.b16 %v226
    %v829 = vunpack.c.l.b16 %v227
    %v830 = vunpack.c.h.b16 %v227
    %v831 = vunpack.c.l.b16 %v228
    %v832 = vunpack.c.h.b16 %v228
    %v833 = vunpack.c.l.b16 %v229
    %v834 = vunpack.c.h.b16 %v229
    %v835 = vunpack.c.l.b16 %v230
    %v836 = vunpack.c.h.b16 %v230
    %v837 = vunpack.c.l.b16 %v231
    %v838 = vunpack.c.h.b16 %v231
    %v839 = vunpack.c.l.b16 %v232
    %v840 = vunpack.c.h.b16 %v232
    %v841 = vunpack.c.l.b16 %v233
    %v842 = vunpack.c.h.b16 %v233
    %v843 = vunpack.c.l.b16 %v234
    %v844 = vunpack.c.h.b16 %v234
    %v845 = vunpack.c.l.b16 %v235
    %v846 = vunpack.c.h.b16 %v235
    %v847 = vunpack.c.l.b16 %v236
    %v848 = vunpack.c.h.b16 %v236
    %v849 = vunpack.c.l.b16 %v237
    %v850 = vunpack.c.h.b16 %v237
    %v851 = vunpack.c.l.b16 %v238
    %v852 = vunpack.c.h.b16 %v238
    %v853 = vunpack.c.l.b16 %v239
    %v854 = vunpack.c.h.b16 %v239
    %v855 = vunpack.c.l.b16 %v240
    %v856 = vunpack.c.h.b16 %v240
    %v857 = vunpack.c.l.b16 %v241
    %v858 = vunpack.c.h.b16 %v241
    %v859 = vunpack.c.l.b16 %v242
    %v860 = vunpack.c.h.b16 %v242
    %v861 = vunpack.c.l.b16 %v243
    %v862 = vunpack.c.h.b16 %v243
    %v863 = vunpack.c.l.b16 %v244
    %v864 = vunpack.c.h.b16 %v244
    %v865 = vunpack.c.l.b16 %v245
    %v866 = vunpack.c.h.b16 %v245
    %v867 = vunpack.c.l.b16 %v246
    %v868 = vunpack.c.h.b16 %v246
    %v869 = vunpack.c.l.b16 %v247
    %v870 = vunpack.c.h.b16 %v247
    %v871 = vunpack.c.l.b16 %v248
    %v872 = vunpack.c.h.b16 %v248
    %v873 = vunpack.c.l.b16 %v249
    %v874 = vunpack.c.h.b16 %v249
    %v875 = vunpack.c.l.b16 %v250
    %v876 = vunpack.c.h.b16 %v250
    %v877 = vunpack.c.l.b16 %v251
    %v878 = vunpack.c.h.b16 %v251
    %v879 = vunpack.c.l.b16 %v252
    %v880 = vunpack.c.h.b16 %v252
    %v881 = vunpack.c.l.b16 %v253
    %v882 = vunpack.c.h.b16 %v253
    %v883 = vunpack.c.l.b16 %v254
    %v884 = vunpack.c.h.b16 %v254
    %v885 = vunpack.c.l.b16 %v255
    %v886 = vunpack.c.h.b16 %v255
    %v887 = vunpack.c.l.b16 %v256
    %v888 = vunpack.c.h.b16 %v256
    %v889 = vunpack.c.l.b16 %v257
    %v890 = vunpack.c.h.b16 %v257
    %v891 = vunpack.c.l.b16 %v258
    %v892 = vunpack.c.h.b16 %v258
    %v893 = vunpack.c.l.b16 %v259
    %v894 = vunpack.c.h.b16 %v259
    %v895 = vunpack.c.l.b16 %v260
    %v896 = vunpack.c.h.b16 %v260
    %v897 = vunpack.c.l.b16 %v261
    %v898 = vunpack.c.h.b16 %v261
    %v899 = vunpack.c.l.b16 %v262
    %v900 = vunpack.c.h.b16 %v262
    %v901 = vunpack.c.l.b16 %v263
    %v902 = vunpack.c.h.b16 %v263
    %v903 = vunpack.c.l.b16 %v264
    %v904 = vunpack.c.h.b16 %v264
    %v905 = vunpack.c.l.b16 %v265
    %v906 = vunpack.c.h.b16 %v265
    %v907 = vunpack.c.l.b16 %v266
    %v908 = vunpack.c.h.b16 %v266
    %v909 = vunpack.c.l.b16 %v267
    %v910 = vunpack.c.h.b16 %v267
    %v911 = vunpack.c.l.b16 %v268
    %v912 = vunpack.c.h.b16 %v268
    %v913 = vunpack.c.l.b16 %v269
    %v914 = vunpack.c.h.b16 %v269
    %v915 = vunpack.c.l.b16 %v270
    %v916 = vunpack.c.h.b16 %v270
    %v917 = vunpack.c.l.b16 %v271
    %v918 = vunpack.c.h.b16 %v271
    %v919 = vunpack.c.l.b16 %v272
    %v920 = vunpack.c.h.b16 %v272
    %v921 = vunpack.c.l.b16 %v273
    %v922 = vunpack.c.h.b16 %v273
    %v923 = vunpack.c.l.b16 %v274
    %v924 = vunpack.c.h.b16 %v274
    %v925 = vunpack.c.l.b16 %v275
    %v926 = vunpack.c.h.b16 %v275
    %v927 = vunpack.c.l.b16 %v276
    %v928 = vunpack.c.h.b16 %v276
    %v929 = vunpack.c.l.b16 %v277
    %v930 = vunpack.c.h.b16 %v277
    %v931 = vunpack.c.l.b16 %v278
    %v932 = vunpack.c.h.b16 %v278
    %v933 = vunpack.c.l.b16 %v279
    %v934 = vunpack.c.h.b16 %v279
    %v935 = vunpack.c.l.b16 %v280
    %v936 = vunpack.c.h.b16 %v280
    %v937 = vunpack.c.l.b16 %v281
    %v938 = vunpack.c.h.b16 %v281
    %v939 = vunpack.c.l.b16 %v282
    %v940 = vunpack.c.h.b16 %v282
    %v941 = vunpack.c.l.b16 %v283
    %v942 = vunpack.c.h.b16 %v283
    %v943 = vunpack.c.l.b16 %v284
    %v944 = vunpack.c.h.b16 %v284
    %v945 = vunpack.c.l.b16 %v285
    %v946 = vunpack.c.h.b16 %v285
    %v947 = vunpack.c.l.b16 %v286
    %v948 = vunpack.c.h.b16 %v286
    %v949 = vunpack.c.l.b16 %v287
    %v950 = vunpack.c.h.b16 %v287
    %v951 = vunpack.c.l.b16 %v288
    %v952 = vunpack.c.h.b16 %v288
    %v953 = vunpack.c.l.b16 %v289
    %v954 = vunpack.c.h.b16 %v289
    %v955 = vunpack.c.l.b16 %v290
    %v956 = vunpack.c.h.b16 %v290
    %v957 = vunpack.c.l.b16 %v291
    %v958 = vunpack.c.h.b16 %v291
    %v959 = vunpack.c.l.b16 %v292
    %v960 = vunpack.c.h.b16 %v292
    %v961 = vunpack.c.l.b16 %v293
    %v962 = vunpack.c.h.b16 %v293
    %v963 = vunpack.c.l.b16 %v294
    %v964 = vunpack.c.h.b16 %v294
    %v965 = vunpack.c.l.b16 %v295
    %v966 = vunpack.c.h.b16 %v295
    %v967 = vunpack.c.l.b16 %v296
    %v968 = vunpack.c.h.b16 %v296
    %v969 = vunpack.c.l.b16 %v297
    %v970 = vunpack.c.h.b16 %v297
    %v971 = vunpack.c.l.b16 %v298
    %v972 = vunpack.c.h.b16 %v298
    %v973 = vunpack.c.l.b16 %v299
    %v974 = vunpack.c.h.b16 %v299
    %v975 = vunpack.c.l.b16 %v300
    %v976 = vunpack.c.h.b16 %v300
    %v977 = vunpack.c.l.b16 %v301
    %v978 = vunpack.c.h.b16 %v301
    %v979 = vunpack.c.l.b16 %v302
    %v980 = vunpack.c.h.b16 %v302
    %v981 = vunpack.c.l.b16 %v303
    %v982 = vunpack.c.h.b16 %v303
    %v983 = vunpack.c.l.b16 %v304
    %v984 = vunpack.c.h.b16 %v304
    %v985 = vunpack.c.l.b16 %v305
    %v986 = vunpack.c.h.b16 %v305
    %v987 = vunpack.c.l.b16 %v306
    %v988 = vunpack.c.h.b16 %v306
    %v989 = vunpack.c.l.b16 %v307
    %v990 = vunpack.c.h.b16 %v307
    %v991 = vunpack.c.l.b16 %v308
    %v992 = vunpack.c.h.b16 %v308
    %v993 = vunpack.c.l.b16 %v309
    %v994 = vunpack.c.h.b16 %v309
    %v995 = vunpack.c.l.b16 %v310
    %v996 = vunpack.c.h.b16 %v310
    %v997 = vunpack.c.l.b16 %v311
    %v998 = vunpack.c.h.b16 %v311
    %v999 = vunpack.c.l.b16 %v312
    %v1000 = vunpack.c.h.b16 %v312
    %v1001 = vunpack.c.l.b16 %v313
    %v1002 = vunpack.c.h.b16 %v313
    %v1003 = vunpack.c.l.b16 %v314
    %v1004 = vunpack.c.h.b16 %v314
    %v1005 = vunpack.c.l.b16 %v315
    %v1006 = vunpack.c.h.b16 %v315
    %v1007 = vunpack.c.l.b16 %v316
    %v1008 = vunpack.c.h.b16 %v316
    %v1009 = vunpack.c.l.b16 %v317
    %v1010 = vunpack.c.h.b16 %v317
    %v1011 = vunpack.c.l.b16 %v318
    %v1012 = vunpack.c.h.b16 %v318
    %v1013 = vunpack.c.l.b16 %v319
    %v1014 = vunpack.c.h.b16 %v319
    %v1015 = vunpack.c.l.b16 %v320
    %v1016 = vunpack.c.h.b16 %v320
    %v1017 = vunpack.c.l.b16 %v321
    %v1018 = vunpack.c.h.b16 %v321
    %v1019 = vunpack.c.l.b16 %v322
    %v1020 = vunpack.c.h.b16 %v322
    %v1021 = vunpack.c.l.b16 %v323
    %v1022 = vunpack.c.h.b16 %v323
    %v1023 = vunpack.c.l.b16 %v324
    %v1024 = vunpack.c.h.b16 %v324
    %v1025 = vunpack.c.l.b16 %v325
    %v1026 = vunpack.c.h.b16 %v325
    %v1027 = vunpack.c.l.b16 %v326
    %v1028 = vunpack.c.h.b16 %v326
    %v1029 = vunpack.c.l.b16 %v327
    %v1030 = vunpack.c.h.b16 %v327
    %v1031 = vunpack.c.l.b16 %v328
    %v1032 = vunpack.c.h.b16 %v328
    %v1033 = vunpack.c.l.b16 %v329
    %v1034 = vunpack.c.h.b16 %v329
    %v1035 = vunpack.c.l.b16 %v330
    %v1036 = vunpack.c.h.b16 %v330
    %v1037 = vunpack.c.l.b16 %v331
    %v1038 = vunpack.c.h.b16 %v331
    %v1039 = vunpack.c.l.b16 %v332
    %v1040 = vunpack.c.h.b16 %v332
    %v1041 = vunpack.c.l.b16 %v333
    %v1042 = vunpack.c.h.b16 %v333
    %v1043 = vunpack.c.l.b16 %v334
    %v1044 = vunpack.c.h.b16 %v334
    %v1045 = vunpack.c.l.b16 %v335
    %v1046 = vunpack.c.h.b16 %v335
    %v1047 = vunpack.c.l.b16 %v336
    %v1048 = vunpack.c.h.b16 %v336
    %v1049 = vunpack.c.l.b16 %v337
    %v1050 = vunpack.c.h.b16 %v337
    %v1051 = vunpack.c.l.b16 %v338
    %v1052 = vunpack.c.h.b16 %v338
    %v1053 = vunpack.c.l.b16 %v339
    %v1054 = vunpack.c.h.b16 %v339
    %v1055 = vunpack.c.l.b16 %v340
    %v1056 = vunpack.c.h.b16 %v340
    %v1057 = vunpack.c.l.b16 %v341
    %v1058 = vunpack.c.h.b16 %v341
    %v1059 = vunpack.c.l.b16 %v342
    %v1060 = vunpack.c.h.b16 %v342
    %v1061 = vunpack.c.l.b16 %v343
    %v1062 = vunpack.c.h.b16 %v343
    %v1063 = vunpack.c.l.b16 %v344
    %v1064 = vunpack.c.h.b16 %v344
    %v1065 = vunpack.c.l.b16 %v345
    %v1066 = vunpack.c.h.b16 %v345
    %v1067 = vunpack.c.l.b16 %v346
    %v1068 = vunpack.c.h.b16 %v346
    %v1069 = vunpack.c.l.b16 %v347
    %v1070 = vunpack.c.h.b16 %v347
    %v1071 = vunpack.c.l.b16 %v348
    %v1072 = vunpack.c.h.b16 %v348
    %v1073 = vunpack.c.l.b16 %v349
    %v1074 = vunpack.c.h.b16 %v349
    %v1075 = vunpack.c.l.b16 %v350
    %v1076 = vunpack.c.h.b16 %v350
    %v1077 = vunpack.c.l.b16 %v351
    %v1078 = vunpack.c.h.b16 %v351
    %v1079 = vunpack.c.l.b16 %v352
    %v1080 = vunpack.c.h.b16 %v352
    %v1081 = vunpack.c.l.b16 %v353
    %v1082 = vunpack.c.h.b16 %v353
    %v1083 = vunpack.c.l.b16 %v354
    %v1084 = vunpack.c.h.b16 %v354
    %v1085 = vunpack.c.l.b16 %v355
    %v1086 = vunpack.c.h.b16 %v355
    %v1087 = vunpack.c.l.b16 %v356
    %v1088 = vunpack.c.h.b16 %v356
    %v1089 = vunpack.c.l.b16 %v357
    %v1090 = vunpack.c.h.b16 %v357
    %v1091 = vunpack.c.l.b16 %v358
    %v1092 = vunpack.c.h.b16 %v358
    %v1093 = vunpack.c.l.b16 %v359
    %v1094 = vunpack.c.h.b16 %v359
    %v1095 = vunpack.c.l.b16 %v360
    %v1096 = vunpack.c.h.b16 %v360
    %v1097 = vunpack.c.l.b16 %v361
    %v1098 = vunpack.c.h.b16 %v361
    %v1099 = vunpack.c.l.b16 %v362
    %v1100 = vunpack.c.h.b16 %v362
    %v1101 = vunpack.c.l.b16 %v363
    %v1102 = vunpack.c.h.b16 %v363
    %v1103 = vunpack.c.l.b16 %v364
    %v1104 = vunpack.c.h.b16 %v364
    %v1105 = vunpack.c.l.b16 %v365
    %v1106 = vunpack.c.h.b16 %v365
    %v1107 = vunpack.c.l.b16 %v366
    %v1108 = vunpack.c.h.b16 %v366
    %v1109 = vunpack.c.l.b16 %v367
    %v1110 = vunpack.c.h.b16 %v367
    %v1111 = vunpack.c.l.b16 %v368
    %v1112 = vunpack.c.h.b16 %v368
    %v1113 = vunpack.c.l.b16 %v369
    %v1114 = vunpack.c.h.b16 %v369
    %v1115 = vunpack.c.l.b16 %v370
    %v1116 = vunpack.c.h.b16 %v370
    %v1117 = vunpack.c.l.b16 %v371
    %v1118 = vunpack.c.h.b16 %v371
    %v1119 = vunpack.c.l.b16 %v372
    %v1120 = vunpack.c.h.b16 %v372
    %v1121 = vunpack.c.l.b16 %v373
    %v1122 = vunpack.c.h.b16 %v373
    %v1123 = vunpack.c.l.b16 %v374
    %v1124 = vunpack.c.h.b16 %v374
    %v1125 = vunpack.c.l.b16 %v375
    %v1126 = vunpack.c.h.b16 %v375
    %v1127 = vunpack.c.l.b16 %v376
    %v1128 = vunpack.c.h.b16 %v376
    %v1129 = vunpack.c.l.b16 %v377
    %v1130 = vunpack.c.h.b16 %v377
    %v1131 = vunpack.c.l.b16 %v378
    %v1132 = vunpack.c.h.b16 %v378
    %v1133 = vunpack.c.l.b16 %v379
    %v1134 = vunpack.c.h.b16 %v379
    %v1135 = vunpack.c.l.b16 %v380
    %v1136 = vunpack.c.h.b16 %v380
    %v1137 = vunpack.c.l.b16 %v381
    %v1138 = vunpack.c.h.b16 %v381
    %v1139 = vunpack.c.l.b16 %v382
    %v1140 = vunpack.c.h.b16 %v382
    %v1141 = vunpack.c.l.b16 %v383
    %v1142 = vunpack.c.h.b16 %v383
    %v1143 = vunpack.c.l.b16 %v384
    %v1144 = vunpack.c.h.b16 %v384
    %v1145 = vunpack.c.l.b16 %v385
    %v1146 = vunpack.c.h.b16 %v385
    %v1147 = vunpack.c.l.b16 %v386
    %v1148 = vunpack.c.h.b16 %v386
    %v1149 = vunpack.c.l.b16 %v387
    %v1150 = vunpack.c.h.b16 %v387
    %v1151 = vunpack.c.l.b16 %v388
    %v1152 = vunpack.c.h.b16 %v388
    %v1153 = vunpack.c.l.b16 %v389
    %v1154 = vunpack.c.h.b16 %v389
    %v1155 = vunpack.c.l.b16 %v390
    %v1156 = vunpack.c.h.b16 %v390
    %v1157 = vunpack.c.l.b16 %v391
    %v1158 = vunpack.c.h.b16 %v391
    %v1159 = vunpack.c.l.b16 %v392
    %v1160 = vunpack.c.h.b16 %v392
    %v1161 = vpack.c.b16 %v657, %v649
    %v1162 = vpack.c.b16 %v658, %v650
    %v1163 = vpack.c.b16 %v659, %v651
    %v1164 = vpack.c.b16 %v660, %v652
    %v1165 = vpack.c.b16 %v661, %v653
    %v1166 = vpack.c.b16 %v662, %v654
    %v1167 = vpack.c.b16 %v663, %v655
    %v1168 = vpack.c.b16 %v664, %v656
    %v1169 = vpack.c.b16 %v673, %v665
    %v1170 = vpack.c.b16 %v674, %v666
    %v1171 = vpack.c.b16 %v675, %v667
    %v1172 = vpack.c.b16 %v676, %v668
    %v1173 = vpack.c.b16 %v677, %v669
    %v1174 = vpack.c.b16 %v678, %v670
    %v1175 = vpack.c.b16 %v679, %v671
    %v1176 = vpack.c.b16 %v680, %v672
    %v1177 = vpack.c.b16 %v689, %v681
    %v1178 = vpack.c.b16 %v690, %v682
    %v1179 = vpack.c.b16 %v691, %v683
    %v1180 = vpack.c.b16 %v692, %v684
    %v1181 = vpack.c.b16 %v693, %v685
    %v1182 = vpack.c.b16 %v694, %v686
    %v1183 = vpack.c.b16 %v695, %v687
    %v1184 = vpack.c.b16 %v696, %v688
    %v1185 = vpack.c.b16 %v705, %v697
    %v1186 = vpack.c.b16 %v706, %v698
    %v1187 = vpack.c.b16 %v707, %v699
    %v1188 = vpack.c.b16 %v708, %v700
    %v1189 = vpack.c.b16 %v709, %v701
    %v1190 = vpack.c.b16 %v710, %v702
    %v1191 = vpack.c.b16 %v711, %v703
    %v1192 = vpack.c.b16 %v712, %v704
    %v1193 = vpack.c.b16 %v721, %v713
    %v1194 = vpack.c.b16 %v722, %v714
    %v1195 = vpack.c.b16 %v723, %v715
    %v1196 = vpack.c.b16 %v724, %v716
    %v1197 = vpack.c.b16 %v725, %v717
    %v1198 = vpack.c.b16 %v726, %v718
    %v1199 = vpack.c.b16 %v727, %v719
    %v1200 = vpack.c.b16 %v728, %v720
    %v1201 = vpack.c.b16 %v737, %v729
    %v1202 = vpack.c.b16 %v738, %v730
    %v1203 = vpack.c.b16 %v739, %v731
    %v1204 = vpack.c.b16 %v740, %v732
    %v1205 = vpack.c.b16 %v741, %v733
    %v1206 = vpack.c.b16 %v742, %v734
    %v1207 = vpack.c.b16 %v743, %v735
    %v1208 = vpack.c.b16 %v744, %v736
    %v1209 = vpack.c.b16 %v753, %v745
    %v1210 = vpack.c.b16 %v754, %v746
    %v1211 = vpack.c.b16 %v755, %v747
    %v1212 = vpack.c.b16 %v756, %v748
    %v1213 = vpack.c.b16 %v757, %v749
    %v1214 = vpack.c.b16 %v758, %v750
    %v1215 = vpack.c.b16 %v759, %v751
    %v1216 = vpack.c.b16 %v760, %v752
    %v1217 = vpack.c.b16 %v769, %v761
    %v1218 = vpack.c.b16 %v770, %v762
    %v1219 = vpack.c.b16 %v771, %v763
    %v1220 = vpack.c.b16 %v772, %v764
    %v1221 = vpack.c.b16 %v773, %v765
    %v1222 = vpack.c.b16 %v774, %v766
    %v1223 = vpack.c.b16 %v775, %v767
    %v1224 = vpack.c.b16 %v776, %v768
    %v1225 = vpack.c.b16 %v785, %v777
    %v1226 = vpack.c.b16 %v786, %v778
    %v1227 = vpack.c.b16 %v787, %v779
    %v1228 = vpack.c.b16 %v788, %v780
    %v1229 = vpack.c.b16 %v789, %v781
    %v1230 = vpack.c.b16 %v790, %v782
    %v1231 = vpack.c.b16 %v791, %v783
    %v1232 = vpack.c.b16 %v792, %v784
    %v1233 = vpack.c.b16 %v801, %v793
    %v1234 = vpack.c.b16 %v802, %v794
    %v1235 = vpack.c.b16 %v803, %v795
    %v1236 = vpack.c.b16 %v804, %v796
    %v1237 = vpack.c.b16 %v805, %v797
    %v1238 = vpack.c.b16 %v806, %v798
    %v1239 = vpack.c.b16 %v807, %v799
    %v1240 = vpack.c.b16 %v808, %v800
    %v1241 = vpack.c.b16 %v817, %v809
    %v1242 = vpack.c.b16 %v818, %v810
    %v1243 = vpack.c.b16 %v819, %v811
    %v1244 = vpack.c.b16 %v820, %v812
    %v1245 = vpack.c.b16 %v821, %v813
    %v1246 = vpack.c.b16 %v822, %v814
    %v1247 = vpack.c.b16 %v823, %v815
    %v1248 = vpack.c.b16 %v824, %v816
    %v1249 = vpack.c.b16 %v833, %v825
    %v1250 = vpack.c.b16 %v834, %v826
    %v1251 = vpack.c.b16 %v835, %v827
    %v1252 = vpack.c.b16 %v836, %v828
    %v1253 = vpack.c.b16 %v837, %v829
    %v1254 = vpack.c.b16 %v838, %v830
    %v1255 = vpack.c.b16 %v839, %v831
    %v1256 = vpack.c.b16 %v840, %v832
    %v1257 = vpack.c.b16 %v849, %v841
    %v1258 = vpack.c.b16 %v850, %v842
    %v1259 = vpack.c.b16 %v851, %v843
    %v1260 = vpack.c.b16 %v852, %v844
    %v1261 = vpack.c.b16 %v853, %v845
    %v1262 = vpack.c.b16 %v854, %v846
    %v1263 = vpack.c.b16 %v855, %v847
    %v1264 = vpack.c.b16 %v856, %v848
    %v1265 = vpack.c.b16 %v865, %v857
    %v1266 = vpack.c.b16 %v866, %v858
    %v1267 = vpack.c.b16 %v867, %v859
    %v1268 = vpack.c.b16 %v868, %v860
    %v1269 = vpack.c.b16 %v869, %v861
    %v1270 = vpack.c.b16 %v870, %v862
    %v1271 = vpack.c.b16 %v871, %v863
    %v1272 = vpack.c.b16 %v872, %v864
    %v1273 = vpack.c.b16 %v881, %v873
    %v1274 = vpack.c.b16 %v882, %v874
    %v1275 = vpack.c.b16 %v883, %v875
    %v1276 = vpack.c.b16 %v884, %v876
    %v1277 = vpack.c.b16 %v885, %v877
    %v1278 = vpack.c.b16 %v886, %v878
    %v1279 = vpack.c.b16 %v887, %v879
    %v1280 = vpack.c.b16 %v888, %v880
    %v1281 = vpack.c.b16 %v897, %v889
    %v1282 = vpack.c.b16 %v898, %v890
    %v1283 = vpack.c.b16 %v899, %v891
    %v1284 = vpack.c.b16 %v900, %v892
    %v1285 = vpack.c.b16 %v901, %v893
    %v1286 = vpack.c.b16 %v902, %v894
    %v1287 = vpack.c.b16 %v903, %v895
    %v1288 = vpack.c.b16 %v904, %v896
    %v1289 = vpack.c.b16 %v913, %v905
    %v1290 = vpack.c.b16 %v914, %v906
    %v1291 = vpack.c.b16 %v915, %v907
    %v1292 = vpack.c.b16 %v916, %v908
    %v1293 = vpack.c.b16 %v917, %v909
    %v1294 = vpack.c.b16 %v918, %v910
    %v1295 = vpack.c.b16 %v919, %v911
    %v1296 = vpack.c.b16 %v920, %v912
    %v1297 = vpack.c.b16 %v929, %v921
    %v1298 = vpack.c.b16 %v930, %v922
    %v1299 = vpack.c.b16 %v931, %v923
    %v1300 = vpack.c.b16 %v932, %v924
    %v1301 = vpack.c.b16 %v933, %v925
    %v1302 = vpack.c.b16 %v934, %v926
    %v1303 = vpack.c.b16 %v935, %v927
    %v1304 = vpack.c.b16 %v936, %v928
    %v1305 = vpack.c.b16 %v945, %v937
    %v1306 = vpack.c.b16 %v946, %v938
    %v1307 = vpack.c.b16 %v947, %v939
    %v1308 = vpack.c.b16 %v948, %v940
    %v1309 = vpack.c.b16 %v949, %v941
    %v1310 = vpack.c.b16 %v950, %v942
    %v1311 = vpack.c.b16 %v951, %v943
    %v1312 = vpack.c.b16 %v952, %v944
    %v1313 = vpack.c.b16 %v961, %v953
    %v1314 = vpack.c.b16 %v962, %v954
    %v1315 = vpack.c.b16 %v963, %v955
    %v1316 = vpack.c.b16 %v964, %v956
    %v1317 = vpack.c.b16 %v965, %v957
    %v1318 = vpack.c.b16 %v966, %v958
    %v1319 = vpack.c.b16 %v967, %v959
    %v1320 = vpack.c.b16 %v968, %v960
    %v1321 = vpack.c.b16 %v977, %v969
    %v1322 = vpack.c.b16 %v978, %v970
    %v1323 = vpack.c.b16 %v979, %v971
    %v1324 = vpack.c.b16 %v980, %v972
    %v1325 = vpack.c.b16 %v981, %v973
    %v1326 = vpack.c.b16 %v982, %v974
    %v1327 = vpack.c.b16 %v983, %v975
    %v1328 = vpack.c.b16 %v984, %v976
    %v1329 = vpack.c.b16 %v993, %v985
    %v1330 = vpack.c.b16 %v994, %v986
    %v1331 = vpack.c.b16 %v995, %v987
    %v1332 = vpack.c.b16 %v996, %v988
    %v1333 = vpack.c.b16 %v997, %v989
    %v1334 = vpack.c.b16 %v998, %v990
    %v1335 = vpack.c.b16 %v999, %v991
    %v1336 = vpack.c.b16 %v1000, %v992
    %v1337 = vpack.c.b16 %v1009, %v1001
    %v1338 = vpack.c.b16 %v1010, %v1002
    %v1339 = vpack.c.b16 %v1011, %v1003
    %v1340 = vpack.c.b16 %v1012, %v1004
    %v1341 = vpack.c.b16 %v1013, %v1005
    %v1342 = vpack.c.b16 %v1014, %v1006
    %v1343 = vpack.c.b16 %v1015, %v1007
    %v1344 = vpack.c.b16 %v1016, %v1008
    %v1345 = vpack.c.b16 %v1025, %v1017
    %v1346 = vpack.c.b16 %v1026, %v1018
    %v1347 = vpack.c.b16 %v1027, %v1019
    %v1348 = vpack.c.b16 %v1028, %v1020
    %v1349 = vpack.c.b16 %v1029, %v1021
    %v1350 = vpack.c.b16 %v1030, %v1022
    %v1351 = vpack.c.b16 %v1031, %v1023
    %v1352 = vpack.c.b16 %v1032, %v1024
    %v1353 = vpack.c.b16 %v1041, %v1033
    %v1354 = vpack.c.b16 %v1042, %v1034
    %v1355 = vpack.c.b16 %v1043, %v1035
    %v1356 = vpack.c.b16 %v1044, %v1036
    %v1357 = vpack.c.b16 %v1045, %v1037
    %v1358 = vpack.c.b16 %v1046, %v1038
    %v1359 = vpack.c.b16 %v1047, %v1039
    %v1360 = vpack.c.b16 %v1048, %v1040
    %v1361 = vpack.c.b16 %v1057, %v1049
    %v1362 = vpack.c.b16 %v1058, %v1050
    %v1363 = vpack.c.b16 %v1059, %v1051
    %v1364 = vpack.c.b16 %v1060, %v1052
    %v1365 = vpack.c.b16 %v1061, %v1053
    %v1366 = vpack.c.b16 %v1062, %v1054
    %v1367 = vpack.c.b16 %v1063, %v1055
    %v1368 = vpack.c.b16 %v1064, %v1056
    %v1369 = vpack.c.b16 %v1073, %v1065
    %v1370 = vpack.c.b16 %v1074, %v1066
    %v1371 = vpack.c.b16 %v1075, %v1067
    %v1372 = vpack.c.b16 %v1076, %v1068
    %v1373 = vpack.c.b16 %v1077, %v1069
    %v1374 = vpack.c.b16 %v1078, %v1070
    %v1375 = vpack.c.b16 %v1079, %v1071
    %v1376 = vpack.c.b16 %v1080, %v1072
    %v1377 = vpack.c.b16 %v1089, %v1081
    %v1378 = vpack.c.b16 %v1090, %v1082
    %v1379 = vpack.c.b16 %v1091, %v1083
    %v1380 = vpack.c.b16 %v1092, %v1084
    %v1381 = vpack.c.b16 %v1093, %v1085
    %v1382 = vpack.c.b16 %v1094, %v1086
    %v1383 = vpack.c.b16 %v1095, %v1087
    %v1384 = vpack.c.b16 %v1096, %v1088
    %v1385 = vpack.c.b16 %v1105, %v1097
    %v1386 = vpack.c.b16 %v1106, %v1098
    %v1387 = vpack.c.b16 %v1107, %v1099
    %v1388 = vpack.c.b16 %v1108, %v1100
    %v1389 = vpack.c.b16 %v1109, %v1101
    %v1390 = vpack.c.b16 %v1110, %v1102
    %v1391 = vpack.c.b16 %v1111, %v1103
    %v1392 = vpack.c.b16 %v1112, %v1104
    %v1393 = vpack.c.b16 %v1121, %v1113
    %v1394 = vpack.c.b16 %v1122, %v1114
    %v1395 = vpack.c.b16 %v1123, %v1115
    %v1396 = vpack.c.b16 %v1124, %v1116
    %v1397 = vpack.c.b16 %v1125, %v1117
    %v1398 = vpack.c.b16 %v1126, %v1118
    %v1399 = vpack.c.b16 %v1127, %v1119
    %v1400 = vpack.c.b16 %v1128, %v1120
    %v1401 = vpack.c.b16 %v1137, %v1129
    %v1402 = vpack.c.b16 %v1138, %v1130
    %v1403 = vpack.c.b16 %v1139, %v1131
    %v1404 = vpack.c.b16 %v1140, %v1132
    %v1405 = vpack.c.b16 %v1141, %v1133
    %v1406 = vpack.c.b16 %v1142, %v1134
    %v1407 = vpack.c.b16 %v1143, %v1135
    %v1408 = vpack.c.b16 %v1144, %v1136
    %v1409 = vpack.c.b16 %v1153, %v1145
    %v1410 = vpack.c.b16 %v1154, %v1146
    %v1411 = vpack.c.b16 %v1155, %v1147
    %v1412 = vpack.c.b16 %v1156, %v1148
    %v1413 = vpack.c.b16 %v1157, %v1149
    %v1414 = vpack.c.b16 %v1158, %v1150
    %v1415 = vpack.c.b16 %v1159, %v1151
    %v1416 = vpack.c.b16 %v1160, %v1152
    %1673 = vmatprep.subr.bf16.mxu0 %v1162
    %1674 = vmatpush1.bf16.msra.mxu0 %v1161
    %1675 = vmatprep.subr.bf16.mxu0 %v1170
    %1676 = vmatpush1.bf16.msra.mxu0 %v1169
    %1677 = vmatprep.subr.bf16.mxu0 %v1178
    %1678 = vmatpush1.bf16.msra.mxu0 %v1177
    %1679 = vmatprep.subr.bf16.mxu0 %v1186
    %1680 = vmatpush1.bf16.msra.mxu0 %v1185
    %1681 = vmatprep.subr.bf16.mxu0 %v1194
    %1682 = vmatpush1.bf16.msra.mxu0 %v1193
    %1683 = vmatprep.subr.bf16.mxu0 %v1202
    %1684 = vmatpush1.bf16.msra.mxu0 %v1201
    %1685 = vmatprep.subr.bf16.mxu0 %v1210
    %1686 = vmatpush1.bf16.msra.mxu0 %v1209
    %1687 = vmatprep.subr.bf16.mxu0 %v1218
    %1688 = vmatpush1.bf16.msra.mxu0 %v1217
    %1689 = vmatprep.subr.bf16.mxu0 %v1226
    %1690 = vmatpush1.bf16.msra.mxu0 %v1225
    %1691 = vmatprep.subr.bf16.mxu0 %v1234
    %1692 = vmatpush1.bf16.msra.mxu0 %v1233
    %1693 = vmatprep.subr.bf16.mxu0 %v1242
    %1694 = vmatpush1.bf16.msra.mxu0 %v1241
    %1695 = vmatprep.subr.bf16.mxu0 %v1250
    %1696 = vmatpush1.bf16.msra.mxu0 %v1249
    %1697 = vmatprep.subr.bf16.mxu0 %v1258
    %1698 = vmatpush1.bf16.msra.mxu0 %v1257
    %1699 = vmatprep.subr.bf16.mxu0 %v1266
    %1700 = vmatpush1.bf16.msra.mxu0 %v1265
    %1701 = vmatprep.subr.bf16.mxu0 %v1274
    %1702 = vmatpush1.bf16.msra.mxu0 %v1273
    %1703 = vmatprep.subr.bf16.mxu0 %v1282
    %1704 = vmatpush1.bf16.msra.mxu0 %v1281
    %1705 = vmatprep.mubr.bf16.mxu0 %v118
    %1706 = vmatmul.mubr.bf16.gmra.mrb[0].mxu0 %v117
    %v1707 = vpop.f32.mrb[0].mxu0
    %v1708 = vadd.f32 0.0, %v1707
    %v1709 = vpop.f32.mrb[0].mxu0
    %v1710 = vadd.f32 0.0, %v1709
    %v1711 = vpop.f32.mrb[0].mxu0
    %v1712 = vadd.f32 0.0, %v1711
    %v1713 = vpop.f32.mrb[0].mxu0
    %v1714 = vadd.f32 0.0, %v1713
    %1715 = vdwg.mxu0
    %1716 = vmatprep.subr.bf16.mxu0 %v1290
    %1717 = vmatpush1.bf16.msra.mxu0 %v1289
    %1718 = vmatprep.subr.bf16.mxu0 %v1298
    %1719 = vmatpush1.bf16.msra.mxu0 %v1297
    %1720 = vmatprep.subr.bf16.mxu0 %v1306
    %1721 = vmatpush1.bf16.msra.mxu0 %v1305
    %1722 = vmatprep.subr.bf16.mxu0 %v1314
    %1723 = vmatpush1.bf16.msra.mxu0 %v1313
    %1724 = vmatprep.subr.bf16.mxu0 %v1322
    %1725 = vmatpush1.bf16.msra.mxu0 %v1321
    %1726 = vmatprep.subr.bf16.mxu0 %v1330
    %1727 = vmatpush1.bf16.msra.mxu0 %v1329
    %1728 = vmatprep.subr.bf16.mxu0 %v1338
    %1729 = vmatpush1.bf16.msra.mxu0 %v1337
    %1730 = vmatprep.subr.bf16.mxu0 %v1346
    %1731 = vmatpush1.bf16.msra.mxu0 %v1345
    %1732 = vmatprep.subr.bf16.mxu0 %v1354
    %1733 = vmatpush1.bf16.msra.mxu0 %v1353
    %1734 = vmatprep.subr.bf16.mxu0 %v1362
    %1735 = vmatpush1.bf16.msra.mxu0 %v1361
    %1736 = vmatprep.subr.bf16.mxu0 %v1370
    %1737 = vmatpush1.bf16.msra.mxu0 %v1369
    %1738 = vmatprep.subr.bf16.mxu0 %v1378
    %1739 = vmatpush1.bf16.msra.mxu0 %v1377
    %1740 = vmatprep.subr.bf16.mxu0 %v1386
    %1741 = vmatpush1.bf16.msra.mxu0 %v1385
    %1742 = vmatprep.subr.bf16.mxu0 %v1394
    %1743 = vmatpush1.bf16.msra.mxu0 %v1393
    %1744 = vmatprep.subr.bf16.mxu0 %v1402
    %1745 = vmatpush1.bf16.msra.mxu0 %v1401
    %1746 = vmatprep.subr.bf16.mxu0 %v1410
    %1747 = vmatpush1.bf16.msra.mxu0 %v1409
    %1748 = vmatprep.mubr.bf16.mxu0 %v120
    %1749 = vmatmul.mubr.bf16.gmra.mrb[0].mxu0 %v119
    %v1750 = vpop.f32.mrb[0].mxu0
    %v1751 = vadd.f32 %v1708, %v1750
    %v1752 = vpop.f32.mrb[0].mxu0
    %v1753 = vadd.f32 %v1710, %v1752
    %v1754 = vpop.f32.mrb[0].mxu0
    %v1755 = vadd.f32 %v1712, %v1754
    %v1756 = vpop.f32.mrb[0].mxu0
    %v1757 = vadd.f32 %v1714, %v1756
    %1758 = vdwg.mxu0
    %1759 = vmatprep.subr.bf16.mxu0 %v1164
    %1760 = vmatpush1.bf16.msra.mxu0 %v1163
    %1761 = vmatprep.subr.bf16.mxu0 %v1172
    %1762 = vmatpush1.bf16.msra.mxu0 %v1171
    %1763 = vmatprep.subr.bf16.mxu0 %v1180
    %1764 = vmatpush1.bf16.msra.mxu0 %v1179
    %1765 = vmatprep.subr.bf16.mxu0 %v1188
    %1766 = vmatpush1.bf16.msra.mxu0 %v1187
    %1767 = vmatprep.subr.bf16.mxu0 %v1196
    %1768 = vmatpush1.bf16.msra.mxu0 %v1195
    %1769 = vmatprep.subr.bf16.mxu0 %v1204
    %1770 = vmatpush1.bf16.msra.mxu0 %v1203
    %1771 = vmatprep.subr.bf16.mxu0 %v1212
    %1772 = vmatpush1.bf16.msra.mxu0 %v1211
    %1773 = vmatprep.subr.bf16.mxu0 %v1220
    %1774 = vmatpush1.bf16.msra.mxu0 %v1219
    %1775 = vmatprep.subr.bf16.mxu0 %v1228
    %1776 = vmatpush1.bf16.msra.mxu0 %v1227
    %1777 = vmatprep.subr.bf16.mxu0 %v1236
    %1778 = vmatpush1.bf16.msra.mxu0 %v1235
    %1779 = vmatprep.subr.bf16.mxu0 %v1244
    %1780 = vmatpush1.bf16.msra.mxu0 %v1243
    %1781 = vmatprep.subr.bf16.mxu0 %v1252
    %1782 = vmatpush1.bf16.msra.mxu0 %v1251
    %1783 = vmatprep.subr.bf16.mxu0 %v1260
    %1784 = vmatpush1.bf16.msra.mxu0 %v1259
    %1785 = vmatprep.subr.bf16.mxu0 %v1268
    %1786 = vmatpush1.bf16.msra.mxu0 %v1267
    %1787 = vmatprep.subr.bf16.mxu0 %v1276
    %1788 = vmatpush1.bf16.msra.mxu0 %v1275
    %1789 = vmatprep.subr.bf16.mxu0 %v1284
    %1790 = vmatpush1.bf16.msra.mxu0 %v1283
    %1791 = vmatprep.mubr.bf16.mxu0 %v118
    %1792 = vmatmul.mubr.bf16.gmra.mrb[0].mxu0 %v117
    %v1793 = vpop.f32.mrb[0].mxu0
    %v1794 = vadd.f32 0.0, %v1793
    %v1795 = vpop.f32.mrb[0].mxu0
    %v1796 = vadd.f32 0.0, %v1795
    %v1797 = vpop.f32.mrb[0].mxu0
    %v1798 = vadd.f32 0.0, %v1797
    %v1799 = vpop.f32.mrb[0].mxu0
    %v1800 = vadd.f32 0.0, %v1799
    %1801 = vdwg.mxu0
    %1802 = vmatprep.subr.bf16.mxu0 %v1292
    %1803 = vmatpush1.bf16.msra.mxu0 %v1291
    %1804 = vmatprep.subr.bf16.mxu0 %v1300
    %1805 = vmatpush1.bf16.msra.mxu0 %v1299
    %1806 = vmatprep.subr.bf16.mxu0 %v1308
    %1807 = vmatpush1.bf16.msra.mxu0 %v1307
    %1808 = vmatprep.subr.bf16.mxu0 %v1316
    %1809 = vmatpush1.bf16.msra.mxu0 %v1315
    %1810 = vmatprep.subr.bf16.mxu0 %v1324
    %1811 = vmatpush1.bf16.msra.mxu0 %v1323
    %1812 = vmatprep.subr.bf16.mxu0 %v1332
    %1813 = vmatpush1.bf16.msra.mxu0 %v1331
    %1814 = vmatprep.subr.bf16.mxu0 %v1340
    %1815 = vmatpush1.bf16.msra.mxu0 %v1339
    %1816 = vmatprep.subr.bf16.mxu0 %v1348
    %1817 = vmatpush1.bf16.msra.mxu0 %v1347
    %1818 = vmatprep.subr.bf16.mxu0 %v1356
    %1819 = vmatpush1.bf16.msra.mxu0 %v1355
    %1820 = vmatprep.subr.bf16.mxu0 %v1364
    %1821 = vmatpush1.bf16.msra.mxu0 %v1363
    %1822 = vmatprep.subr.bf16.mxu0 %v1372
    %1823 = vmatpush1.bf16.msra.mxu0 %v1371
    %1824 = vmatprep.subr.bf16.mxu0 %v1380
    %1825 = vmatpush1.bf16.msra.mxu0 %v1379
    %1826 = vmatprep.subr.bf16.mxu0 %v1388
    %1827 = vmatpush1.bf16.msra.mxu0 %v1387
    %1828 = vmatprep.subr.bf16.mxu0 %v1396
    %1829 = vmatpush1.bf16.msra.mxu0 %v1395
    %1830 = vmatprep.subr.bf16.mxu0 %v1404
    %1831 = vmatpush1.bf16.msra.mxu0 %v1403
    %1832 = vmatprep.subr.bf16.mxu0 %v1412
    %1833 = vmatpush1.bf16.msra.mxu0 %v1411
    %1834 = vmatprep.mubr.bf16.mxu0 %v120
    %1835 = vmatmul.mubr.bf16.gmra.mrb[0].mxu0 %v119
    %v1836 = vpop.f32.mrb[0].mxu0
    %v1837 = vadd.f32 %v1794, %v1836
    %v1838 = vpop.f32.mrb[0].mxu0
    %v1839 = vadd.f32 %v1796, %v1838
    %v1840 = vpop.f32.mrb[0].mxu0
    %v1841 = vadd.f32 %v1798, %v1840
    %v1842 = vpop.f32.mrb[0].mxu0
    %v1843 = vadd.f32 %v1800, %v1842
    %1844 = vdwg.mxu0
    %1845 = vmatprep.subr.bf16.mxu0 %v1166
    %1846 = vmatpush1.bf16.msra.mxu0 %v1165
    %1847 = vmatprep.subr.bf16.mxu0 %v1174
    %1848 = vmatpush1.bf16.msra.mxu0 %v1173
    %1849 = vmatprep.subr.bf16.mxu0 %v1182
    %1850 = vmatpush1.bf16.msra.mxu0 %v1181
    %1851 = vmatprep.subr.bf16.mxu0 %v1190
    %1852 = vmatpush1.bf16.msra.mxu0 %v1189
    %1853 = vmatprep.subr.bf16.mxu0 %v1198
    %1854 = vmatpush1.bf16.msra.mxu0 %v1197
    %1855 = vmatprep.subr.bf16.mxu0 %v1206
    %1856 = vmatpush1.bf16.msra.mxu0 %v1205
    %1857 = vmatprep.subr.bf16.mxu0 %v1214
    %1858 = vmatpush1.bf16.msra.mxu0 %v1213
    %1859 = vmatprep.subr.bf16.mxu0 %v1222
    %1860 = vmatpush1.bf16.msra.mxu0 %v1221
    %1861 = vmatprep.subr.bf16.mxu0 %v1230
    %1862 = vmatpush1.bf16.msra.mxu0 %v1229
    %1863 = vmatprep.subr.bf16.mxu0 %v1238
    %1864 = vmatpush1.bf16.msra.mxu0 %v1237
    %1865 = vmatprep.subr.bf16.mxu0 %v1246
    %1866 = vmatpush1.bf16.msra.mxu0 %v1245
    %1867 = vmatprep.subr.bf16.mxu0 %v1254
    %1868 = vmatpush1.bf16.msra.mxu0 %v1253
    %1869 = vmatprep.subr.bf16.mxu0 %v1262
    %1870 = vmatpush1.bf16.msra.mxu0 %v1261
    %1871 = vmatprep.subr.bf16.mxu0 %v1270
    %1872 = vmatpush1.bf16.msra.mxu0 %v1269
    %1873 = vmatprep.subr.bf16.mxu0 %v1278
    %1874 = vmatpush1.bf16.msra.mxu0 %v1277
    %1875 = vmatprep.subr.bf16.mxu0 %v1286
    %1876 = vmatpush1.bf16.msra.mxu0 %v1285
    %1877 = vmatprep.mubr.bf16.mxu0 %v118
    %1878 = vmatmul.mubr.bf16.gmra.mrb[0].mxu0 %v117
    %v1879 = vpop.f32.mrb[0].mxu0
    %v1880 = vadd.f32 0.0, %v1879
    %v1881 = vpop.f32.mrb[0].mxu0
    %v1882 = vadd.f32 0.0, %v1881
    %v1883 = vpop.f32.mrb[0].mxu0
    %v1884 = vadd.f32 0.0, %v1883
    %v1885 = vpop.f32.mrb[0].mxu0
    %v1886 = vadd.f32 0.0, %v1885
    %1887 = vdwg.mxu0
    %1888 = vmatprep.subr.bf16.mxu0 %v1294
    %1889 = vmatpush1.bf16.msra.mxu0 %v1293
    %1890 = vmatprep.subr.bf16.mxu0 %v1302
    %1891 = vmatpush1.bf16.msra.mxu0 %v1301
    %1892 = vmatprep.subr.bf16.mxu0 %v1310
    %1893 = vmatpush1.bf16.msra.mxu0 %v1309
    %1894 = vmatprep.subr.bf16.mxu0 %v1318
    %1895 = vmatpush1.bf16.msra.mxu0 %v1317
    %1896 = vmatprep.subr.bf16.mxu0 %v1326
    %1897 = vmatpush1.bf16.msra.mxu0 %v1325
    %1898 = vmatprep.subr.bf16.mxu0 %v1334
    %1899 = vmatpush1.bf16.msra.mxu0 %v1333
    %1900 = vmatprep.subr.bf16.mxu0 %v1342
    %1901 = vmatpush1.bf16.msra.mxu0 %v1341
    %1902 = vmatprep.subr.bf16.mxu0 %v1350
    %1903 = vmatpush1.bf16.msra.mxu0 %v1349
    %1904 = vmatprep.subr.bf16.mxu0 %v1358
    %1905 = vmatpush1.bf16.msra.mxu0 %v1357
    %1906 = vmatprep.subr.bf16.mxu0 %v1366
    %1907 = vmatpush1.bf16.msra.mxu0 %v1365
    %1908 = vmatprep.subr.bf16.mxu0 %v1374
    %1909 = vmatpush1.bf16.msra.mxu0 %v1373
    %1910 = vmatprep.subr.bf16.mxu0 %v1382
    %1911 = vmatpush1.bf16.msra.mxu0 %v1381
    %1912 = vmatprep.subr.bf16.mxu0 %v1390
    %1913 = vmatpush1.bf16.msra.mxu0 %v1389
    %1914 = vmatprep.subr.bf16.mxu0 %v1398
    %1915 = vmatpush1.bf16.msra.mxu0 %v1397
    %1916 = vmatprep.subr.bf16.mxu0 %v1406
    %1917 = vmatpush1.bf16.msra.mxu0 %v1405
    %1918 = vmatprep.subr.bf16.mxu0 %v1414
    %1919 = vmatpush1.bf16.msra.mxu0 %v1413
    %1920 = vmatprep.mubr.bf16.mxu0 %v120
    %1921 = vmatmul.mubr.bf16.gmra.mrb[0].mxu0 %v119
    %v1922 = vpop.f32.mrb[0].mxu0
    %v1923 = vadd.f32 %v1880, %v1922
    %v1924 = vpop.f32.mrb[0].mxu0
    %v1925 = vadd.f32 %v1882, %v1924
    %v1926 = vpop.f32.mrb[0].mxu0
    %v1927 = vadd.f32 %v1884, %v1926
    %v1928 = vpop.f32.mrb[0].mxu0
    %v1929 = vadd.f32 %v1886, %v1928
    %1930 = vdwg.mxu0
    %1931 = vmatprep.subr.bf16.mxu0 %v1168
    %1932 = vmatpush1.bf16.msra.mxu0 %v1167
    %1933 = vmatprep.subr.bf16.mxu0 %v1176
    %1934 = vmatpush1.bf16.msra.mxu0 %v1175
    %1935 = vmatprep.subr.bf16.mxu0 %v1184
    %1936 = vmatpush1.bf16.msra.mxu0 %v1183
    %1937 = vmatprep.subr.bf16.mxu0 %v1192
    %1938 = vmatpush1.bf16.msra.mxu0 %v1191
    %1939 = vmatprep.subr.bf16.mxu0 %v1200
    %1940 = vmatpush1.bf16.msra.mxu0 %v1199
    %1941 = vmatprep.subr.bf16.mxu0 %v1208
    %1942 = vmatpush1.bf16.msra.mxu0 %v1207
    %1943 = vmatprep.subr.bf16.mxu0 %v1216
    %1944 = vmatpush1.bf16.msra.mxu0 %v1215
    %1945 = vmatprep.subr.bf16.mxu0 %v1224
    %1946 = vmatpush1.bf16.msra.mxu0 %v1223
    %1947 = vmatprep.subr.bf16.mxu0 %v1232
    %1948 = vmatpush1.bf16.msra.mxu0 %v1231
    %1949 = vmatprep.subr.bf16.mxu0 %v1240
    %1950 = vmatpush1.bf16.msra.mxu0 %v1239
    %1951 = vmatprep.subr.bf16.mxu0 %v1248
    %1952 = vmatpush1.bf16.msra.mxu0 %v1247
    %1953 = vmatprep.subr.bf16.mxu0 %v1256
    %1954 = vmatpush1.bf16.msra.mxu0 %v1255
    %1955 = vmatprep.subr.bf16.mxu0 %v1264
    %1956 = vmatpush1.bf16.msra.mxu0 %v1263
    %1957 = vmatprep.subr.bf16.mxu0 %v1272
    %1958 = vmatpush1.bf16.msra.mxu0 %v1271
    %1959 = vmatprep.subr.bf16.mxu0 %v1280
    %1960 = vmatpush1.bf16.msra.mxu0 %v1279
    %1961 = vmatprep.subr.bf16.mxu0 %v1288
    %1962 = vmatpush1.bf16.msra.mxu0 %v1287
    %1963 = vmatprep.mubr.bf16.mxu0 %v118
    %1964 = vmatmul.mubr.bf16.gmra.mrb[0].mxu0 %v117
    %v1965 = vpop.f32.mrb[0].mxu0
    %v1966 = vadd.f32 0.0, %v1965
    %v1967 = vpop.f32.mrb[0].mxu0
    %v1968 = vadd.f32 0.0, %v1967
    %v1969 = vpop.f32.mrb[0].mxu0
    %v1970 = vadd.f32 0.0, %v1969
    %v1971 = vpop.f32.mrb[0].mxu0
    %v1972 = vadd.f32 0.0, %v1971
    %1973 = vdwg.mxu0
    %1974 = vmatprep.subr.bf16.mxu0 %v1296
    %1975 = vmatpush1.bf16.msra.mxu0 %v1295
    %1976 = vmatprep.subr.bf16.mxu0 %v1304
    %1977 = vmatpush1.bf16.msra.mxu0 %v1303
    %1978 = vmatprep.subr.bf16.mxu0 %v1312
    %1979 = vmatpush1.bf16.msra.mxu0 %v1311
    %1980 = vmatprep.subr.bf16.mxu0 %v1320
    %1981 = vmatpush1.bf16.msra.mxu0 %v1319
    %1982 = vmatprep.subr.bf16.mxu0 %v1328
    %1983 = vmatpush1.bf16.msra.mxu0 %v1327
    %1984 = vmatprep.subr.bf16.mxu0 %v1336
    %1985 = vmatpush1.bf16.msra.mxu0 %v1335
    %1986 = vmatprep.subr.bf16.mxu0 %v1344
    %1987 = vmatpush1.bf16.msra.mxu0 %v1343
    %1988 = vmatprep.subr.bf16.mxu0 %v1352
    %1989 = vmatpush1.bf16.msra.mxu0 %v1351
    %1990 = vmatprep.subr.bf16.mxu0 %v1360
    %1991 = vmatpush1.bf16.msra.mxu0 %v1359
    %1992 = vmatprep.subr.bf16.mxu0 %v1368
    %1993 = vmatpush1.bf16.msra.mxu0 %v1367
    %1994 = vmatprep.subr.bf16.mxu0 %v1376
    %1995 = vmatpush1.bf16.msra.mxu0 %v1375
    %1996 = vmatprep.subr.bf16.mxu0 %v1384
    %1997 = vmatpush1.bf16.msra.mxu0 %v1383
    %1998 = vmatprep.subr.bf16.mxu0 %v1392
    %1999 = vmatpush1.bf16.msra.mxu0 %v1391
    %2000 = vmatprep.subr.bf16.mxu0 %v1400
    %2001 = vmatpush1.bf16.msra.mxu0 %v1399
    %2002 = vmatprep.subr.bf16.mxu0 %v1408
    %2003 = vmatpush1.bf16.msra.mxu0 %v1407
    %2004 = vmatprep.subr.bf16.mxu0 %v1416
    %2005 = vmatpush1.bf16.msra.mxu0 %v1415
    %2006 = vmatprep.mubr.bf16.mxu0 %v120
    %2007 = vmatmul.mubr.bf16.gmra.mrb[0].mxu0 %v119
    %v2008 = vpop.f32.mrb[0].mxu0
    %v2009 = vadd.f32 %v1966, %v2008
    %v2010 = vpop.f32.mrb[0].mxu0
    %v2011 = vadd.f32 %v1968, %v2010
    %v2012 = vpop.f32.mrb[0].mxu0
    %v2013 = vadd.f32 %v1970, %v2012
    %v2014 = vpop.f32.mrb[0].mxu0
    %v2015 = vadd.f32 %v1972, %v2014
    %2016 = vdwg.mxu0
    %v2017 = vadd.f32 %v121, %v1751
    %v2018 = vadd.f32 %v122, %v1753
    %v2019 = vadd.f32 %v123, %v1837
    %v2020 = vadd.f32 %v124, %v1839
    %v2021 = vadd.f32 %v125, %v1923
    %v2022 = vadd.f32 %v126, %v1925
    %v2023 = vadd.f32 %v127, %v2009
    %v2024 = vadd.f32 %v128, %v2011
    %v2025 = vadd.f32 %v129, %v1755
    %v2026 = vadd.f32 %v130, %v1757
    %v2027 = vadd.f32 %v131, %v1841
    %v2028 = vadd.f32 %v132, %v1843
    %v2029 = vadd.f32 %v133, %v1927
    %v2030 = vadd.f32 %v134, %v1929
    %v2031 = vadd.f32 %v135, %v2013
    %v2032 = vadd.f32 %v136, %v2015
    %2033 = vst [vmem:[#allocation2] sm:$0xff] %v2017
    %2034 = vst [vmem:[#allocation2 + $0x8] sm:$0xff] %v2018
    %2035 = vst [vmem:[#allocation2 + $0x10] sm:$0xff] %v2019
    %2036 = vst [vmem:[#allocation2 + $0x18] sm:$0xff] %v2020
    %2037 = vst [vmem:[#allocation2 + $0x20] sm:$0xff] %v2021
    %2038 = vst [vmem:[#allocation2 + $0x28] sm:$0xff] %v2022
    %2039 = vst [vmem:[#allocation2 + $0x30] sm:$0xff] %v2023
    %2040 = vst [vmem:[#allocation2 + $0x38] sm:$0xff] %v2024
    %2041 = vst [vmem:[#allocation2 + $0x40] sm:$0xff] %v2025
    %2042 = vst [vmem:[#allocation2 + $0x48] sm:$0xff] %v2026
    %2043 = vst [vmem:[#allocation2 + $0x50] sm:$0xff] %v2027
    %2044 = vst [vmem:[#allocation2 + $0x58] sm:$0xff] %v2028
    %2045 = vst [vmem:[#allocation2 + $0x60] sm:$0xff] %v2029
    %2046 = vst [vmem:[#allocation2 + $0x68] sm:$0xff] %v2030
    %2047 = vst [vmem:[#allocation2 + $0x70] sm:$0xff] %v2031
    %2048 = vst [vmem:[#allocation2 + $0x78] sm:$0xff] %v2032
    // Predicated region
    $region62: #{food101k_classifier.1} parent=1 // pred_check
      %p2049 = pneg %p81
    $region63: #{food101k_classifier.1} parent=1 // pred_check_branch
      %2051 = sbr.rel (%p2049) target = $region65
    $region64: #{food101k_classifier.1} parent=1 // pred_region
      %v2052 = vlaneseq
      %v2053 = vshrl.u32 %v2052, 7
      %v2054 = vadd.s32 %v2053, 8
      %vm2055 = vcmp.lt.s32.totalorder %v2053, 12
      %vm2056 = vcmp.lt.s32.totalorder %v2054, 12
      %v2057 = vsel %vm2055, 1, 0
      %v2058 = vsel %vm2056, 1, 0
      %v2059 = vcvt.s32.f32 %v2057
      %v2060 = vcvt.s32.f32 %v2058
      %v2061 = vld [vmem:[#allocation2] sm:$0xff]
      %v2062 = vld [vmem:[#allocation2 + $0x8] sm:$0xff]
      %v2063 = vld [vmem:[#allocation2 + $0x10] sm:$0xff]
      %v2064 = vld [vmem:[#allocation2 + $0x18] sm:$0xff]
      %v2065 = vld [vmem:[#allocation2 + $0x20] sm:$0xff]
      %v2066 = vld [vmem:[#allocation2 + $0x28] sm:$0xff]
      %v2067 = vld [vmem:[#allocation2 + $0x30] sm:$0xff]
      %v2068 = vld [vmem:[#allocation2 + $0x38] sm:$0xff]
      %v2069 = vld [vmem:[#allocation2 + $0x40] sm:$0xff]
      %v2070 = vld [vmem:[#allocation2 + $0x48] sm:$0xff]
      %v2071 = vld [vmem:[#allocation2 + $0x50] sm:$0xff]
      %v2072 = vld [vmem:[#allocation2 + $0x58] sm:$0xff]
      %v2073 = vld [vmem:[#allocation2 + $0x60] sm:$0xff]
      %v2074 = vld [vmem:[#allocation2 + $0x68] sm:$0xff]
      %v2075 = vld [vmem:[#allocation2 + $0x70] sm:$0xff]
      %v2076 = vld [vmem:[#allocation2 + $0x78] sm:$0xff]
      %v2077 = vld [vmem:[%s2] sm:$0xff]
      %v2079 = vlaneseq
      %v2080 = vshrl.u32 %v2079, 7
      %v2081 = vsub.s32 0, %v2080
      %v2082 = vrot.slane %v2077, %v2081
      %v2083 = vlaneseq
      %v2084 = vshrl.u32 %v2083, 7
      %v2085 = vsub.s32 1, %v2084
      %v2086 = vrot.slane %v2077, %v2085
      %v2087 = vlaneseq
      %v2088 = vshrl.u32 %v2087, 7
      %v2089 = vsub.s32 2, %v2088
      %v2090 = vrot.slane %v2077, %v2089
      %v2091 = vlaneseq
      %v2092 = vshrl.u32 %v2091, 7
      %v2093 = vsub.s32 3, %v2092
      %v2094 = vrot.slane %v2077, %v2093
      %v2095 = vlaneseq
      %v2096 = vshrl.u32 %v2095, 7
      %v2097 = vsub.s32 4, %v2096
      %v2098 = vrot.slane %v2077, %v2097
      %v2099 = vlaneseq
      %v2100 = vshrl.u32 %v2099, 7
      %v2101 = vsub.s32 5, %v2100
      %v2102 = vrot.slane %v2077, %v2101
      %v2103 = vlaneseq
      %v2104 = vshrl.u32 %v2103, 7
      %v2105 = vsub.s32 6, %v2104
      %v2106 = vrot.slane %v2077, %v2105
      %v2107 = vlaneseq
      %v2108 = vshrl.u32 %v2107, 7
      %v2109 = vsub.s32 7, %v2108
      %v2110 = vrot.slane %v2077, %v2109
      %v2119 = vadd.f32 %v2061, %v2082
      %v2120 = vadd.f32 %v2062, %v2086
      %v2121 = vadd.f32 %v2063, %v2090
      %v2122 = vadd.f32 %v2064, %v2094
      %v2123 = vadd.f32 %v2065, %v2098
      %v2124 = vadd.f32 %v2066, %v2102
      %v2125 = vadd.f32 %v2067, %v2106
      %v2126 = vadd.f32 %v2068, %v2110
      %v2127 = vadd.f32 %v2069, %v2082
      %v2128 = vadd.f32 %v2070, %v2086
      %v2129 = vadd.f32 %v2071, %v2090
      %v2130 = vadd.f32 %v2072, %v2094
      %v2131 = vadd.f32 %v2073, %v2098
      %v2132 = vadd.f32 %v2074, %v2102
      %v2133 = vadd.f32 %v2075, %v2106
      %v2134 = vadd.f32 %v2076, %v2110
      %v2135 = vld [vmem:[%s3] sm:$0xff]
      %v2136 = vld [vmem:[%s4] sm:$0xff]
      %v2137 = vmul.f32 %v2119, %v2059
      %v2138 = vmul.f32 %v2120, %v2059
      %v2139 = vmul.f32 %v2121, %v2059
      %v2140 = vmul.f32 %v2122, %v2059
      %v2141 = vmul.f32 %v2123, %v2059
      %v2142 = vmul.f32 %v2124, %v2059
      %v2143 = vmul.f32 %v2125, %v2059
      %v2144 = vmul.f32 %v2126, %v2059
      %v2145 = vmul.f32 %v2127, %v2060
      %v2146 = vmul.f32 %v2128, %v2060
      %v2147 = vmul.f32 %v2129, %v2060
      %v2148 = vmul.f32 %v2130, %v2060
      %v2149 = vmul.f32 %v2131, %v2060
      %v2150 = vmul.f32 %v2132, %v2060
      %v2151 = vmul.f32 %v2133, %v2060
      %v2152 = vmul.f32 %v2134, %v2060
      %v2153 = vadd.f32 %v2137, %v2145
      %v2154 = vrot.slane %v2153, 4
      %v2155 = vadd.f32 %v2153, %v2154
      %v2156 = vrot.slane %v2155, 2
      %v2157 = vadd.f32 %v2155, %v2156
      %v2158 = vrot.slane %v2157, 1
      %v2159 = vadd.f32 %v2157, %v2158
      %v2160 = vadd.f32 %v2138, %v2146
      %v2161 = vrot.slane %v2160, 4
      %v2162 = vadd.f32 %v2160, %v2161
      %v2163 = vrot.slane %v2162, 2
      %v2164 = vadd.f32 %v2162, %v2163
      %v2165 = vrot.slane %v2164, 1
      %v2166 = vadd.f32 %v2164, %v2165
      %v2167 = vadd.f32 %v2139, %v2147
      %v2168 = vrot.slane %v2167, 4
      %v2169 = vadd.f32 %v2167, %v2168
      %v2170 = vrot.slane %v2169, 2
      %v2171 = vadd.f32 %v2169, %v2170
      %v2172 = vrot.slane %v2171, 1
      %v2173 = vadd.f32 %v2171, %v2172
      %v2174 = vadd.f32 %v2140, %v2148
      %v2175 = vrot.slane %v2174, 4
      %v2176 = vadd.f32 %v2174, %v2175
      %v2177 = vrot.slane %v2176, 2
      %v2178 = vadd.f32 %v2176, %v2177
      %v2179 = vrot.slane %v2178, 1
      %v2180 = vadd.f32 %v2178, %v2179
      %v2181 = vadd.f32 %v2141, %v2149
      %v2182 = vrot.slane %v2181, 4
      %v2183 = vadd.f32 %v2181, %v2182
      %v2184 = vrot.slane %v2183, 2
      %v2185 = vadd.f32 %v2183, %v2184
      %v2186 = vrot.slane %v2185, 1
      %v2187 = vadd.f32 %v2185, %v2186
      %v2188 = vadd.f32 %v2142, %v2150
      %v2189 = vrot.slane %v2188, 4
      %v2190 = vadd.f32 %v2188, %v2189
      %v2191 = vrot.slane %v2190, 2
      %v2192 = vadd.f32 %v2190, %v2191
      %v2193 = vrot.slane %v2192, 1
      %v2194 = vadd.f32 %v2192, %v2193
      %v2195 = vadd.f32 %v2143, %v2151
      %v2196 = vrot.slane %v2195, 4
      %v2197 = vadd.f32 %v2195, %v2196
      %v2198 = vrot.slane %v2197, 2
      %v2199 = vadd.f32 %v2197, %v2198
      %v2200 = vrot.slane %v2199, 1
      %v2201 = vadd.f32 %v2199, %v2200
      %v2202 = vadd.f32 %v2144, %v2152
      %v2203 = vrot.slane %v2202, 4
      %v2204 = vadd.f32 %v2202, %v2203
      %v2205 = vrot.slane %v2204, 2
      %v2206 = vadd.f32 %v2204, %v2205
      %v2207 = vrot.slane %v2206, 1
      %v2208 = vadd.f32 %v2206, %v2207
      %v2209 = vmul.f32 %v2159, 0.083333336
      %v2210 = vmul.f32 %v2166, 0.083333336
      %v2211 = vmul.f32 %v2173, 0.083333336
      %v2212 = vmul.f32 %v2180, 0.083333336
      %v2213 = vmul.f32 %v2187, 0.083333336
      %v2214 = vmul.f32 %v2194, 0.083333336
      %v2215 = vmul.f32 %v2201, 0.083333336
      %v2216 = vmul.f32 %v2208, 0.083333336
      %v2217 = vsub.f32 %v2119, %v2209
      %v2218 = vsub.f32 %v2120, %v2210
      %v2219 = vsub.f32 %v2121, %v2211
      %v2220 = vsub.f32 %v2122, %v2212
      %v2221 = vsub.f32 %v2123, %v2213
      %v2222 = vsub.f32 %v2124, %v2214
      %v2223 = vsub.f32 %v2125, %v2215
      %v2224 = vsub.f32 %v2126, %v2216
      %v2225 = vsub.f32 %v2127, %v2209
      %v2226 = vsub.f32 %v2128, %v2210
      %v2227 = vsub.f32 %v2129, %v2211
      %v2228 = vsub.f32 %v2130, %v2212
      %v2229 = vsub.f32 %v2131, %v2213
      %v2230 = vsub.f32 %v2132, %v2214
      %v2231 = vsub.f32 %v2133, %v2215
      %v2232 = vsub.f32 %v2134, %v2216
      %v2233 = vmul.f32 %v2217, %v2059
      %v2234 = vmul.f32 %v2218, %v2059
      %v2235 = vmul.f32 %v2219, %v2059
      %v2236 = vmul.f32 %v2220, %v2059
      %v2237 = vmul.f32 %v2221, %v2059
      %v2238 = vmul.f32 %v2222, %v2059
      %v2239 = vmul.f32 %v2223, %v2059
      %v2240 = vmul.f32 %v2224, %v2059
      %v2241 = vmul.f32 %v2225, %v2060
      %v2242 = vmul.f32 %v2226, %v2060
      %v2243 = vmul.f32 %v2227, %v2060
      %v2244 = vmul.f32 %v2228, %v2060
      %v2245 = vmul.f32 %v2229, %v2060
      %v2246 = vmul.f32 %v2230, %v2060
      %v2247 = vmul.f32 %v2231, %v2060
      %v2248 = vmul.f32 %v2232, %v2060
      %v2249 = vmul.f32 %v2233, %v2233
      %v2250 = vmul.f32 %v2234, %v2234
      %v2251 = vmul.f32 %v2235, %v2235
      %v2252 = vmul.f32 %v2236, %v2236
      %v2253 = vmul.f32 %v2237, %v2237
      %v2254 = vmul.f32 %v2238, %v2238
      %v2255 = vmul.f32 %v2239, %v2239
      %v2256 = vmul.f32 %v2240, %v2240
      %v2257 = vmul.f32 %v2241, %v2241
      %v2258 = vmul.f32 %v2242, %v2242
      %v2259 = vmul.f32 %v2243, %v2243
      %v2260 = vmul.f32 %v2244, %v2244
      %v2261 = vmul.f32 %v2245, %v2245
      %v2262 = vmul.f32 %v2246, %v2246
      %v2263 = vmul.f32 %v2247, %v2247
      %v2264 = vmul.f32 %v2248, %v2248
      %v2265 = vadd.f32 %v2249, %v2257
      %v2266 = vrot.slane %v2265, 4
      %v2267 = vadd.f32 %v2265, %v2266
      %v2268 = vrot.slane %v2267, 2
      %v2269 = vadd.f32 %v2267, %v2268
      %v2270 = vrot.slane %v2269, 1
      %v2271 = vadd.f32 %v2269, %v2270
      %v2272 = vadd.f32 %v2250, %v2258
      %v2273 = vrot.slane %v2272, 4
      %v2274 = vadd.f32 %v2272, %v2273
      %v2275 = vrot.slane %v2274, 2
      %v2276 = vadd.f32 %v2274, %v2275
      %v2277 = vrot.slane %v2276, 1
      %v2278 = vadd.f32 %v2276, %v2277
      %v2279 = vadd.f32 %v2251, %v2259
      %v2280 = vrot.slane %v2279, 4
      %v2281 = vadd.f32 %v2279, %v2280
      %v2282 = vrot.slane %v2281, 2
      %v2283 = vadd.f32 %v2281, %v2282
      %v2284 = vrot.slane %v2283, 1
      %v2285 = vadd.f32 %v2283, %v2284
      %v2286 = vadd.f32 %v2252, %v2260
      %v2287 = vrot.slane %v2286, 4
      %v2288 = vadd.f32 %v2286, %v2287
      %v2289 = vrot.slane %v2288, 2
      %v2290 = vadd.f32 %v2288, %v2289
      %v2291 = vrot.slane %v2290, 1
      %v2292 = vadd.f32 %v2290, %v2291
      %v2293 = vadd.f32 %v2253, %v2261
      %v2294 = vrot.slane %v2293, 4
      %v2295 = vadd.f32 %v2293, %v2294
      %v2296 = vrot.slane %v2295, 2
      %v2297 = vadd.f32 %v2295, %v2296
      %v2298 = vrot.slane %v2297, 1
      %v2299 = vadd.f32 %v2297, %v2298
      %v2300 = vadd.f32 %v2254, %v2262
      %v2301 = vrot.slane %v2300, 4
      %v2302 = vadd.f32 %v2300, %v2301
      %v2303 = vrot.slane %v2302, 2
      %v2304 = vadd.f32 %v2302, %v2303
      %v2305 = vrot.slane %v2304, 1
      %v2306 = vadd.f32 %v2304, %v2305
      %v2307 = vadd.f32 %v2255, %v2263
      %v2308 = vrot.slane %v2307, 4
      %v2309 = vadd.f32 %v2307, %v2308
      %v2310 = vrot.slane %v2309, 2
      %v2311 = vadd.f32 %v2309, %v2310
      %v2312 = vrot.slane %v2311, 1
      %v2313 = vadd.f32 %v2311, %v2312
      %v2314 = vadd.f32 %v2256, %v2264
      %v2315 = vrot.slane %v2314, 4
      %v2316 = vadd.f32 %v2314, %v2315
      %v2317 = vrot.slane %v2316, 2
      %v2318 = vadd.f32 %v2316, %v2317
      %v2319 = vrot.slane %v2318, 1
      %v2320 = vadd.f32 %v2318, %v2319
      %v2321 = vmul.f32 %v2271, 0.083333336
      %v2322 = vmul.f32 %v2278, 0.083333336
      %v2323 = vmul.f32 %v2285, 0.083333336
      %v2324 = vmul.f32 %v2292, 0.083333336
      %v2325 = vmul.f32 %v2299, 0.083333336
      %v2326 = vmul.f32 %v2306, 0.083333336
      %v2327 = vmul.f32 %v2313, 0.083333336
      %v2328 = vmul.f32 %v2320, 0.083333336
      %v2329 = vadd.f32 %v2321, 1e-05
      %v2330 = vadd.f32 %v2322, 1e-05
      %v2331 = vadd.f32 %v2323, 1e-05
      %v2332 = vadd.f32 %v2324, 1e-05
      %v2333 = vadd.f32 %v2325, 1e-05
      %v2334 = vadd.f32 %v2326, 1e-05
      %v2335 = vadd.f32 %v2327, 1e-05
      %v2336 = vadd.f32 %v2328, 1e-05
      %v2337 = vrsqrt.pop %v2329
      %v2338 = vrsqrt.pop %v2330
      %v2339 = vrsqrt.pop %v2331
      %v2340 = vrsqrt.pop %v2332
      %v2341 = vrsqrt.pop %v2333
      %v2342 = vrsqrt.pop %v2334
      %v2343 = vrsqrt.pop %v2335
      %v2344 = vrsqrt.pop %v2336
      %v2353 = vcombine.low %v2337, %v2338
      %v2354 = vcombine.low %v2339, %v2340
      %v2355 = vcombine.low %v2341, %v2342
      %v2356 = vcombine.low %v2343, %v2344
      %v2358 = vunpack.c.l.s4 1966171168
      %v2359 = vunpack.c.0.s8 %v2358
      %v2360 = vlaneseq
      %v2361 = vshrl.u32 %v2360, 7
      %v2362 = vsub.s32 %v2359, %v2361
      %v2363 = vrot.slane %v2353, %v2362
      %v2365 = vunpack.c.l.s4 1966171168
      %v2366 = vunpack.c.0.s8 %v2365
      %v2367 = vlaneseq
      %v2368 = vshrl.u32 %v2367, 7
      %v2369 = vsub.s32 %v2366, %v2368
      %v2370 = vrot.slane %v2354, %v2369
      %v2372 = vunpack.c.l.s4 1966171168
      %v2373 = vunpack.c.0.s8 %v2372
      %v2374 = vlaneseq
      %v2375 = vshrl.u32 %v2374, 7
      %v2376 = vsub.s32 %v2373, %v2375
      %v2377 = vrot.slane %v2355, %v2376
      %v2379 = vunpack.c.l.s4 1966171168
      %v2380 = vunpack.c.0.s8 %v2379
      %v2381 = vlaneseq
      %v2382 = vshrl.u32 %v2381, 7
      %v2383 = vsub.s32 %v2380, %v2382
      %v2384 = vrot.slane %v2356, %v2383
      %v2385 = vcombine.low %v2363, %v2370
      %v2386 = vcombine.low %v2377, %v2384
      %v2388 = vunpack.c.l.s4 1966171168
      %v2389 = vunpack.c.0.s8 %v2388
      %v2390 = vlaneseq
      %v2391 = vshrl.u32 %v2390, 7
      %v2392 = vsub.s32 %v2389, %v2391
      %v2393 = vrot.slane %v2385, %v2392
      %v2395 = vunpack.c.l.s4 1966171168
      %v2396 = vunpack.c.0.s8 %v2395
      %v2397 = vlaneseq
      %v2398 = vshrl.u32 %v2397, 7
      %v2399 = vsub.s32 %v2396, %v2398
      %v2400 = vrot.slane %v2386, %v2399
      %v2401 = vcombine.low %v2393, %v2400
      %v2403 = vmul.f32 %v2135, %v2401
      %v2405 = vlaneseq
      %v2406 = vshrl.u32 %v2405, 7
      %v2407 = vsub.s32 0, %v2406
      %v2408 = vrot.slane %v2403, %v2407
      %v2409 = vlaneseq
      %v2410 = vshrl.u32 %v2409, 7
      %v2411 = vsub.s32 1, %v2410
      %v2412 = vrot.slane %v2403, %v2411
      %v2413 = vlaneseq
      %v2414 = vshrl.u32 %v2413, 7
      %v2415 = vsub.s32 2, %v2414
      %v2416 = vrot.slane %v2403, %v2415
      %v2417 = vlaneseq
      %v2418 = vshrl.u32 %v2417, 7
      %v2419 = vsub.s32 3, %v2418
      %v2420 = vrot.slane %v2403, %v2419
      %v2421 = vlaneseq
      %v2422 = vshrl.u32 %v2421, 7
      %v2423 = vsub.s32 4, %v2422
      %v2424 = vrot.slane %v2403, %v2423
      %v2425 = vlaneseq
      %v2426 = vshrl.u32 %v2425, 7
      %v2427 = vsub.s32 5, %v2426
      %v2428 = vrot.slane %v2403, %v2427
      %v2429 = vlaneseq
      %v2430 = vshrl.u32 %v2429, 7
      %v2431 = vsub.s32 6, %v2430
      %v2432 = vrot.slane %v2403, %v2431
      %v2433 = vlaneseq
      %v2434 = vshrl.u32 %v2433, 7
      %v2435 = vsub.s32 7, %v2434
      %v2436 = vrot.slane %v2403, %v2435
      %v2445 = vmul.f32 %v2119, %v2408
      %v2446 = vmul.f32 %v2120, %v2412
      %v2447 = vmul.f32 %v2121, %v2416
      %v2448 = vmul.f32 %v2122, %v2420
      %v2449 = vmul.f32 %v2123, %v2424
      %v2450 = vmul.f32 %v2124, %v2428
      %v2451 = vmul.f32 %v2125, %v2432
      %v2452 = vmul.f32 %v2126, %v2436
      %v2453 = vmul.f32 %v2127, %v2408
      %v2454 = vmul.f32 %v2128, %v2412
      %v2455 = vmul.f32 %v2129, %v2416
      %v2456 = vmul.f32 %v2130, %v2420
      %v2457 = vmul.f32 %v2131, %v2424
      %v2458 = vmul.f32 %v2132, %v2428
      %v2459 = vmul.f32 %v2133, %v2432
      %v2460 = vmul.f32 %v2134, %v2436
      %v2461 = vmul.f32 %v2209, %v2408
      %v2462 = vmul.f32 %v2210, %v2412
      %v2463 = vmul.f32 %v2211, %v2416
      %v2464 = vmul.f32 %v2212, %v2420
      %v2465 = vmul.f32 %v2213, %v2424
      %v2466 = vmul.f32 %v2214, %v2428
      %v2467 = vmul.f32 %v2215, %v2432
      %v2468 = vmul.f32 %v2216, %v2436
      %v2477 = vcombine.low %v2461, %v2462
      %v2478 = vcombine.low %v2463, %v2464
      %v2479 = vcombine.low %v2465, %v2466
      %v2480 = vcombine.low %v2467, %v2468
      %v2482 = vunpack.c.l.s4 1966171168
      %v2483 = vunpack.c.0.s8 %v2482
      %v2484 = vlaneseq
      %v2485 = vshrl.u32 %v2484, 7
      %v2486 = vsub.s32 %v2483, %v2485
      %v2487 = vrot.slane %v2477, %v2486
      %v2489 = vunpack.c.l.s4 1966171168
      %v2490 = vunpack.c.0.s8 %v2489
      %v2491 = vlaneseq
      %v2492 = vshrl.u32 %v2491, 7
      %v2493 = vsub.s32 %v2490, %v2492
      %v2494 = vrot.slane %v2478, %v2493
      %v2496 = vunpack.c.l.s4 1966171168
      %v2497 = vunpack.c.0.s8 %v2496
      %v2498 = vlaneseq
      %v2499 = vshrl.u32 %v2498, 7
      %v2500 = vsub.s32 %v2497, %v2499
      %v2501 = vrot.slane %v2479, %v2500
      %v2503 = vunpack.c.l.s4 1966171168
      %v2504 = vunpack.c.0.s8 %v2503
      %v2505 = vlaneseq
      %v2506 = vshrl.u32 %v2505, 7
      %v2507 = vsub.s32 %v2504, %v2506
      %v2508 = vrot.slane %v2480, %v2507
      %v2509 = vcombine.low %v2487, %v2494
      %v2510 = vcombine.low %v2501, %v2508
      %v2512 = vunpack.c.l.s4 1966171168
      %v2513 = vunpack.c.0.s8 %v2512
      %v2514 = vlaneseq
      %v2515 = vshrl.u32 %v2514, 7
      %v2516 = vsub.s32 %v2513, %v2515
      %v2517 = vrot.slane %v2509, %v2516
      %v2519 = vunpack.c.l.s4 1966171168
      %v2520 = vunpack.c.0.s8 %v2519
      %v2521 = vlaneseq
      %v2522 = vshrl.u32 %v2521, 7
      %v2523 = vsub.s32 %v2520, %v2522
      %v2524 = vrot.slane %v2510, %v2523
      %v2525 = vcombine.low %v2517, %v2524
      %v2527 = vsub.f32 %v2136, %v2525
      %v2529 = vlaneseq
      %v2530 = vshrl.u32 %v2529, 7
      %v2531 = vsub.s32 0, %v2530
      %v2532 = vrot.slane %v2527, %v2531
      %v2533 = vlaneseq
      %v2534 = vshrl.u32 %v2533, 7
      %v2535 = vsub.s32 1, %v2534
      %v2536 = vrot.slane %v2527, %v2535
      %v2537 = vlaneseq
      %v2538 = vshrl.u32 %v2537, 7
      %v2539 = vsub.s32 2, %v2538
      %v2540 = vrot.slane %v2527, %v2539
      %v2541 = vlaneseq
      %v2542 = vshrl.u32 %v2541, 7
      %v2543 = vsub.s32 3, %v2542
      %v2544 = vrot.slane %v2527, %v2543
      %v2545 = vlaneseq
      %v2546 = vshrl.u32 %v2545, 7
      %v2547 = vsub.s32 4, %v2546
      %v2548 = vrot.slane %v2527, %v2547
      %v2549 = vlaneseq
      %v2550 = vshrl.u32 %v2549, 7
      %v2551 = vsub.s32 5, %v2550
      %v2552 = vrot.slane %v2527, %v2551
      %v2553 = vlaneseq
      %v2554 = vshrl.u32 %v2553, 7
      %v2555 = vsub.s32 6, %v2554
      %v2556 = vrot.slane %v2527, %v2555
      %v2557 = vlaneseq
      %v2558 = vshrl.u32 %v2557, 7
      %v2559 = vsub.s32 7, %v2558
      %v2560 = vrot.slane %v2527, %v2559
      %v2569 = vadd.f32 %v2445, %v2532
      %v2570 = vadd.f32 %v2446, %v2536
      %v2571 = vadd.f32 %v2447, %v2540
      %v2572 = vadd.f32 %v2448, %v2544
      %v2573 = vadd.f32 %v2449, %v2548
      %v2574 = vadd.f32 %v2450, %v2552
      %v2575 = vadd.f32 %v2451, %v2556
      %v2576 = vadd.f32 %v2452, %v2560
      %v2577 = vadd.f32 %v2453, %v2532
      %v2578 = vadd.f32 %v2454, %v2536
      %v2579 = vadd.f32 %v2455, %v2540
      %v2580 = vadd.f32 %v2456, %v2544
      %v2581 = vadd.f32 %v2457, %v2548
      %v2582 = vadd.f32 %v2458, %v2552
      %v2583 = vadd.f32 %v2459, %v2556
      %v2584 = vadd.f32 %v2460, %v2560
      %v2585 = vmax.f32 %v2569, 0.0
      %v2586 = vmax.f32 %v2570, 0.0
      %v2587 = vmax.f32 %v2571, 0.0
      %v2588 = vmax.f32 %v2572, 0.0
      %v2589 = vmax.f32 %v2573, 0.0
      %v2590 = vmax.f32 %v2574, 0.0
      %v2591 = vmax.f32 %v2575, 0.0
      %v2592 = vmax.f32 %v2576, 0.0
      %v2593 = vmax.f32 %v2577, 0.0
      %v2594 = vmax.f32 %v2578, 0.0
      %v2595 = vmax.f32 %v2579, 0.0
      %v2596 = vmax.f32 %v2580, 0.0
      %v2597 = vmax.f32 %v2581, 0.0
      %v2598 = vmax.f32 %v2582, 0.0
      %v2599 = vmax.f32 %v2583, 0.0
      %v2600 = vmax.f32 %v2584, 0.0
      %v2601 = vpack.c.bf16 %v2593, %v2585
      %v2602 = vpack.c.bf16 %v2594, %v2586
      %v2603 = vpack.c.bf16 %v2595, %v2587
      %v2604 = vpack.c.bf16 %v2596, %v2588
      %v2605 = vpack.c.bf16 %v2597, %v2589
      %v2606 = vpack.c.bf16 %v2598, %v2590
      %v2607 = vpack.c.bf16 %v2599, %v2591
      %v2608 = vpack.c.bf16 %v2600, %v2592
      %v2609 = vld [vmem:[#allocation6] sm:$0xff]
      %v2610 = vld [vmem:[#allocation6 + $0x8] sm:$0xff]
      %v2611 = vld [vmem:[#allocation6 + $0x10] sm:$0xff]
      %v2612 = vld [vmem:[#allocation6 + $0x18] sm:$0xff]
      %v2613 = vld [vmem:[#allocation6 + $0x20] sm:$0xff]
      %v2614 = vld [vmem:[#allocation6 + $0x28] sm:$0xff]
      %v2615 = vld [vmem:[#allocation6 + $0x30] sm:$0xff]
      %v2616 = vld [vmem:[#allocation6 + $0x38] sm:$0xff]
      %v2617 = vld [vmem:[#allocation6 + $0x40] sm:$0xff]
      %v2618 = vld [vmem:[#allocation6 + $0x48] sm:$0xff]
      %v2619 = vld [vmem:[#allocation6 + $0x50] sm:$0xff]
      %v2620 = vld [vmem:[#allocation6 + $0x58] sm:$0xff]
      %v2621 = vld [vmem:[#allocation6 + $0x60] sm:$0xff]
      %v2622 = vld [vmem:[#allocation6 + $0x68] sm:$0xff]
      %v2623 = vld [vmem:[#allocation6 + $0x70] sm:$0xff]
      %v2624 = vld [vmem:[#allocation6 + $0x78] sm:$0xff]
      %v2625 = vld [vmem:[#allocation6 + $0x80] sm:$0xff]
      %v2626 = vld [vmem:[#allocation6 + $0x88] sm:$0xff]
      %v2627 = vld [vmem:[#allocation6 + $0x90] sm:$0xff]
      %v2628 = vld [vmem:[#allocation6 + $0x98] sm:$0xff]
      %v2629 = vld [vmem:[#allocation6 + $0xa0] sm:$0xff]
      %v2630 = vld [vmem:[#allocation6 + $0xa8] sm:$0xff]
      %v2631 = vld [vmem:[#allocation6 + $0xb0] sm:$0xff]
      %v2632 = vld [vmem:[#allocation6 + $0xb8] sm:$0xff]
      %v2633 = vld [vmem:[#allocation6 + $0xc0] sm:$0xff]
      %v2634 = vld [vmem:[#allocation6 + $0xc8] sm:$0xff]
      %v2635 = vld [vmem:[#allocation6 + $0xd0] sm:$0xff]
      %v2636 = vld [vmem:[#allocation6 + $0xd8] sm:$0xff]
      %v2637 = vld [vmem:[#allocation6 + $0xe0] sm:$0xff]
      %v2638 = vld [vmem:[#allocation6 + $0xe8] sm:$0xff]
      %v2639 = vld [vmem:[#allocation6 + $0xf0] sm:$0xff]
      %v2640 = vld [vmem:[#allocation6 + $0xf8] sm:$0xff]
      %v2641 = vld [vmem:[#allocation6 + $0x100] sm:$0xff]
      %v2642 = vld [vmem:[#allocation6 + $0x108] sm:$0xff]
      %v2643 = vld [vmem:[#allocation6 + $0x110] sm:$0xff]
      %v2644 = vld [vmem:[#allocation6 + $0x118] sm:$0xff]
      %v2645 = vld [vmem:[#allocation6 + $0x120] sm:$0xff]
      %v2646 = vld [vmem:[#allocation6 + $0x128] sm:$0xff]
      %v2647 = vld [vmem:[#allocation6 + $0x130] sm:$0xff]
      %v2648 = vld [vmem:[#allocation6 + $0x138] sm:$0xff]
      %v2649 = vld [vmem:[#allocation6 + $0x140] sm:$0xff]
      %v2650 = vld [vmem:[#allocation6 + $0x148] sm:$0xff]
      %v2651 = vld [vmem:[#allocation6 + $0x150] sm:$0xff]
      %v2652 = vld [vmem:[#allocation6 + $0x158] sm:$0xff]
      %v2653 = vld [vmem:[#allocation6 + $0x160] sm:$0xff]
      %v2654 = vld [vmem:[#allocation6 + $0x168] sm:$0xff]
      %v2655 = vld [vmem:[#allocation6 + $0x170] sm:$0xff]
      %v2656 = vld [vmem:[#allocation6 + $0x178] sm:$0xff]
      %v2657 = vld [vmem:[#allocation6 + $0x180] sm:$0xff]
      %v2658 = vld [vmem:[#allocation6 + $0x188] sm:$0xff]
      %v2659 = vld [vmem:[#allocation6 + $0x190] sm:$0xff]
      %v2660 = vld [vmem:[#allocation6 + $0x198] sm:$0xff]
      %v2661 = vld [vmem:[#allocation6 + $0x1a0] sm:$0xff]
      %v2662 = vld [vmem:[#allocation6 + $0x1a8] sm:$0xff]
      %v2663 = vld [vmem:[#allocation6 + $0x1b0] sm:$0xff]
      %v2664 = vld [vmem:[#allocation6 + $0x1b8] sm:$0xff]
      %v2665 = vld [vmem:[#allocation6 + $0x1c0] sm:$0xff]
      %v2666 = vld [vmem:[#allocation6 + $0x1c8] sm:$0xff]
      %v2667 = vld [vmem:[#allocation6 + $0x1d0] sm:$0xff]
      %v2668 = vld [vmem:[#allocation6 + $0x1d8] sm:$0xff]
      %v2669 = vld [vmem:[#allocation6 + $0x1e0] sm:$0xff]
      %v2670 = vld [vmem:[#allocation6 + $0x1e8] sm:$0xff]
      %v2671 = vld [vmem:[#allocation6 + $0x1f0] sm:$0xff]
      %v2672 = vld [vmem:[#allocation6 + $0x1f8] sm:$0xff]
      %v2673 = vld [vmem:[#allocation6 + $0x200] sm:$0xff]
      %v2674 = vld [vmem:[#allocation6 + $0x208] sm:$0xff]
      %v2675 = vld [vmem:[#allocation6 + $0x210] sm:$0xff]
      %v2676 = vld [vmem:[#allocation6 + $0x218] sm:$0xff]
      %v2677 = vld [vmem:[#allocation6 + $0x220] sm:$0xff]
      %v2678 = vld [vmem:[#allocation6 + $0x228] sm:$0xff]
      %v2679 = vld [vmem:[#allocation6 + $0x230] sm:$0xff]
      %v2680 = vld [vmem:[#allocation6 + $0x238] sm:$0xff]
      %v2681 = vld [vmem:[#allocation6 + $0x240] sm:$0xff]
      %v2682 = vld [vmem:[#allocation6 + $0x248] sm:$0xff]
      %v2683 = vld [vmem:[#allocation6 + $0x250] sm:$0xff]
      %v2684 = vld [vmem:[#allocation6 + $0x258] sm:$0xff]
      %v2685 = vld [vmem:[#allocation6 + $0x260] sm:$0xff]
      %v2686 = vld [vmem:[#allocation6 + $0x268] sm:$0xff]
      %v2687 = vld [vmem:[#allocation6 + $0x270] sm:$0xff]
      %v2688 = vld [vmem:[#allocation6 + $0x278] sm:$0xff]
      %v2689 = vld [vmem:[#allocation6 + $0x280] sm:$0xff]
      %v2690 = vld [vmem:[#allocation6 + $0x288] sm:$0xff]
      %v2691 = vld [vmem:[#allocation6 + $0x290] sm:$0xff]
      %v2692 = vld [vmem:[#allocation6 + $0x298] sm:$0xff]
      %v2693 = vld [vmem:[#allocation6 + $0x2a0] sm:$0xff]
      %v2694 = vld [vmem:[#allocation6 + $0x2a8] sm:$0xff]
      %v2695 = vld [vmem:[#allocation6 + $0x2b0] sm:$0xff]
      %v2696 = vld [vmem:[#allocation6 + $0x2b8] sm:$0xff]
      %v2697 = vld [vmem:[#allocation6 + $0x2c0] sm:$0xff]
      %v2698 = vld [vmem:[#allocation6 + $0x2c8] sm:$0xff]
      %v2699 = vld [vmem:[#allocation6 + $0x2d0] sm:$0xff]
      %v2700 = vld [vmem:[#allocation6 + $0x2d8] sm:$0xff]
      %v2701 = vld [vmem:[#allocation6 + $0x2e0] sm:$0xff]
      %v2702 = vld [vmem:[#allocation6 + $0x2e8] sm:$0xff]
      %v2703 = vld [vmem:[#allocation6 + $0x2f0] sm:$0xff]
      %v2704 = vld [vmem:[#allocation6 + $0x2f8] sm:$0xff]
      %v2705 = vld [vmem:[#allocation6 + $0x300] sm:$0xff]
      %v2706 = vld [vmem:[#allocation6 + $0x308] sm:$0xff]
      %v2707 = vld [vmem:[#allocation6 + $0x310] sm:$0xff]
      %v2708 = vld [vmem:[#allocation6 + $0x318] sm:$0xff]
      %v2709 = vld [vmem:[#allocation6 + $0x320] sm:$0xff]
      %v2710 = vld [vmem:[#allocation6 + $0x328] sm:$0xff]
      %v2711 = vld [vmem:[#allocation6 + $0x330] sm:$0xff]
      %v2712 = vld [vmem:[#allocation6 + $0x338] sm:$0xff]
      %v2713 = vld [vmem:[#allocation6 + $0x340] sm:$0xff]
      %v2714 = vld [vmem:[#allocation6 + $0x348] sm:$0xff]
      %v2715 = vld [vmem:[#allocation6 + $0x350] sm:$0xff]
      %v2716 = vld [vmem:[#allocation6 + $0x358] sm:$0xff]
      %v2717 = vld [vmem:[#allocation6 + $0x360] sm:$0xff]
      %v2718 = vld [vmem:[#allocation6 + $0x368] sm:$0xff]
      %v2719 = vld [vmem:[#allocation6 + $0x370] sm:$0xff]
      %v2720 = vld [vmem:[#allocation6 + $0x378] sm:$0xff]
      %v2721 = vld [vmem:[#allocation6 + $0x380] sm:$0xff]
      %v2722 = vld [vmem:[#allocation6 + $0x388] sm:$0xff]
      %v2723 = vld [vmem:[#allocation6 + $0x390] sm:$0xff]
      %v2724 = vld [vmem:[#allocation6 + $0x398] sm:$0xff]
      %v2725 = vld [vmem:[#allocation6 + $0x3a0] sm:$0xff]
      %v2726 = vld [vmem:[#allocation6 + $0x3a8] sm:$0xff]
      %v2727 = vld [vmem:[#allocation6 + $0x3b0] sm:$0xff]
      %v2728 = vld [vmem:[#allocation6 + $0x3b8] sm:$0xff]
      %v2729 = vld [vmem:[#allocation6 + $0x3c0] sm:$0xff]
      %v2730 = vld [vmem:[#allocation6 + $0x3c8] sm:$0xff]
      %v2731 = vld [vmem:[#allocation6 + $0x3d0] sm:$0xff]
      %v2732 = vld [vmem:[#allocation6 + $0x3d8] sm:$0xff]
      %v2733 = vld [vmem:[#allocation6 + $0x3e0] sm:$0xff]
      %v2734 = vld [vmem:[#allocation6 + $0x3e8] sm:$0xff]
      %v2735 = vld [vmem:[#allocation6 + $0x3f0] sm:$0xff]
      %v2736 = vld [vmem:[#allocation6 + $0x3f8] sm:$0xff]
      %v2737 = vld [vmem:[#allocation6 + $0x400] sm:$0xff]
      %v2738 = vld [vmem:[#allocation6 + $0x408] sm:$0xff]
      %v2739 = vld [vmem:[#allocation6 + $0x410] sm:$0xff]
      %v2740 = vld [vmem:[#allocation6 + $0x418] sm:$0xff]
      %v2741 = vld [vmem:[#allocation6 + $0x420] sm:$0xff]
      %v2742 = vld [vmem:[#allocation6 + $0x428] sm:$0xff]
      %v2743 = vld [vmem:[#allocation6 + $0x430] sm:$0xff]
      %v2744 = vld [vmem:[#allocation6 + $0x438] sm:$0xff]
      %v2745 = vld [vmem:[#allocation6 + $0x440] sm:$0xff]
      %v2746 = vld [vmem:[#allocation6 + $0x448] sm:$0xff]
      %v2747 = vld [vmem:[#allocation6 + $0x450] sm:$0xff]
      %v2748 = vld [vmem:[#allocation6 + $0x458] sm:$0xff]
      %v2749 = vld [vmem:[#allocation6 + $0x460] sm:$0xff]
      %v2750 = vld [vmem:[#allocation6 + $0x468] sm:$0xff]
      %v2751 = vld [vmem:[#allocation6 + $0x470] sm:$0xff]
      %v2752 = vld [vmem:[#allocation6 + $0x478] sm:$0xff]
      %v2753 = vld [vmem:[#allocation6 + $0x480] sm:$0xff]
      %v2754 = vld [vmem:[#allocation6 + $0x488] sm:$0xff]
      %v2755 = vld [vmem:[#allocation6 + $0x490] sm:$0xff]
      %v2756 = vld [vmem:[#allocation6 + $0x498] sm:$0xff]
      %v2757 = vld [vmem:[#allocation6 + $0x4a0] sm:$0xff]
      %v2758 = vld [vmem:[#allocation6 + $0x4a8] sm:$0xff]
      %v2759 = vld [vmem:[#allocation6 + $0x4b0] sm:$0xff]
      %v2760 = vld [vmem:[#allocation6 + $0x4b8] sm:$0xff]
      %v2761 = vld [vmem:[#allocation6 + $0x4c0] sm:$0xff]
      %v2762 = vld [vmem:[#allocation6 + $0x4c8] sm:$0xff]
      %v2763 = vld [vmem:[#allocation6 + $0x4d0] sm:$0xff]
      %v2764 = vld [vmem:[#allocation6 + $0x4d8] sm:$0xff]
      %v2765 = vld [vmem:[#allocation6 + $0x4e0] sm:$0xff]
      %v2766 = vld [vmem:[#allocation6 + $0x4e8] sm:$0xff]
      %v2767 = vld [vmem:[#allocation6 + $0x4f0] sm:$0xff]
      %v2768 = vld [vmem:[#allocation6 + $0x4f8] sm:$0xff]
      %v2769 = vld [vmem:[#allocation6 + $0x500] sm:$0xff]
      %v2770 = vld [vmem:[#allocation6 + $0x508] sm:$0xff]
      %v2771 = vld [vmem:[#allocation6 + $0x510] sm:$0xff]
      %v2772 = vld [vmem:[#allocation6 + $0x518] sm:$0xff]
      %v2773 = vld [vmem:[#allocation6 + $0x520] sm:$0xff]
      %v2774 = vld [vmem:[#allocation6 + $0x528] sm:$0xff]
      %v2775 = vld [vmem:[#allocation6 + $0x530] sm:$0xff]
      %v2776 = vld [vmem:[#allocation6 + $0x538] sm:$0xff]
      %v2777 = vld [vmem:[#allocation6 + $0x540] sm:$0xff]
      %v2778 = vld [vmem:[#allocation6 + $0x548] sm:$0xff]
      %v2779 = vld [vmem:[#allocation6 + $0x550] sm:$0xff]
      %v2780 = vld [vmem:[#allocation6 + $0x558] sm:$0xff]
      %v2781 = vld [vmem:[#allocation6 + $0x560] sm:$0xff]
      %v2782 = vld [vmem:[#allocation6 + $0x568] sm:$0xff]
      %v2783 = vld [vmem:[#allocation6 + $0x570] sm:$0xff]
      %v2784 = vld [vmem:[#allocation6 + $0x578] sm:$0xff]
      %v2785 = vld [vmem:[#allocation6 + $0x580] sm:$0xff]
      %v2786 = vld [vmem:[#allocation6 + $0x588] sm:$0xff]
      %v2787 = vld [vmem:[#allocation6 + $0x590] sm:$0xff]
      %v2788 = vld [vmem:[#allocation6 + $0x598] sm:$0xff]
      %v2789 = vld [vmem:[#allocation6 + $0x5a0] sm:$0xff]
      %v2790 = vld [vmem:[#allocation6 + $0x5a8] sm:$0xff]
      %v2791 = vld [vmem:[#allocation6 + $0x5b0] sm:$0xff]
      %v2792 = vld [vmem:[#allocation6 + $0x5b8] sm:$0xff]
      %v2793 = vld [vmem:[#allocation6 + $0x5c0] sm:$0xff]
      %v2794 = vld [vmem:[#allocation6 + $0x5c8] sm:$0xff]
      %v2795 = vld [vmem:[#allocation6 + $0x5d0] sm:$0xff]
      %v2796 = vld [vmem:[#allocation6 + $0x5d8] sm:$0xff]
      %v2797 = vld [vmem:[#allocation6 + $0x5e0] sm:$0xff]
      %v2798 = vld [vmem:[#allocation6 + $0x5e8] sm:$0xff]
      %v2799 = vld [vmem:[#allocation6 + $0x5f0] sm:$0xff]
      %v2800 = vld [vmem:[#allocation6 + $0x5f8] sm:$0xff]
      %v2801 = vld [vmem:[#allocation6 + $0x600] sm:$0xff]
      %v2802 = vld [vmem:[#allocation6 + $0x608] sm:$0xff]
      %v2803 = vld [vmem:[#allocation6 + $0x610] sm:$0xff]
      %v2804 = vld [vmem:[#allocation6 + $0x618] sm:$0xff]
      %v2805 = vld [vmem:[#allocation6 + $0x620] sm:$0xff]
      %v2806 = vld [vmem:[#allocation6 + $0x628] sm:$0xff]
      %v2807 = vld [vmem:[#allocation6 + $0x630] sm:$0xff]
      %v2808 = vld [vmem:[#allocation6 + $0x638] sm:$0xff]
      %v2809 = vld [vmem:[#allocation6 + $0x640] sm:$0xff]
      %v2810 = vld [vmem:[#allocation6 + $0x648] sm:$0xff]
      %v2811 = vld [vmem:[#allocation6 + $0x650] sm:$0xff]
      %v2812 = vld [vmem:[#allocation6 + $0x658] sm:$0xff]
      %v2813 = vld [vmem:[#allocation6 + $0x660] sm:$0xff]
      %v2814 = vld [vmem:[#allocation6 + $0x668] sm:$0xff]
      %v2815 = vld [vmem:[#allocation6 + $0x670] sm:$0xff]
      %v2816 = vld [vmem:[#allocation6 + $0x678] sm:$0xff]
      %v2817 = vld [vmem:[#allocation6 + $0x680] sm:$0xff]
      %v2818 = vld [vmem:[#allocation6 + $0x688] sm:$0xff]
      %v2819 = vld [vmem:[#allocation6 + $0x690] sm:$0xff]
      %v2820 = vld [vmem:[#allocation6 + $0x698] sm:$0xff]
      %v2821 = vld [vmem:[#allocation6 + $0x6a0] sm:$0xff]
      %v2822 = vld [vmem:[#allocation6 + $0x6a8] sm:$0xff]
      %v2823 = vld [vmem:[#allocation6 + $0x6b0] sm:$0xff]
      %v2824 = vld [vmem:[#allocation6 + $0x6b8] sm:$0xff]
      %v2825 = vld [vmem:[#allocation6 + $0x6c0] sm:$0xff]
      %v2826 = vld [vmem:[#allocation6 + $0x6c8] sm:$0xff]
      %v2827 = vld [vmem:[#allocation6 + $0x6d0] sm:$0xff]
      %v2828 = vld [vmem:[#allocation6 + $0x6d8] sm:$0xff]
      %v2829 = vld [vmem:[#allocation6 + $0x6e0] sm:$0xff]
      %v2830 = vld [vmem:[#allocation6 + $0x6e8] sm:$0xff]
      %v2831 = vld [vmem:[#allocation6 + $0x6f0] sm:$0xff]
      %v2832 = vld [vmem:[#allocation6 + $0x6f8] sm:$0xff]
      %v2833 = vld [vmem:[#allocation6 + $0x700] sm:$0xff]
      %v2834 = vld [vmem:[#allocation6 + $0x708] sm:$0xff]
      %v2835 = vld [vmem:[#allocation6 + $0x710] sm:$0xff]
      %v2836 = vld [vmem:[#allocation6 + $0x718] sm:$0xff]
      %v2837 = vld [vmem:[#allocation6 + $0x720] sm:$0xff]
      %v2838 = vld [vmem:[#allocation6 + $0x728] sm:$0xff]
      %v2839 = vld [vmem:[#allocation6 + $0x730] sm:$0xff]
      %v2840 = vld [vmem:[#allocation6 + $0x738] sm:$0xff]
      %v2841 = vld [vmem:[#allocation6 + $0x740] sm:$0xff]
      %v2842 = vld [vmem:[#allocation6 + $0x748] sm:$0xff]
      %v2843 = vld [vmem:[#allocation6 + $0x750] sm:$0xff]
      %v2844 = vld [vmem:[#allocation6 + $0x758] sm:$0xff]
      %v2845 = vld [vmem:[#allocation6 + $0x760] sm:$0xff]
      %v2846 = vld [vmem:[#allocation6 + $0x768] sm:$0xff]
      %v2847 = vld [vmem:[#allocation6 + $0x770] sm:$0xff]
      %v2848 = vld [vmem:[#allocation6 + $0x778] sm:$0xff]
      %v2849 = vld [vmem:[#allocation6 + $0x780] sm:$0xff]
      %v2850 = vld [vmem:[#allocation6 + $0x788] sm:$0xff]
      %v2851 = vld [vmem:[#allocation6 + $0x790] sm:$0xff]
      %v2852 = vld [vmem:[#allocation6 + $0x798] sm:$0xff]
      %v2853 = vld [vmem:[#allocation6 + $0x7a0] sm:$0xff]
      %v2854 = vld [vmem:[#allocation6 + $0x7a8] sm:$0xff]
      %v2855 = vld [vmem:[#allocation6 + $0x7b0] sm:$0xff]
      %v2856 = vld [vmem:[#allocation6 + $0x7b8] sm:$0xff]
      %v2857 = vld [vmem:[#allocation6 + $0x7c0] sm:$0xff]
      %v2858 = vld [vmem:[#allocation6 + $0x7c8] sm:$0xff]
      %v2859 = vld [vmem:[#allocation6 + $0x7d0] sm:$0xff]
      %v2860 = vld [vmem:[#allocation6 + $0x7d8] sm:$0xff]
      %v2861 = vld [vmem:[#allocation6 + $0x7e0] sm:$0xff]
      %v2862 = vld [vmem:[#allocation6 + $0x7e8] sm:$0xff]
      %v2863 = vld [vmem:[#allocation6 + $0x7f0] sm:$0xff]
      %v2864 = vld [vmem:[#allocation6 + $0x7f8] sm:$0xff]
      %v2865 = vld [vmem:[%s6] sm:$0xf]
      %v2867 = vlaneseq
      %v2868 = vshrl.u32 %v2867, 7
      %v2869 = vsub.s32 0, %v2868
      %v2870 = vrot.slane %v2865, %v2869
      %v2871 = vlaneseq
      %v2872 = vshrl.u32 %v2871, 7
      %v2873 = vsub.s32 1, %v2872
      %v2874 = vrot.slane %v2865, %v2873
      %v2875 = vlaneseq
      %v2876 = vshrl.u32 %v2875, 7
      %v2877 = vsub.s32 2, %v2876
      %v2878 = vrot.slane %v2865, %v2877
      %v2879 = vlaneseq
      %v2880 = vshrl.u32 %v2879, 7
      %v2881 = vsub.s32 3, %v2880
      %v2882 = vrot.slane %v2865, %v2881
      %v3143 = vunpack.c.l.b16 %v2609
      %v3144 = vunpack.c.h.b16 %v2609
      %v3145 = vunpack.c.l.b16 %v2610
      %v3146 = vunpack.c.h.b16 %v2610
      %v3147 = vunpack.c.l.b16 %v2611
      %v3148 = vunpack.c.h.b16 %v2611
      %v3149 = vunpack.c.l.b16 %v2612
      %v3150 = vunpack.c.h.b16 %v2612
      %v3151 = vunpack.c.l.b16 %v2613
      %v3152 = vunpack.c.h.b16 %v2613
      %v3153 = vunpack.c.l.b16 %v2614
      %v3154 = vunpack.c.h.b16 %v2614
      %v3155 = vunpack.c.l.b16 %v2615
      %v3156 = vunpack.c.h.b16 %v2615
      %v3157 = vunpack.c.l.b16 %v2616
      %v3158 = vunpack.c.h.b16 %v2616
      %v3159 = vunpack.c.l.b16 %v2617
      %v3160 = vunpack.c.h.b16 %v2617
      %v3161 = vunpack.c.l.b16 %v2618
      %v3162 = vunpack.c.h.b16 %v2618
      %v3163 = vunpack.c.l.b16 %v2619
      %v3164 = vunpack.c.h.b16 %v2619
      %v3165 = vunpack.c.l.b16 %v2620
      %v3166 = vunpack.c.h.b16 %v2620
      %v3167 = vunpack.c.l.b16 %v2621
      %v3168 = vunpack.c.h.b16 %v2621
      %v3169 = vunpack.c.l.b16 %v2622
      %v3170 = vunpack.c.h.b16 %v2622
      %v3171 = vunpack.c.l.b16 %v2623
      %v3172 = vunpack.c.h.b16 %v2623
      %v3173 = vunpack.c.l.b16 %v2624
      %v3174 = vunpack.c.h.b16 %v2624
      %v3175 = vunpack.c.l.b16 %v2625
      %v3176 = vunpack.c.h.b16 %v2625
      %v3177 = vunpack.c.l.b16 %v2626
      %v3178 = vunpack.c.h.b16 %v2626
      %v3179 = vunpack.c.l.b16 %v2627
      %v3180 = vunpack.c.h.b16 %v2627
      %v3181 = vunpack.c.l.b16 %v2628
      %v3182 = vunpack.c.h.b16 %v2628
      %v3183 = vunpack.c.l.b16 %v2629
      %v3184 = vunpack.c.h.b16 %v2629
      %v3185 = vunpack.c.l.b16 %v2630
      %v3186 = vunpack.c.h.b16 %v2630
      %v3187 = vunpack.c.l.b16 %v2631
      %v3188 = vunpack.c.h.b16 %v2631
      %v3189 = vunpack.c.l.b16 %v2632
      %v3190 = vunpack.c.h.b16 %v2632
      %v3191 = vunpack.c.l.b16 %v2633
      %v3192 = vunpack.c.h.b16 %v2633
      %v3193 = vunpack.c.l.b16 %v2634
      %v3194 = vunpack.c.h.b16 %v2634
      %v3195 = vunpack.c.l.b16 %v2635
      %v3196 = vunpack.c.h.b16 %v2635
      %v3197 = vunpack.c.l.b16 %v2636
      %v3198 = vunpack.c.h.b16 %v2636
      %v3199 = vunpack.c.l.b16 %v2637
      %v3200 = vunpack.c.h.b16 %v2637
      %v3201 = vunpack.c.l.b16 %v2638
      %v3202 = vunpack.c.h.b16 %v2638
      %v3203 = vunpack.c.l.b16 %v2639
      %v3204 = vunpack.c.h.b16 %v2639
      %v3205 = vunpack.c.l.b16 %v2640
      %v3206 = vunpack.c.h.b16 %v2640
      %v3207 = vunpack.c.l.b16 %v2641
      %v3208 = vunpack.c.h.b16 %v2641
      %v3209 = vunpack.c.l.b16 %v2642
      %v3210 = vunpack.c.h.b16 %v2642
      %v3211 = vunpack.c.l.b16 %v2643
      %v3212 = vunpack.c.h.b16 %v2643
      %v3213 = vunpack.c.l.b16 %v2644
      %v3214 = vunpack.c.h.b16 %v2644
      %v3215 = vunpack.c.l.b16 %v2645
      %v3216 = vunpack.c.h.b16 %v2645
      %v3217 = vunpack.c.l.b16 %v2646
      %v3218 = vunpack.c.h.b16 %v2646
      %v3219 = vunpack.c.l.b16 %v2647
      %v3220 = vunpack.c.h.b16 %v2647
      %v3221 = vunpack.c.l.b16 %v2648
      %v3222 = vunpack.c.h.b16 %v2648
      %v3223 = vunpack.c.l.b16 %v2649
      %v3224 = vunpack.c.h.b16 %v2649
      %v3225 = vunpack.c.l.b16 %v2650
      %v3226 = vunpack.c.h.b16 %v2650
      %v3227 = vunpack.c.l.b16 %v2651
      %v3228 = vunpack.c.h.b16 %v2651
      %v3229 = vunpack.c.l.b16 %v2652
      %v3230 = vunpack.c.h.b16 %v2652
      %v3231 = vunpack.c.l.b16 %v2653
      %v3232 = vunpack.c.h.b16 %v2653
      %v3233 = vunpack.c.l.b16 %v2654
      %v3234 = vunpack.c.h.b16 %v2654
      %v3235 = vunpack.c.l.b16 %v2655
      %v3236 = vunpack.c.h.b16 %v2655
      %v3237 = vunpack.c.l.b16 %v2656
      %v3238 = vunpack.c.h.b16 %v2656
      %v3239 = vunpack.c.l.b16 %v2657
      %v3240 = vunpack.c.h.b16 %v2657
      %v3241 = vunpack.c.l.b16 %v2658
      %v3242 = vunpack.c.h.b16 %v2658
      %v3243 = vunpack.c.l.b16 %v2659
      %v3244 = vunpack.c.h.b16 %v2659
      %v3245 = vunpack.c.l.b16 %v2660
      %v3246 = vunpack.c.h.b16 %v2660
      %v3247 = vunpack.c.l.b16 %v2661
      %v3248 = vunpack.c.h.b16 %v2661
      %v3249 = vunpack.c.l.b16 %v2662
      %v3250 = vunpack.c.h.b16 %v2662
      %v3251 = vunpack.c.l.b16 %v2663
      %v3252 = vunpack.c.h.b16 %v2663
      %v3253 = vunpack.c.l.b16 %v2664
      %v3254 = vunpack.c.h.b16 %v2664
      %v3255 = vunpack.c.l.b16 %v2665
      %v3256 = vunpack.c.h.b16 %v2665
      %v3257 = vunpack.c.l.b16 %v2666
      %v3258 = vunpack.c.h.b16 %v2666
      %v3259 = vunpack.c.l.b16 %v2667
      %v3260 = vunpack.c.h.b16 %v2667
      %v3261 = vunpack.c.l.b16 %v2668
      %v3262 = vunpack.c.h.b16 %v2668
      %v3263 = vunpack.c.l.b16 %v2669
      %v3264 = vunpack.c.h.b16 %v2669
      %v3265 = vunpack.c.l.b16 %v2670
      %v3266 = vunpack.c.h.b16 %v2670
      %v3267 = vunpack.c.l.b16 %v2671
      %v3268 = vunpack.c.h.b16 %v2671
      %v3269 = vunpack.c.l.b16 %v2672
      %v3270 = vunpack.c.h.b16 %v2672
      %v3271 = vunpack.c.l.b16 %v2673
      %v3272 = vunpack.c.h.b16 %v2673
      %v3273 = vunpack.c.l.b16 %v2674
      %v3274 = vunpack.c.h.b16 %v2674
      %v3275 = vunpack.c.l.b16 %v2675
      %v3276 = vunpack.c.h.b16 %v2675
      %v3277 = vunpack.c.l.b16 %v2676
      %v3278 = vunpack.c.h.b16 %v2676
      %v3279 = vunpack.c.l.b16 %v2677
      %v3280 = vunpack.c.h.b16 %v2677
      %v3281 = vunpack.c.l.b16 %v2678
      %v3282 = vunpack.c.h.b16 %v2678
      %v3283 = vunpack.c.l.b16 %v2679
      %v3284 = vunpack.c.h.b16 %v2679
      %v3285 = vunpack.c.l.b16 %v2680
      %v3286 = vunpack.c.h.b16 %v2680
      %v3287 = vunpack.c.l.b16 %v2681
      %v3288 = vunpack.c.h.b16 %v2681
      %v3289 = vunpack.c.l.b16 %v2682
      %v3290 = vunpack.c.h.b16 %v2682
      %v3291 = vunpack.c.l.b16 %v2683
      %v3292 = vunpack.c.h.b16 %v2683
      %v3293 = vunpack.c.l.b16 %v2684
      %v3294 = vunpack.c.h.b16 %v2684
      %v3295 = vunpack.c.l.b16 %v2685
      %v3296 = vunpack.c.h.b16 %v2685
      %v3297 = vunpack.c.l.b16 %v2686
      %v3298 = vunpack.c.h.b16 %v2686
      %v3299 = vunpack.c.l.b16 %v2687
      %v3300 = vunpack.c.h.b16 %v2687
      %v3301 = vunpack.c.l.b16 %v2688
      %v3302 = vunpack.c.h.b16 %v2688
      %v3303 = vunpack.c.l.b16 %v2689
      %v3304 = vunpack.c.h.b16 %v2689
      %v3305 = vunpack.c.l.b16 %v2690
      %v3306 = vunpack.c.h.b16 %v2690
      %v3307 = vunpack.c.l.b16 %v2691
      %v3308 = vunpack.c.h.b16 %v2691
      %v3309 = vunpack.c.l.b16 %v2692
      %v3310 = vunpack.c.h.b16 %v2692
      %v3311 = vunpack.c.l.b16 %v2693
      %v3312 = vunpack.c.h.b16 %v2693
      %v3313 = vunpack.c.l.b16 %v2694
      %v3314 = vunpack.c.h.b16 %v2694
      %v3315 = vunpack.c.l.b16 %v2695
      %v3316 = vunpack.c.h.b16 %v2695
      %v3317 = vunpack.c.l.b16 %v2696
      %v3318 = vunpack.c.h.b16 %v2696
      %v3319 = vunpack.c.l.b16 %v2697
      %v3320 = vunpack.c.h.b16 %v2697
      %v3321 = vunpack.c.l.b16 %v2698
      %v3322 = vunpack.c.h.b16 %v2698
      %v3323 = vunpack.c.l.b16 %v2699
      %v3324 = vunpack.c.h.b16 %v2699
      %v3325 = vunpack.c.l.b16 %v2700
      %v3326 = vunpack.c.h.b16 %v2700
      %v3327 = vunpack.c.l.b16 %v2701
      %v3328 = vunpack.c.h.b16 %v2701
      %v3329 = vunpack.c.l.b16 %v2702
      %v3330 = vunpack.c.h.b16 %v2702
      %v3331 = vunpack.c.l.b16 %v2703
      %v3332 = vunpack.c.h.b16 %v2703
      %v3333 = vunpack.c.l.b16 %v2704
      %v3334 = vunpack.c.h.b16 %v2704
      %v3335 = vunpack.c.l.b16 %v2705
      %v3336 = vunpack.c.h.b16 %v2705
      %v3337 = vunpack.c.l.b16 %v2706
      %v3338 = vunpack.c.h.b16 %v2706
      %v3339 = vunpack.c.l.b16 %v2707
      %v3340 = vunpack.c.h.b16 %v2707
      %v3341 = vunpack.c.l.b16 %v2708
      %v3342 = vunpack.c.h.b16 %v2708
      %v3343 = vunpack.c.l.b16 %v2709
      %v3344 = vunpack.c.h.b16 %v2709
      %v3345 = vunpack.c.l.b16 %v2710
      %v3346 = vunpack.c.h.b16 %v2710
      %v3347 = vunpack.c.l.b16 %v2711
      %v3348 = vunpack.c.h.b16 %v2711
      %v3349 = vunpack.c.l.b16 %v2712
      %v3350 = vunpack.c.h.b16 %v2712
      %v3351 = vunpack.c.l.b16 %v2713
      %v3352 = vunpack.c.h.b16 %v2713
      %v3353 = vunpack.c.l.b16 %v2714
      %v3354 = vunpack.c.h.b16 %v2714
      %v3355 = vunpack.c.l.b16 %v2715
      %v3356 = vunpack.c.h.b16 %v2715
      %v3357 = vunpack.c.l.b16 %v2716
      %v3358 = vunpack.c.h.b16 %v2716
      %v3359 = vunpack.c.l.b16 %v2717
      %v3360 = vunpack.c.h.b16 %v2717
      %v3361 = vunpack.c.l.b16 %v2718
      %v3362 = vunpack.c.h.b16 %v2718
      %v3363 = vunpack.c.l.b16 %v2719
      %v3364 = vunpack.c.h.b16 %v2719
      %v3365 = vunpack.c.l.b16 %v2720
      %v3366 = vunpack.c.h.b16 %v2720
      %v3367 = vunpack.c.l.b16 %v2721
      %v3368 = vunpack.c.h.b16 %v2721
      %v3369 = vunpack.c.l.b16 %v2722
      %v3370 = vunpack.c.h.b16 %v2722
      %v3371 = vunpack.c.l.b16 %v2723
      %v3372 = vunpack.c.h.b16 %v2723
      %v3373 = vunpack.c.l.b16 %v2724
      %v3374 = vunpack.c.h.b16 %v2724
      %v3375 = vunpack.c.l.b16 %v2725
      %v3376 = vunpack.c.h.b16 %v2725
      %v3377 = vunpack.c.l.b16 %v2726
      %v3378 = vunpack.c.h.b16 %v2726
      %v3379 = vunpack.c.l.b16 %v2727
      %v3380 = vunpack.c.h.b16 %v2727
      %v3381 = vunpack.c.l.b16 %v2728
      %v3382 = vunpack.c.h.b16 %v2728
      %v3383 = vunpack.c.l.b16 %v2729
      %v3384 = vunpack.c.h.b16 %v2729
      %v3385 = vunpack.c.l.b16 %v2730
      %v3386 = vunpack.c.h.b16 %v2730
      %v3387 = vunpack.c.l.b16 %v2731
      %v3388 = vunpack.c.h.b16 %v2731
      %v3389 = vunpack.c.l.b16 %v2732
      %v3390 = vunpack.c.h.b16 %v2732
      %v3391 = vunpack.c.l.b16 %v2733
      %v3392 = vunpack.c.h.b16 %v2733
      %v3393 = vunpack.c.l.b16 %v2734
      %v3394 = vunpack.c.h.b16 %v2734
      %v3395 = vunpack.c.l.b16 %v2735
      %v3396 = vunpack.c.h.b16 %v2735
      %v3397 = vunpack.c.l.b16 %v2736
      %v3398 = vunpack.c.h.b16 %v2736
      %v3399 = vunpack.c.l.b16 %v2737
      %v3400 = vunpack.c.h.b16 %v2737
      %v3401 = vunpack.c.l.b16 %v2738
      %v3402 = vunpack.c.h.b16 %v2738
      %v3403 = vunpack.c.l.b16 %v2739
      %v3404 = vunpack.c.h.b16 %v2739
      %v3405 = vunpack.c.l.b16 %v2740
      %v3406 = vunpack.c.h.b16 %v2740
      %v3407 = vunpack.c.l.b16 %v2741
      %v3408 = vunpack.c.h.b16 %v2741
      %v3409 = vunpack.c.l.b16 %v2742
      %v3410 = vunpack.c.h.b16 %v2742
      %v3411 = vunpack.c.l.b16 %v2743
      %v3412 = vunpack.c.h.b16 %v2743
      %v3413 = vunpack.c.l.b16 %v2744
      %v3414 = vunpack.c.h.b16 %v2744
      %v3415 = vunpack.c.l.b16 %v2745
      %v3416 = vunpack.c.h.b16 %v2745
      %v3417 = vunpack.c.l.b16 %v2746
      %v3418 = vunpack.c.h.b16 %v2746
      %v3419 = vunpack.c.l.b16 %v2747
      %v3420 = vunpack.c.h.b16 %v2747
      %v3421 = vunpack.c.l.b16 %v2748
      %v3422 = vunpack.c.h.b16 %v2748
      %v3423 = vunpack.c.l.b16 %v2749
      %v3424 = vunpack.c.h.b16 %v2749
      %v3425 = vunpack.c.l.b16 %v2750
      %v3426 = vunpack.c.h.b16 %v2750
      %v3427 = vunpack.c.l.b16 %v2751
      %v3428 = vunpack.c.h.b16 %v2751
      %v3429 = vunpack.c.l.b16 %v2752
      %v3430 = vunpack.c.h.b16 %v2752
      %v3431 = vunpack.c.l.b16 %v2753
      %v3432 = vunpack.c.h.b16 %v2753
      %v3433 = vunpack.c.l.b16 %v2754
      %v3434 = vunpack.c.h.b16 %v2754
      %v3435 = vunpack.c.l.b16 %v2755
      %v3436 = vunpack.c.h.b16 %v2755
      %v3437 = vunpack.c.l.b16 %v2756
      %v3438 = vunpack.c.h.b16 %v2756
      %v3439 = vunpack.c.l.b16 %v2757
      %v3440 = vunpack.c.h.b16 %v2757
      %v3441 = vunpack.c.l.b16 %v2758
      %v3442 = vunpack.c.h.b16 %v2758
      %v3443 = vunpack.c.l.b16 %v2759
      %v3444 = vunpack.c.h.b16 %v2759
      %v3445 = vunpack.c.l.b16 %v2760
      %v3446 = vunpack.c.h.b16 %v2760
      %v3447 = vunpack.c.l.b16 %v2761
      %v3448 = vunpack.c.h.b16 %v2761
      %v3449 = vunpack.c.l.b16 %v2762
      %v3450 = vunpack.c.h.b16 %v2762
      %v3451 = vunpack.c.l.b16 %v2763
      %v3452 = vunpack.c.h.b16 %v2763
      %v3453 = vunpack.c.l.b16 %v2764
      %v3454 = vunpack.c.h.b16 %v2764
      %v3455 = vunpack.c.l.b16 %v2765
      %v3456 = vunpack.c.h.b16 %v2765
      %v3457 = vunpack.c.l.b16 %v2766
      %v3458 = vunpack.c.h.b16 %v2766
      %v3459 = vunpack.c.l.b16 %v2767
      %v3460 = vunpack.c.h.b16 %v2767
      %v3461 = vunpack.c.l.b16 %v2768
      %v3462 = vunpack.c.h.b16 %v2768
      %v3463 = vunpack.c.l.b16 %v2769
      %v3464 = vunpack.c.h.b16 %v2769
      %v3465 = vunpack.c.l.b16 %v2770
      %v3466 = vunpack.c.h.b16 %v2770
      %v3467 = vunpack.c.l.b16 %v2771
      %v3468 = vunpack.c.h.b16 %v2771
      %v3469 = vunpack.c.l.b16 %v2772
      %v3470 = vunpack.c.h.b16 %v2772
      %v3471 = vunpack.c.l.b16 %v2773
      %v3472 = vunpack.c.h.b16 %v2773
      %v3473 = vunpack.c.l.b16 %v2774
      %v3474 = vunpack.c.h.b16 %v2774
      %v3475 = vunpack.c.l.b16 %v2775
      %v3476 = vunpack.c.h.b16 %v2775
      %v3477 = vunpack.c.l.b16 %v2776
      %v3478 = vunpack.c.h.b16 %v2776
      %v3479 = vunpack.c.l.b16 %v2777
      %v3480 = vunpack.c.h.b16 %v2777
      %v3481 = vunpack.c.l.b16 %v2778
      %v3482 = vunpack.c.h.b16 %v2778
      %v3483 = vunpack.c.l.b16 %v2779
      %v3484 = vunpack.c.h.b16 %v2779
      %v3485 = vunpack.c.l.b16 %v2780
      %v3486 = vunpack.c.h.b16 %v2780
      %v3487 = vunpack.c.l.b16 %v2781
      %v3488 = vunpack.c.h.b16 %v2781
      %v3489 = vunpack.c.l.b16 %v2782
      %v3490 = vunpack.c.h.b16 %v2782
      %v3491 = vunpack.c.l.b16 %v2783
      %v3492 = vunpack.c.h.b16 %v2783
      %v3493 = vunpack.c.l.b16 %v2784
      %v3494 = vunpack.c.h.b16 %v2784
      %v3495 = vunpack.c.l.b16 %v2785
      %v3496 = vunpack.c.h.b16 %v2785
      %v3497 = vunpack.c.l.b16 %v2786
      %v3498 = vunpack.c.h.b16 %v2786
      %v3499 = vunpack.c.l.b16 %v2787
      %v3500 = vunpack.c.h.b16 %v2787
      %v3501 = vunpack.c.l.b16 %v2788
      %v3502 = vunpack.c.h.b16 %v2788
      %v3503 = vunpack.c.l.b16 %v2789
      %v3504 = vunpack.c.h.b16 %v2789
      %v3505 = vunpack.c.l.b16 %v2790
      %v3506 = vunpack.c.h.b16 %v2790
      %v3507 = vunpack.c.l.b16 %v2791
      %v3508 = vunpack.c.h.b16 %v2791
      %v3509 = vunpack.c.l.b16 %v2792
      %v3510 = vunpack.c.h.b16 %v2792
      %v3511 = vunpack.c.l.b16 %v2793
      %v3512 = vunpack.c.h.b16 %v2793
      %v3513 = vunpack.c.l.b16 %v2794
      %v3514 = vunpack.c.h.b16 %v2794
      %v3515 = vunpack.c.l.b16 %v2795
      %v3516 = vunpack.c.h.b16 %v2795
      %v3517 = vunpack.c.l.b16 %v2796
      %v3518 = vunpack.c.h.b16 %v2796
      %v3519 = vunpack.c.l.b16 %v2797
      %v3520 = vunpack.c.h.b16 %v2797
      %v3521 = vunpack.c.l.b16 %v2798
      %v3522 = vunpack.c.h.b16 %v2798
      %v3523 = vunpack.c.l.b16 %v2799
      %v3524 = vunpack.c.h.b16 %v2799
      %v3525 = vunpack.c.l.b16 %v2800
      %v3526 = vunpack.c.h.b16 %v2800
      %v3527 = vunpack.c.l.b16 %v2801
      %v3528 = vunpack.c.h.b16 %v2801
      %v3529 = vunpack.c.l.b16 %v2802
      %v3530 = vunpack.c.h.b16 %v2802
      %v3531 = vunpack.c.l.b16 %v2803
      %v3532 = vunpack.c.h.b16 %v2803
      %v3533 = vunpack.c.l.b16 %v2804
      %v3534 = vunpack.c.h.b16 %v2804
      %v3535 = vunpack.c.l.b16 %v2805
      %v3536 = vunpack.c.h.b16 %v2805
      %v3537 = vunpack.c.l.b16 %v2806
      %v3538 = vunpack.c.h.b16 %v2806
      %v3539 = vunpack.c.l.b16 %v2807
      %v3540 = vunpack.c.h.b16 %v2807
      %v3541 = vunpack.c.l.b16 %v2808
      %v3542 = vunpack.c.h.b16 %v2808
      %v3543 = vunpack.c.l.b16 %v2809
      %v3544 = vunpack.c.h.b16 %v2809
      %v3545 = vunpack.c.l.b16 %v2810
      %v3546 = vunpack.c.h.b16 %v2810
      %v3547 = vunpack.c.l.b16 %v2811
      %v3548 = vunpack.c.h.b16 %v2811
      %v3549 = vunpack.c.l.b16 %v2812
      %v3550 = vunpack.c.h.b16 %v2812
      %v3551 = vunpack.c.l.b16 %v2813
      %v3552 = vunpack.c.h.b16 %v2813
      %v3553 = vunpack.c.l.b16 %v2814
      %v3554 = vunpack.c.h.b16 %v2814
      %v3555 = vunpack.c.l.b16 %v2815
      %v3556 = vunpack.c.h.b16 %v2815
      %v3557 = vunpack.c.l.b16 %v2816
      %v3558 = vunpack.c.h.b16 %v2816
      %v3559 = vunpack.c.l.b16 %v2817
      %v3560 = vunpack.c.h.b16 %v2817
      %v3561 = vunpack.c.l.b16 %v2818
      %v3562 = vunpack.c.h.b16 %v2818
      %v3563 = vunpack.c.l.b16 %v2819
      %v3564 = vunpack.c.h.b16 %v2819
      %v3565 = vunpack.c.l.b16 %v2820
      %v3566 = vunpack.c.h.b16 %v2820
      %v3567 = vunpack.c.l.b16 %v2821
      %v3568 = vunpack.c.h.b16 %v2821
      %v3569 = vunpack.c.l.b16 %v2822
      %v3570 = vunpack.c.h.b16 %v2822
      %v3571 = vunpack.c.l.b16 %v2823
      %v3572 = vunpack.c.h.b16 %v2823
      %v3573 = vunpack.c.l.b16 %v2824
      %v3574 = vunpack.c.h.b16 %v2824
      %v3575 = vunpack.c.l.b16 %v2825
      %v3576 = vunpack.c.h.b16 %v2825
      %v3577 = vunpack.c.l.b16 %v2826
      %v3578 = vunpack.c.h.b16 %v2826
      %v3579 = vunpack.c.l.b16 %v2827
      %v3580 = vunpack.c.h.b16 %v2827
      %v3581 = vunpack.c.l.b16 %v2828
      %v3582 = vunpack.c.h.b16 %v2828
      %v3583 = vunpack.c.l.b16 %v2829
      %v3584 = vunpack.c.h.b16 %v2829
      %v3585 = vunpack.c.l.b16 %v2830
      %v3586 = vunpack.c.h.b16 %v2830
      %v3587 = vunpack.c.l.b16 %v2831
      %v3588 = vunpack.c.h.b16 %v2831
      %v3589 = vunpack.c.l.b16 %v2832
      %v3590 = vunpack.c.h.b16 %v2832
      %v3591 = vunpack.c.l.b16 %v2833
      %v3592 = vunpack.c.h.b16 %v2833
      %v3593 = vunpack.c.l.b16 %v2834
      %v3594 = vunpack.c.h.b16 %v2834
      %v3595 = vunpack.c.l.b16 %v2835
      %v3596 = vunpack.c.h.b16 %v2835
      %v3597 = vunpack.c.l.b16 %v2836
      %v3598 = vunpack.c.h.b16 %v2836
      %v3599 = vunpack.c.l.b16 %v2837
      %v3600 = vunpack.c.h.b16 %v2837
      %v3601 = vunpack.c.l.b16 %v2838
      %v3602 = vunpack.c.h.b16 %v2838
      %v3603 = vunpack.c.l.b16 %v2839
      %v3604 = vunpack.c.h.b16 %v2839
      %v3605 = vunpack.c.l.b16 %v2840
      %v3606 = vunpack.c.h.b16 %v2840
      %v3607 = vunpack.c.l.b16 %v2841
      %v3608 = vunpack.c.h.b16 %v2841
      %v3609 = vunpack.c.l.b16 %v2842
      %v3610 = vunpack.c.h.b16 %v2842
      %v3611 = vunpack.c.l.b16 %v2843
      %v3612 = vunpack.c.h.b16 %v2843
      %v3613 = vunpack.c.l.b16 %v2844
      %v3614 = vunpack.c.h.b16 %v2844
      %v3615 = vunpack.c.l.b16 %v2845
      %v3616 = vunpack.c.h.b16 %v2845
      %v3617 = vunpack.c.l.b16 %v2846
      %v3618 = vunpack.c.h.b16 %v2846
      %v3619 = vunpack.c.l.b16 %v2847
      %v3620 = vunpack.c.h.b16 %v2847
      %v3621 = vunpack.c.l.b16 %v2848
      %v3622 = vunpack.c.h.b16 %v2848
      %v3623 = vunpack.c.l.b16 %v2849
      %v3624 = vunpack.c.h.b16 %v2849
      %v3625 = vunpack.c.l.b16 %v2850
      %v3626 = vunpack.c.h.b16 %v2850
      %v3627 = vunpack.c.l.b16 %v2851
      %v3628 = vunpack.c.h.b16 %v2851
      %v3629 = vunpack.c.l.b16 %v2852
      %v3630 = vunpack.c.h.b16 %v2852
      %v3631 = vunpack.c.l.b16 %v2853
      %v3632 = vunpack.c.h.b16 %v2853
      %v3633 = vunpack.c.l.b16 %v2854
      %v3634 = vunpack.c.h.b16 %v2854
      %v3635 = vunpack.c.l.b16 %v2855
      %v3636 = vunpack.c.h.b16 %v2855
      %v3637 = vunpack.c.l.b16 %v2856
      %v3638 = vunpack.c.h.b16 %v2856
      %v3639 = vunpack.c.l.b16 %v2857
      %v3640 = vunpack.c.h.b16 %v2857
      %v3641 = vunpack.c.l.b16 %v2858
      %v3642 = vunpack.c.h.b16 %v2858
      %v3643 = vunpack.c.l.b16 %v2859
      %v3644 = vunpack.c.h.b16 %v2859
      %v3645 = vunpack.c.l.b16 %v2860
      %v3646 = vunpack.c.h.b16 %v2860
      %v3647 = vunpack.c.l.b16 %v2861
      %v3648 = vunpack.c.h.b16 %v2861
      %v3649 = vunpack.c.l.b16 %v2862
      %v3650 = vunpack.c.h.b16 %v2862
      %v3651 = vunpack.c.l.b16 %v2863
      %v3652 = vunpack.c.h.b16 %v2863
      %v3653 = vunpack.c.l.b16 %v2864
      %v3654 = vunpack.c.h.b16 %v2864
      %v3655 = vpack.c.b16 %v3147, %v3143
      %v3656 = vpack.c.b16 %v3148, %v3144
      %v3657 = vpack.c.b16 %v3149, %v3145
      %v3658 = vpack.c.b16 %v3150, %v3146
      %v3659 = vpack.c.b16 %v3155, %v3151
      %v3660 = vpack.c.b16 %v3156, %v3152
      %v3661 = vpack.c.b16 %v3157, %v3153
      %v3662 = vpack.c.b16 %v3158, %v3154
      %v3663 = vpack.c.b16 %v3163, %v3159
      %v3664 = vpack.c.b16 %v3164, %v3160
      %v3665 = vpack.c.b16 %v3165, %v3161
      %v3666 = vpack.c.b16 %v3166, %v3162
      %v3667 = vpack.c.b16 %v3171, %v3167
      %v3668 = vpack.c.b16 %v3172, %v3168
      %v3669 = vpack.c.b16 %v3173, %v3169
      %v3670 = vpack.c.b16 %v3174, %v3170
      %v3671 = vpack.c.b16 %v3179, %v3175
      %v3672 = vpack.c.b16 %v3180, %v3176
      %v3673 = vpack.c.b16 %v3181, %v3177
      %v3674 = vpack.c.b16 %v3182, %v3178
      %v3675 = vpack.c.b16 %v3187, %v3183
      %v3676 = vpack.c.b16 %v3188, %v3184
      %v3677 = vpack.c.b16 %v3189, %v3185
      %v3678 = vpack.c.b16 %v3190, %v3186
      %v3679 = vpack.c.b16 %v3195, %v3191
      %v3680 = vpack.c.b16 %v3196, %v3192
      %v3681 = vpack.c.b16 %v3197, %v3193
      %v3682 = vpack.c.b16 %v3198, %v3194
      %v3683 = vpack.c.b16 %v3203, %v3199
      %v3684 = vpack.c.b16 %v3204, %v3200
      %v3685 = vpack.c.b16 %v3205, %v3201
      %v3686 = vpack.c.b16 %v3206, %v3202
      %v3687 = vpack.c.b16 %v3211, %v3207
      %v3688 = vpack.c.b16 %v3212, %v3208
      %v3689 = vpack.c.b16 %v3213, %v3209
      %v3690 = vpack.c.b16 %v3214, %v3210
      %v3691 = vpack.c.b16 %v3219, %v3215
      %v3692 = vpack.c.b16 %v3220, %v3216
      %v3693 = vpack.c.b16 %v3221, %v3217
      %v3694 = vpack.c.b16 %v3222, %v3218
      %v3695 = vpack.c.b16 %v3227, %v3223
      %v3696 = vpack.c.b16 %v3228, %v3224
      %v3697 = vpack.c.b16 %v3229, %v3225
      %v3698 = vpack.c.b16 %v3230, %v3226
      %v3699 = vpack.c.b16 %v3235, %v3231
      %v3700 = vpack.c.b16 %v3236, %v3232
      %v3701 = vpack.c.b16 %v3237, %v3233
      %v3702 = vpack.c.b16 %v3238, %v3234
      %v3703 = vpack.c.b16 %v3243, %v3239
      %v3704 = vpack.c.b16 %v3244, %v3240
      %v3705 = vpack.c.b16 %v3245, %v3241
      %v3706 = vpack.c.b16 %v3246, %v3242
      %v3707 = vpack.c.b16 %v3251, %v3247
      %v3708 = vpack.c.b16 %v3252, %v3248
      %v3709 = vpack.c.b16 %v3253, %v3249
      %v3710 = vpack.c.b16 %v3254, %v3250
      %v3711 = vpack.c.b16 %v3259, %v3255
      %v3712 = vpack.c.b16 %v3260, %v3256
      %v3713 = vpack.c.b16 %v3261, %v3257
      %v3714 = vpack.c.b16 %v3262, %v3258
      %v3715 = vpack.c.b16 %v3267, %v3263
      %v3716 = vpack.c.b16 %v3268, %v3264
      %v3717 = vpack.c.b16 %v3269, %v3265
      %v3718 = vpack.c.b16 %v3270, %v3266
      %v3719 = vpack.c.b16 %v3275, %v3271
      %v3720 = vpack.c.b16 %v3276, %v3272
      %v3721 = vpack.c.b16 %v3277, %v3273
      %v3722 = vpack.c.b16 %v3278, %v3274
      %v3723 = vpack.c.b16 %v3283, %v3279
      %v3724 = vpack.c.b16 %v3284, %v3280
      %v3725 = vpack.c.b16 %v3285, %v3281
      %v3726 = vpack.c.b16 %v3286, %v3282
      %v3727 = vpack.c.b16 %v3291, %v3287
      %v3728 = vpack.c.b16 %v3292, %v3288
      %v3729 = vpack.c.b16 %v3293, %v3289
      %v3730 = vpack.c.b16 %v3294, %v3290
      %v3731 = vpack.c.b16 %v3299, %v3295
      %v3732 = vpack.c.b16 %v3300, %v3296
      %v3733 = vpack.c.b16 %v3301, %v3297
      %v3734 = vpack.c.b16 %v3302, %v3298
      %v3735 = vpack.c.b16 %v3307, %v3303
      %v3736 = vpack.c.b16 %v3308, %v3304
      %v3737 = vpack.c.b16 %v3309, %v3305
      %v3738 = vpack.c.b16 %v3310, %v3306
      %v3739 = vpack.c.b16 %v3315, %v3311
      %v3740 = vpack.c.b16 %v3316, %v3312
      %v3741 = vpack.c.b16 %v3317, %v3313
      %v3742 = vpack.c.b16 %v3318, %v3314
      %v3743 = vpack.c.b16 %v3323, %v3319
      %v3744 = vpack.c.b16 %v3324, %v3320
      %v3745 = vpack.c.b16 %v3325, %v3321
      %v3746 = vpack.c.b16 %v3326, %v3322
      %v3747 = vpack.c.b16 %v3331, %v3327
      %v3748 = vpack.c.b16 %v3332, %v3328
      %v3749 = vpack.c.b16 %v3333, %v3329
      %v3750 = vpack.c.b16 %v3334, %v3330
      %v3751 = vpack.c.b16 %v3339, %v3335
      %v3752 = vpack.c.b16 %v3340, %v3336
      %v3753 = vpack.c.b16 %v3341, %v3337
      %v3754 = vpack.c.b16 %v3342, %v3338
      %v3755 = vpack.c.b16 %v3347, %v3343
      %v3756 = vpack.c.b16 %v3348, %v3344
      %v3757 = vpack.c.b16 %v3349, %v3345
      %v3758 = vpack.c.b16 %v3350, %v3346
      %v3759 = vpack.c.b16 %v3355, %v3351
      %v3760 = vpack.c.b16 %v3356, %v3352
      %v3761 = vpack.c.b16 %v3357, %v3353
      %v3762 = vpack.c.b16 %v3358, %v3354
      %v3763 = vpack.c.b16 %v3363, %v3359
      %v3764 = vpack.c.b16 %v3364, %v3360
      %v3765 = vpack.c.b16 %v3365, %v3361
      %v3766 = vpack.c.b16 %v3366, %v3362
      %v3767 = vpack.c.b16 %v3371, %v3367
      %v3768 = vpack.c.b16 %v3372, %v3368
      %v3769 = vpack.c.b16 %v3373, %v3369
      %v3770 = vpack.c.b16 %v3374, %v3370
      %v3771 = vpack.c.b16 %v3379, %v3375
      %v3772 = vpack.c.b16 %v3380, %v3376
      %v3773 = vpack.c.b16 %v3381, %v3377
      %v3774 = vpack.c.b16 %v3382, %v3378
      %v3775 = vpack.c.b16 %v3387, %v3383
      %v3776 = vpack.c.b16 %v3388, %v3384
      %v3777 = vpack.c.b16 %v3389, %v3385
      %v3778 = vpack.c.b16 %v3390, %v3386
      %v3779 = vpack.c.b16 %v3395, %v3391
      %v3780 = vpack.c.b16 %v3396, %v3392
      %v3781 = vpack.c.b16 %v3397, %v3393
      %v3782 = vpack.c.b16 %v3398, %v3394
      %v3783 = vpack.c.b16 %v3403, %v3399
      %v3784 = vpack.c.b16 %v3404, %v3400
      %v3785 = vpack.c.b16 %v3405, %v3401
      %v3786 = vpack.c.b16 %v3406, %v3402
      %v3787 = vpack.c.b16 %v3411, %v3407
      %v3788 = vpack.c.b16 %v3412, %v3408
      %v3789 = vpack.c.b16 %v3413, %v3409
      %v3790 = vpack.c.b16 %v3414, %v3410
      %v3791 = vpack.c.b16 %v3419, %v3415
      %v3792 = vpack.c.b16 %v3420, %v3416
      %v3793 = vpack.c.b16 %v3421, %v3417
      %v3794 = vpack.c.b16 %v3422, %v3418
      %v3795 = vpack.c.b16 %v3427, %v3423
      %v3796 = vpack.c.b16 %v3428, %v3424
      %v3797 = vpack.c.b16 %v3429, %v3425
      %v3798 = vpack.c.b16 %v3430, %v3426
      %v3799 = vpack.c.b16 %v3435, %v3431
      %v3800 = vpack.c.b16 %v3436, %v3432
      %v3801 = vpack.c.b16 %v3437, %v3433
      %v3802 = vpack.c.b16 %v3438, %v3434
      %v3803 = vpack.c.b16 %v3443, %v3439
      %v3804 = vpack.c.b16 %v3444, %v3440
      %v3805 = vpack.c.b16 %v3445, %v3441
      %v3806 = vpack.c.b16 %v3446, %v3442
      %v3807 = vpack.c.b16 %v3451, %v3447
      %v3808 = vpack.c.b16 %v3452, %v3448
      %v3809 = vpack.c.b16 %v3453, %v3449
      %v3810 = vpack.c.b16 %v3454, %v3450
      %v3811 = vpack.c.b16 %v3459, %v3455
      %v3812 = vpack.c.b16 %v3460, %v3456
      %v3813 = vpack.c.b16 %v3461, %v3457
      %v3814 = vpack.c.b16 %v3462, %v3458
      %v3815 = vpack.c.b16 %v3467, %v3463
      %v3816 = vpack.c.b16 %v3468, %v3464
      %v3817 = vpack.c.b16 %v3469, %v3465
      %v3818 = vpack.c.b16 %v3470, %v3466
      %v3819 = vpack.c.b16 %v3475, %v3471
      %v3820 = vpack.c.b16 %v3476, %v3472
      %v3821 = vpack.c.b16 %v3477, %v3473
      %v3822 = vpack.c.b16 %v3478, %v3474
      %v3823 = vpack.c.b16 %v3483, %v3479
      %v3824 = vpack.c.b16 %v3484, %v3480
      %v3825 = vpack.c.b16 %v3485, %v3481
      %v3826 = vpack.c.b16 %v3486, %v3482
      %v3827 = vpack.c.b16 %v3491, %v3487
      %v3828 = vpack.c.b16 %v3492, %v3488
      %v3829 = vpack.c.b16 %v3493, %v3489
      %v3830 = vpack.c.b16 %v3494, %v3490
      %v3831 = vpack.c.b16 %v3499, %v3495
      %v3832 = vpack.c.b16 %v3500, %v3496
      %v3833 = vpack.c.b16 %v3501, %v3497
      %v3834 = vpack.c.b16 %v3502, %v3498
      %v3835 = vpack.c.b16 %v3507, %v3503
      %v3836 = vpack.c.b16 %v3508, %v3504
      %v3837 = vpack.c.b16 %v3509, %v3505
      %v3838 = vpack.c.b16 %v3510, %v3506
      %v3839 = vpack.c.b16 %v3515, %v3511
      %v3840 = vpack.c.b16 %v3516, %v3512
      %v3841 = vpack.c.b16 %v3517, %v3513
      %v3842 = vpack.c.b16 %v3518, %v3514
      %v3843 = vpack.c.b16 %v3523, %v3519
      %v3844 = vpack.c.b16 %v3524, %v3520
      %v3845 = vpack.c.b16 %v3525, %v3521
      %v3846 = vpack.c.b16 %v3526, %v3522
      %v3847 = vpack.c.b16 %v3531, %v3527
      %v3848 = vpack.c.b16 %v3532, %v3528
      %v3849 = vpack.c.b16 %v3533, %v3529
      %v3850 = vpack.c.b16 %v3534, %v3530
      %v3851 = vpack.c.b16 %v3539, %v3535
      %v3852 = vpack.c.b16 %v3540, %v3536
      %v3853 = vpack.c.b16 %v3541, %v3537
      %v3854 = vpack.c.b16 %v3542, %v3538
      %v3855 = vpack.c.b16 %v3547, %v3543
      %v3856 = vpack.c.b16 %v3548, %v3544
      %v3857 = vpack.c.b16 %v3549, %v3545
      %v3858 = vpack.c.b16 %v3550, %v3546
      %v3859 = vpack.c.b16 %v3555, %v3551
      %v3860 = vpack.c.b16 %v3556, %v3552
      %v3861 = vpack.c.b16 %v3557, %v3553
      %v3862 = vpack.c.b16 %v3558, %v3554
      %v3863 = vpack.c.b16 %v3563, %v3559
      %v3864 = vpack.c.b16 %v3564, %v3560
      %v3865 = vpack.c.b16 %v3565, %v3561
      %v3866 = vpack.c.b16 %v3566, %v3562
      %v3867 = vpack.c.b16 %v3571, %v3567
      %v3868 = vpack.c.b16 %v3572, %v3568
      %v3869 = vpack.c.b16 %v3573, %v3569
      %v3870 = vpack.c.b16 %v3574, %v3570
      %v3871 = vpack.c.b16 %v3579, %v3575
      %v3872 = vpack.c.b16 %v3580, %v3576
      %v3873 = vpack.c.b16 %v3581, %v3577
      %v3874 = vpack.c.b16 %v3582, %v3578
      %v3875 = vpack.c.b16 %v3587, %v3583
      %v3876 = vpack.c.b16 %v3588, %v3584
      %v3877 = vpack.c.b16 %v3589, %v3585
      %v3878 = vpack.c.b16 %v3590, %v3586
      %v3879 = vpack.c.b16 %v3595, %v3591
      %v3880 = vpack.c.b16 %v3596, %v3592
      %v3881 = vpack.c.b16 %v3597, %v3593
      %v3882 = vpack.c.b16 %v3598, %v3594
      %v3883 = vpack.c.b16 %v3603, %v3599
      %v3884 = vpack.c.b16 %v3604, %v3600
      %v3885 = vpack.c.b16 %v3605, %v3601
      %v3886 = vpack.c.b16 %v3606, %v3602
      %v3887 = vpack.c.b16 %v3611, %v3607
      %v3888 = vpack.c.b16 %v3612, %v3608
      %v3889 = vpack.c.b16 %v3613, %v3609
      %v3890 = vpack.c.b16 %v3614, %v3610
      %v3891 = vpack.c.b16 %v3619, %v3615
      %v3892 = vpack.c.b16 %v3620, %v3616
      %v3893 = vpack.c.b16 %v3621, %v3617
      %v3894 = vpack.c.b16 %v3622, %v3618
      %v3895 = vpack.c.b16 %v3627, %v3623
      %v3896 = vpack.c.b16 %v3628, %v3624
      %v3897 = vpack.c.b16 %v3629, %v3625
      %v3898 = vpack.c.b16 %v3630, %v3626
      %v3899 = vpack.c.b16 %v3635, %v3631
      %v3900 = vpack.c.b16 %v3636, %v3632
      %v3901 = vpack.c.b16 %v3637, %v3633
      %v3902 = vpack.c.b16 %v3638, %v3634
      %v3903 = vpack.c.b16 %v3643, %v3639
      %v3904 = vpack.c.b16 %v3644, %v3640
      %v3905 = vpack.c.b16 %v3645, %v3641
      %v3906 = vpack.c.b16 %v3646, %v3642
      %v3907 = vpack.c.b16 %v3651, %v3647
      %v3908 = vpack.c.b16 %v3652, %v3648
      %v3909 = vpack.c.b16 %v3653, %v3649
      %v3910 = vpack.c.b16 %v3654, %v3650
      %4167 = vmatprep.subr.bf16.mxu0 %v3656
      %4168 = vmatpush1.bf16.msra.mxu0 %v3655
      %4169 = vmatprep.subr.bf16.mxu0 %v3660
      %4170 = vmatpush1.bf16.msra.mxu0 %v3659
      %4171 = vmatprep.subr.bf16.mxu0 %v3664
      %4172 = vmatpush1.bf16.msra.mxu0 %v3663
      %4173 = vmatprep.subr.bf16.mxu0 %v3668
      %4174 = vmatpush1.bf16.msra.mxu0 %v3667
      %4175 = vmatprep.subr.bf16.mxu0 %v3672
      %4176 = vmatpush1.bf16.msra.mxu0 %v3671
      %4177 = vmatprep.subr.bf16.mxu0 %v3676
      %4178 = vmatpush1.bf16.msra.mxu0 %v3675
      %4179 = vmatprep.subr.bf16.mxu0 %v3680
      %4180 = vmatpush1.bf16.msra.mxu0 %v3679
      %4181 = vmatprep.subr.bf16.mxu0 %v3684
      %4182 = vmatpush1.bf16.msra.mxu0 %v3683
      %4183 = vmatprep.subr.bf16.mxu0 %v3688
      %4184 = vmatpush1.bf16.msra.mxu0 %v3687
      %4185 = vmatprep.subr.bf16.mxu0 %v3692
      %4186 = vmatpush1.bf16.msra.mxu0 %v3691
      %4187 = vmatprep.subr.bf16.mxu0 %v3696
      %4188 = vmatpush1.bf16.msra.mxu0 %v3695
      %4189 = vmatprep.subr.bf16.mxu0 %v3700
      %4190 = vmatpush1.bf16.msra.mxu0 %v3699
      %4191 = vmatprep.subr.bf16.mxu0 %v3704
      %4192 = vmatpush1.bf16.msra.mxu0 %v3703
      %4193 = vmatprep.subr.bf16.mxu0 %v3708
      %4194 = vmatpush1.bf16.msra.mxu0 %v3707
      %4195 = vmatprep.subr.bf16.mxu0 %v3712
      %4196 = vmatpush1.bf16.msra.mxu0 %v3711
      %4197 = vmatprep.subr.bf16.mxu0 %v3716
      %4198 = vmatpush1.bf16.msra.mxu0 %v3715
      %4199 = vmatprep.mubr.bf16.mxu0 %v2602
      %4200 = vmatmul.mubr.bf16.gmra.mrb[0].mxu0 %v2601
      %v4201 = vpop.f32.mrb[0].mxu0
      %v4202 = vadd.f32 %v2870, %v4201
      %v4203 = vpop.f32.mrb[0].mxu0
      %v4204 = vadd.f32 %v2874, %v4203
      %v4205 = vpop.f32.mrb[0].mxu0
      %v4206 = vadd.f32 %v2870, %v4205
      %v4207 = vpop.f32.mrb[0].mxu0
      %v4208 = vadd.f32 %v2874, %v4207
      %4209 = vdwg.mxu0
      %4210 = vmatprep.subr.bf16.mxu0 %v3720
      %4211 = vmatpush1.bf16.msra.mxu0 %v3719
      %4212 = vmatprep.subr.bf16.mxu0 %v3724
      %4213 = vmatpush1.bf16.msra.mxu0 %v3723
      %4214 = vmatprep.subr.bf16.mxu0 %v3728
      %4215 = vmatpush1.bf16.msra.mxu0 %v3727
      %4216 = vmatprep.subr.bf16.mxu0 %v3732
      %4217 = vmatpush1.bf16.msra.mxu0 %v3731
      %4218 = vmatprep.subr.bf16.mxu0 %v3736
      %4219 = vmatpush1.bf16.msra.mxu0 %v3735
      %4220 = vmatprep.subr.bf16.mxu0 %v3740
      %4221 = vmatpush1.bf16.msra.mxu0 %v3739
      %4222 = vmatprep.subr.bf16.mxu0 %v3744
      %4223 = vmatpush1.bf16.msra.mxu0 %v3743
      %4224 = vmatprep.subr.bf16.mxu0 %v3748
      %4225 = vmatpush1.bf16.msra.mxu0 %v3747
      %4226 = vmatprep.subr.bf16.mxu0 %v3752
      %4227 = vmatpush1.bf16.msra.mxu0 %v3751
      %4228 = vmatprep.subr.bf16.mxu0 %v3756
      %4229 = vmatpush1.bf16.msra.mxu0 %v3755
      %4230 = vmatprep.subr.bf16.mxu0 %v3760
      %4231 = vmatpush1.bf16.msra.mxu0 %v3759
      %4232 = vmatprep.subr.bf16.mxu0 %v3764
      %4233 = vmatpush1.bf16.msra.mxu0 %v3763
      %4234 = vmatprep.subr.bf16.mxu0 %v3768
      %4235 = vmatpush1.bf16.msra.mxu0 %v3767
      %4236 = vmatprep.subr.bf16.mxu0 %v3772
      %4237 = vmatpush1.bf16.msra.mxu0 %v3771
      %4238 = vmatprep.subr.bf16.mxu0 %v3776
      %4239 = vmatpush1.bf16.msra.mxu0 %v3775
      %4240 = vmatprep.subr.bf16.mxu0 %v3780
      %4241 = vmatpush1.bf16.msra.mxu0 %v3779
      %4242 = vmatprep.mubr.bf16.mxu0 %v2604
      %4243 = vmatmul.mubr.bf16.gmra.mrb[0].mxu0 %v2603
      %v4244 = vpop.f32.mrb[0].mxu0
      %v4245 = vadd.f32 %v4202, %v4244
      %v4246 = vpop.f32.mrb[0].mxu0
      %v4247 = vadd.f32 %v4204, %v4246
      %v4248 = vpop.f32.mrb[0].mxu0
      %v4249 = vadd.f32 %v4206, %v4248
      %v4250 = vpop.f32.mrb[0].mxu0
      %v4251 = vadd.f32 %v4208, %v4250
      %4252 = vdwg.mxu0
      %4253 = vmatprep.subr.bf16.mxu0 %v3784
      %4254 = vmatpush1.bf16.msra.mxu0 %v3783
      %4255 = vmatprep.subr.bf16.mxu0 %v3788
      %4256 = vmatpush1.bf16.msra.mxu0 %v3787
      %4257 = vmatprep.subr.bf16.mxu0 %v3792
      %4258 = vmatpush1.bf16.msra.mxu0 %v3791
      %4259 = vmatprep.subr.bf16.mxu0 %v3796
      %4260 = vmatpush1.bf16.msra.mxu0 %v3795
      %4261 = vmatprep.subr.bf16.mxu0 %v3800
      %4262 = vmatpush1.bf16.msra.mxu0 %v3799
      %4263 = vmatprep.subr.bf16.mxu0 %v3804
      %4264 = vmatpush1.bf16.msra.mxu0 %v3803
      %4265 = vmatprep.subr.bf16.mxu0 %v3808
      %4266 = vmatpush1.bf16.msra.mxu0 %v3807
      %4267 = vmatprep.subr.bf16.mxu0 %v3812
      %4268 = vmatpush1.bf16.msra.mxu0 %v3811
      %4269 = vmatprep.subr.bf16.mxu0 %v3816
      %4270 = vmatpush1.bf16.msra.mxu0 %v3815
      %4271 = vmatprep.subr.bf16.mxu0 %v3820
      %4272 = vmatpush1.bf16.msra.mxu0 %v3819
      %4273 = vmatprep.subr.bf16.mxu0 %v3824
      %4274 = vmatpush1.bf16.msra.mxu0 %v3823
      %4275 = vmatprep.subr.bf16.mxu0 %v3828
      %4276 = vmatpush1.bf16.msra.mxu0 %v3827
      %4277 = vmatprep.subr.bf16.mxu0 %v3832
      %4278 = vmatpush1.bf16.msra.mxu0 %v3831
      %4279 = vmatprep.subr.bf16.mxu0 %v3836
      %4280 = vmatpush1.bf16.msra.mxu0 %v3835
      %4281 = vmatprep.subr.bf16.mxu0 %v3840
      %4282 = vmatpush1.bf16.msra.mxu0 %v3839
      %4283 = vmatprep.subr.bf16.mxu0 %v3844
      %4284 = vmatpush1.bf16.msra.mxu0 %v3843
      %4285 = vmatprep.mubr.bf16.mxu0 %v2606
      %4286 = vmatmul.mubr.bf16.gmra.mrb[0].mxu0 %v2605
      %v4287 = vpop.f32.mrb[0].mxu0
      %v4288 = vadd.f32 %v4245, %v4287
      %v4289 = vpop.f32.mrb[0].mxu0
      %v4290 = vadd.f32 %v4247, %v4289
      %v4291 = vpop.f32.mrb[0].mxu0
      %v4292 = vadd.f32 %v4249, %v4291
      %v4293 = vpop.f32.mrb[0].mxu0
      %v4294 = vadd.f32 %v4251, %v4293
      %4295 = vdwg.mxu0
      %4296 = vmatprep.subr.bf16.mxu0 %v3848
      %4297 = vmatpush1.bf16.msra.mxu0 %v3847
      %4298 = vmatprep.subr.bf16.mxu0 %v3852
      %4299 = vmatpush1.bf16.msra.mxu0 %v3851
      %4300 = vmatprep.subr.bf16.mxu0 %v3856
      %4301 = vmatpush1.bf16.msra.mxu0 %v3855
      %4302 = vmatprep.subr.bf16.mxu0 %v3860
      %4303 = vmatpush1.bf16.msra.mxu0 %v3859
      %4304 = vmatprep.subr.bf16.mxu0 %v3864
      %4305 = vmatpush1.bf16.msra.mxu0 %v3863
      %4306 = vmatprep.subr.bf16.mxu0 %v3868
      %4307 = vmatpush1.bf16.msra.mxu0 %v3867
      %4308 = vmatprep.subr.bf16.mxu0 %v3872
      %4309 = vmatpush1.bf16.msra.mxu0 %v3871
      %4310 = vmatprep.subr.bf16.mxu0 %v3876
      %4311 = vmatpush1.bf16.msra.mxu0 %v3875
      %4312 = vmatprep.subr.bf16.mxu0 %v3880
      %4313 = vmatpush1.bf16.msra.mxu0 %v3879
      %4314 = vmatprep.subr.bf16.mxu0 %v3884
      %4315 = vmatpush1.bf16.msra.mxu0 %v3883
      %4316 = vmatprep.subr.bf16.mxu0 %v3888
      %4317 = vmatpush1.bf16.msra.mxu0 %v3887
      %4318 = vmatprep.subr.bf16.mxu0 %v3892
      %4319 = vmatpush1.bf16.msra.mxu0 %v3891
      %4320 = vmatprep.subr.bf16.mxu0 %v3896
      %4321 = vmatpush1.bf16.msra.mxu0 %v3895
      %4322 = vmatprep.subr.bf16.mxu0 %v3900
      %4323 = vmatpush1.bf16.msra.mxu0 %v3899
      %4324 = vmatprep.subr.bf16.mxu0 %v3904
      %4325 = vmatpush1.bf16.msra.mxu0 %v3903
      %4326 = vmatprep.subr.bf16.mxu0 %v3908
      %4327 = vmatpush1.bf16.msra.mxu0 %v3907
      %4328 = vmatprep.mubr.bf16.mxu0 %v2608
      %4329 = vmatmul.mubr.bf16.gmra.mrb[0].mxu0 %v2607
      %v4330 = vpop.f32.mrb[0].mxu0
      %v4331 = vadd.f32 %v4288, %v4330
      %v4332 = vpop.f32.mrb[0].mxu0
      %v4333 = vadd.f32 %v4290, %v4332
      %v4334 = vpop.f32.mrb[0].mxu0
      %v4335 = vadd.f32 %v4292, %v4334
      %v4336 = vpop.f32.mrb[0].mxu0
      %v4337 = vadd.f32 %v4294, %v4336
      %4338 = vdwg.mxu0
      %4339 = vmatprep.subr.bf16.mxu0 %v3658
      %4340 = vmatpush1.bf16.msra.mxu0 %v3657
      %4341 = vmatprep.subr.bf16.mxu0 %v3662
      %4342 = vmatpush1.bf16.msra.mxu0 %v3661
      %4343 = vmatprep.subr.bf16.mxu0 %v3666
      %4344 = vmatpush1.bf16.msra.mxu0 %v3665
      %4345 = vmatprep.subr.bf16.mxu0 %v3670
      %4346 = vmatpush1.bf16.msra.mxu0 %v3669
      %4347 = vmatprep.subr.bf16.mxu0 %v3674
      %4348 = vmatpush1.bf16.msra.mxu0 %v3673
      %4349 = vmatprep.subr.bf16.mxu0 %v3678
      %4350 = vmatpush1.bf16.msra.mxu0 %v3677
      %4351 = vmatprep.subr.bf16.mxu0 %v3682
      %4352 = vmatpush1.bf16.msra.mxu0 %v3681
      %4353 = vmatprep.subr.bf16.mxu0 %v3686
      %4354 = vmatpush1.bf16.msra.mxu0 %v3685
      %4355 = vmatprep.subr.bf16.mxu0 %v3690
      %4356 = vmatpush1.bf16.msra.mxu0 %v3689
      %4357 = vmatprep.subr.bf16.mxu0 %v3694
      %4358 = vmatpush1.bf16.msra.mxu0 %v3693
      %4359 = vmatprep.subr.bf16.mxu0 %v3698
      %4360 = vmatpush1.bf16.msra.mxu0 %v3697
      %4361 = vmatprep.subr.bf16.mxu0 %v3702
      %4362 = vmatpush1.bf16.msra.mxu0 %v3701
      %4363 = vmatprep.subr.bf16.mxu0 %v3706
      %4364 = vmatpush1.bf16.msra.mxu0 %v3705
      %4365 = vmatprep.subr.bf16.mxu0 %v3710
      %4366 = vmatpush1.bf16.msra.mxu0 %v3709
      %4367 = vmatprep.subr.bf16.mxu0 %v3714
      %4368 = vmatpush1.bf16.msra.mxu0 %v3713
      %4369 = vmatprep.subr.bf16.mxu0 %v3718
      %4370 = vmatpush1.bf16.msra.mxu0 %v3717
      %4371 = vmatprep.mubr.bf16.mxu0 %v2602
      %4372 = vmatmul.mubr.bf16.gmra.mrb[0].mxu0 %v2601
      %v4373 = vpop.f32.mrb[0].mxu0
      %v4374 = vadd.f32 %v2878, %v4373
      %v4375 = vpop.f32.mrb[0].mxu0
      %v4376 = vadd.f32 %v2882, %v4375
      %v4377 = vpop.f32.mrb[0].mxu0
      %v4378 = vadd.f32 %v2878, %v4377
      %v4379 = vpop.f32.mrb[0].mxu0
      %v4380 = vadd.f32 %v2882, %v4379
      %4381 = vdwg.mxu0
      %4382 = vmatprep.subr.bf16.mxu0 %v3722
      %4383 = vmatpush1.bf16.msra.mxu0 %v3721
      %4384 = vmatprep.subr.bf16.mxu0 %v3726
      %4385 = vmatpush1.bf16.msra.mxu0 %v3725
      %4386 = vmatprep.subr.bf16.mxu0 %v3730
      %4387 = vmatpush1.bf16.msra.mxu0 %v3729
      %4388 = vmatprep.subr.bf16.mxu0 %v3734
      %4389 = vmatpush1.bf16.msra.mxu0 %v3733
      %4390 = vmatprep.subr.bf16.mxu0 %v3738
      %4391 = vmatpush1.bf16.msra.mxu0 %v3737
      %4392 = vmatprep.subr.bf16.mxu0 %v3742
      %4393 = vmatpush1.bf16.msra.mxu0 %v3741
      %4394 = vmatprep.subr.bf16.mxu0 %v3746
      %4395 = vmatpush1.bf16.msra.mxu0 %v3745
      %4396 = vmatprep.subr.bf16.mxu0 %v3750
      %4397 = vmatpush1.bf16.msra.mxu0 %v3749
      %4398 = vmatprep.subr.bf16.mxu0 %v3754
      %4399 = vmatpush1.bf16.msra.mxu0 %v3753
      %4400 = vmatprep.subr.bf16.mxu0 %v3758
      %4401 = vmatpush1.bf16.msra.mxu0 %v3757
      %4402 = vmatprep.subr.bf16.mxu0 %v3762
      %4403 = vmatpush1.bf16.msra.mxu0 %v3761
      %4404 = vmatprep.subr.bf16.mxu0 %v3766
      %4405 = vmatpush1.bf16.msra.mxu0 %v3765
      %4406 = vmatprep.subr.bf16.mxu0 %v3770
      %4407 = vmatpush1.bf16.msra.mxu0 %v3769
      %4408 = vmatprep.subr.bf16.mxu0 %v3774
      %4409 = vmatpush1.bf16.msra.mxu0 %v3773
      %4410 = vmatprep.subr.bf16.mxu0 %v3778
      %4411 = vmatpush1.bf16.msra.mxu0 %v3777
      %4412 = vmatprep.subr.bf16.mxu0 %v3782
      %4413 = vmatpush1.bf16.msra.mxu0 %v3781
      %4414 = vmatprep.mubr.bf16.mxu0 %v2604
      %4415 = vmatmul.mubr.bf16.gmra.mrb[0].mxu0 %v2603
      %v4416 = vpop.f32.mrb[0].mxu0
      %v4417 = vadd.f32 %v4374, %v4416
      %v4418 = vpop.f32.mrb[0].mxu0
      %v4419 = vadd.f32 %v4376, %v4418
      %v4420 = vpop.f32.mrb[0].mxu0
      %v4421 = vadd.f32 %v4378, %v4420
      %v4422 = vpop.f32.mrb[0].mxu0
      %v4423 = vadd.f32 %v4380, %v4422
      %4424 = vdwg.mxu0
      %4425 = vmatprep.subr.bf16.mxu0 %v3786
      %4426 = vmatpush1.bf16.msra.mxu0 %v3785
      %4427 = vmatprep.subr.bf16.mxu0 %v3790
      %4428 = vmatpush1.bf16.msra.mxu0 %v3789
      %4429 = vmatprep.subr.bf16.mxu0 %v3794
      %4430 = vmatpush1.bf16.msra.mxu0 %v3793
      %4431 = vmatprep.subr.bf16.mxu0 %v3798
      %4432 = vmatpush1.bf16.msra.mxu0 %v3797
      %4433 = vmatprep.subr.bf16.mxu0 %v3802
      %4434 = vmatpush1.bf16.msra.mxu0 %v3801
      %4435 = vmatprep.subr.bf16.mxu0 %v3806
      %4436 = vmatpush1.bf16.msra.mxu0 %v3805
      %4437 = vmatprep.subr.bf16.mxu0 %v3810
      %4438 = vmatpush1.bf16.msra.mxu0 %v3809
      %4439 = vmatprep.subr.bf16.mxu0 %v3814
      %4440 = vmatpush1.bf16.msra.mxu0 %v3813
      %4441 = vmatprep.subr.bf16.mxu0 %v3818
      %4442 = vmatpush1.bf16.msra.mxu0 %v3817
      %4443 = vmatprep.subr.bf16.mxu0 %v3822
      %4444 = vmatpush1.bf16.msra.mxu0 %v3821
      %4445 = vmatprep.subr.bf16.mxu0 %v3826
      %4446 = vmatpush1.bf16.msra.mxu0 %v3825
      %4447 = vmatprep.subr.bf16.mxu0 %v3830
      %4448 = vmatpush1.bf16.msra.mxu0 %v3829
      %4449 = vmatprep.subr.bf16.mxu0 %v3834
      %4450 = vmatpush1.bf16.msra.mxu0 %v3833
      %4451 = vmatprep.subr.bf16.mxu0 %v3838
      %4452 = vmatpush1.bf16.msra.mxu0 %v3837
      %4453 = vmatprep.subr.bf16.mxu0 %v3842
      %4454 = vmatpush1.bf16.msra.mxu0 %v3841
      %4455 = vmatprep.subr.bf16.mxu0 %v3846
      %4456 = vmatpush1.bf16.msra.mxu0 %v3845
      %4457 = vmatprep.mubr.bf16.mxu0 %v2606
      %4458 = vmatmul.mubr.bf16.gmra.mrb[0].mxu0 %v2605
      %v4459 = vpop.f32.mrb[0].mxu0
      %v4460 = vadd.f32 %v4417, %v4459
      %v4461 = vpop.f32.mrb[0].mxu0
      %v4462 = vadd.f32 %v4419, %v4461
      %v4463 = vpop.f32.mrb[0].mxu0
      %v4464 = vadd.f32 %v4421, %v4463
      %v4465 = vpop.f32.mrb[0].mxu0
      %v4466 = vadd.f32 %v4423, %v4465
      %4467 = vdwg.mxu0
      %4468 = vmatprep.subr.bf16.mxu0 %v3850
      %4469 = vmatpush1.bf16.msra.mxu0 %v3849
      %4470 = vmatprep.subr.bf16.mxu0 %v3854
      %4471 = vmatpush1.bf16.msra.mxu0 %v3853
      %4472 = vmatprep.subr.bf16.mxu0 %v3858
      %4473 = vmatpush1.bf16.msra.mxu0 %v3857
      %4474 = vmatprep.subr.bf16.mxu0 %v3862
      %4475 = vmatpush1.bf16.msra.mxu0 %v3861
      %4476 = vmatprep.subr.bf16.mxu0 %v3866
      %4477 = vmatpush1.bf16.msra.mxu0 %v3865
      %4478 = vmatprep.subr.bf16.mxu0 %v3870
      %4479 = vmatpush1.bf16.msra.mxu0 %v3869
      %4480 = vmatprep.subr.bf16.mxu0 %v3874
      %4481 = vmatpush1.bf16.msra.mxu0 %v3873
      %4482 = vmatprep.subr.bf16.mxu0 %v3878
      %4483 = vmatpush1.bf16.msra.mxu0 %v3877
      %4484 = vmatprep.subr.bf16.mxu0 %v3882
      %4485 = vmatpush1.bf16.msra.mxu0 %v3881
      %4486 = vmatprep.subr.bf16.mxu0 %v3886
      %4487 = vmatpush1.bf16.msra.mxu0 %v3885
      %4488 = vmatprep.subr.bf16.mxu0 %v3890
      %4489 = vmatpush1.bf16.msra.mxu0 %v3889
      %4490 = vmatprep.subr.bf16.mxu0 %v3894
      %4491 = vmatpush1.bf16.msra.mxu0 %v3893
      %4492 = vmatprep.subr.bf16.mxu0 %v3898
      %4493 = vmatpush1.bf16.msra.mxu0 %v3897
      %4494 = vmatprep.subr.bf16.mxu0 %v3902
      %4495 = vmatpush1.bf16.msra.mxu0 %v3901
      %4496 = vmatprep.subr.bf16.mxu0 %v3906
      %4497 = vmatpush1.bf16.msra.mxu0 %v3905
      %4498 = vmatprep.subr.bf16.mxu0 %v3910
      %4499 = vmatpush1.bf16.msra.mxu0 %v3909
      %4500 = vmatprep.mubr.bf16.mxu0 %v2608
      %4501 = vmatmul.mubr.bf16.gmra.mrb[0].mxu0 %v2607
      %v4502 = vpop.f32.mrb[0].mxu0
      %v4503 = vadd.f32 %v4460, %v4502
      %v4504 = vpop.f32.mrb[0].mxu0
      %v4505 = vadd.f32 %v4462, %v4504
      %v4506 = vpop.f32.mrb[0].mxu0
      %v4507 = vadd.f32 %v4464, %v4506
      %v4508 = vpop.f32.mrb[0].mxu0
      %v4509 = vadd.f32 %v4466, %v4508
      %4510 = vdwg.mxu0
      %v4511 = vld [vmem:[%s7] sm:$0xf]
      %v4512 = vld [vmem:[%s8] sm:$0xf]
      %v4513 = vmul.f32 %v4331, %v2059
      %v4514 = vmul.f32 %v4333, %v2059
      %v4515 = vmul.f32 %v4503, %v2059
      %v4516 = vmul.f32 %v4505, %v2059
      %v4517 = vmul.f32 %v4335, %v2060
      %v4518 = vmul.f32 %v4337, %v2060
      %v4519 = vmul.f32 %v4507, %v2060
      %v4520 = vmul.f32 %v4509, %v2060
      %v4521 = vadd.f32 %v4513, %v4517
      %v4522 = vrot.slane %v4521, 4
      %v4523 = vadd.f32 %v4521, %v4522
      %v4524 = vrot.slane %v4523, 2
      %v4525 = vadd.f32 %v4523, %v4524
      %v4526 = vrot.slane %v4525, 1
      %v4527 = vadd.f32 %v4525, %v4526
      %v4528 = vadd.f32 %v4514, %v4518
      %v4529 = vrot.slane %v4528, 4
      %v4530 = vadd.f32 %v4528, %v4529
      %v4531 = vrot.slane %v4530, 2
      %v4532 = vadd.f32 %v4530, %v4531
      %v4533 = vrot.slane %v4532, 1
      %v4534 = vadd.f32 %v4532, %v4533
      %v4535 = vadd.f32 %v4515, %v4519
      %v4536 = vrot.slane %v4535, 4
      %v4537 = vadd.f32 %v4535, %v4536
      %v4538 = vrot.slane %v4537, 2
      %v4539 = vadd.f32 %v4537, %v4538
      %v4540 = vrot.slane %v4539, 1
      %v4541 = vadd.f32 %v4539, %v4540
      %v4542 = vadd.f32 %v4516, %v4520
      %v4543 = vrot.slane %v4542, 4
      %v4544 = vadd.f32 %v4542, %v4543
      %v4545 = vrot.slane %v4544, 2
      %v4546 = vadd.f32 %v4544, %v4545
      %v4547 = vrot.slane %v4546, 1
      %v4548 = vadd.f32 %v4546, %v4547
      %v4549 = vmul.f32 %v4527, 0.083333336
      %v4550 = vmul.f32 %v4534, 0.083333336
      %v4551 = vmul.f32 %v4541, 0.083333336
      %v4552 = vmul.f32 %v4548, 0.083333336
      %v4553 = vsub.f32 %v4331, %v4549
      %v4554 = vsub.f32 %v4333, %v4550
      %v4555 = vsub.f32 %v4503, %v4551
      %v4556 = vsub.f32 %v4505, %v4552
      %v4557 = vsub.f32 %v4335, %v4549
      %v4558 = vsub.f32 %v4337, %v4550
      %v4559 = vsub.f32 %v4507, %v4551
      %v4560 = vsub.f32 %v4509, %v4552
      %v4561 = vmul.f32 %v4553, %v2059
      %v4562 = vmul.f32 %v4554, %v2059
      %v4563 = vmul.f32 %v4555, %v2059
      %v4564 = vmul.f32 %v4556, %v2059
      %v4565 = vmul.f32 %v4557, %v2060
      %v4566 = vmul.f32 %v4558, %v2060
      %v4567 = vmul.f32 %v4559, %v2060
      %v4568 = vmul.f32 %v4560, %v2060
      %v4569 = vmul.f32 %v4561, %v4561
      %v4570 = vmul.f32 %v4562, %v4562
      %v4571 = vmul.f32 %v4563, %v4563
      %v4572 = vmul.f32 %v4564, %v4564
      %v4573 = vmul.f32 %v4565, %v4565
      %v4574 = vmul.f32 %v4566, %v4566
      %v4575 = vmul.f32 %v4567, %v4567
      %v4576 = vmul.f32 %v4568, %v4568
      %v4577 = vadd.f32 %v4569, %v4573
      %v4578 = vrot.slane %v4577, 4
      %v4579 = vadd.f32 %v4577, %v4578
      %v4580 = vrot.slane %v4579, 2
      %v4581 = vadd.f32 %v4579, %v4580
      %v4582 = vrot.slane %v4581, 1
      %v4583 = vadd.f32 %v4581, %v4582
      %v4584 = vadd.f32 %v4570, %v4574
      %v4585 = vrot.slane %v4584, 4
      %v4586 = vadd.f32 %v4584, %v4585
      %v4587 = vrot.slane %v4586, 2
      %v4588 = vadd.f32 %v4586, %v4587
      %v4589 = vrot.slane %v4588, 1
      %v4590 = vadd.f32 %v4588, %v4589
      %v4591 = vadd.f32 %v4571, %v4575
      %v4592 = vrot.slane %v4591, 4
      %v4593 = vadd.f32 %v4591, %v4592
      %v4594 = vrot.slane %v4593, 2
      %v4595 = vadd.f32 %v4593, %v4594
      %v4596 = vrot.slane %v4595, 1
      %v4597 = vadd.f32 %v4595, %v4596
      %v4598 = vadd.f32 %v4572, %v4576
      %v4599 = vrot.slane %v4598, 4
      %v4600 = vadd.f32 %v4598, %v4599
      %v4601 = vrot.slane %v4600, 2
      %v4602 = vadd.f32 %v4600, %v4601
      %v4603 = vrot.slane %v4602, 1
      %v4604 = vadd.f32 %v4602, %v4603
      %v4605 = vmul.f32 %v4583, 0.083333336
      %v4606 = vmul.f32 %v4590, 0.083333336
      %v4607 = vmul.f32 %v4597, 0.083333336
      %v4608 = vmul.f32 %v4604, 0.083333336
      %v4609 = vadd.f32 %v4605, 1e-05
      %v4610 = vadd.f32 %v4606, 1e-05
      %v4611 = vadd.f32 %v4607, 1e-05
      %v4612 = vadd.f32 %v4608, 1e-05
      %v4613 = vrsqrt.pop %v4609
      %v4614 = vrsqrt.pop %v4610
      %v4615 = vrsqrt.pop %v4611
      %v4616 = vrsqrt.pop %v4612
      %v4621 = vcombine.low %v4613, %v4614
      %v4622 = vcombine.low %v4615, %v4616
      %v4624 = vunpack.c.l.s4 1966171168
      %v4625 = vunpack.c.0.s8 %v4624
      %v4626 = vlaneseq
      %v4627 = vshrl.u32 %v4626, 7
      %v4628 = vsub.s32 %v4625, %v4627
      %v4629 = vrot.slane %v4621, %v4628
      %v4631 = vunpack.c.l.s4 1966171168
      %v4632 = vunpack.c.0.s8 %v4631
      %v4633 = vlaneseq
      %v4634 = vshrl.u32 %v4633, 7
      %v4635 = vsub.s32 %v4632, %v4634
      %v4636 = vrot.slane %v4622, %v4635
      %v4637 = vcombine.low %v4629, %v4636
      %v4639 = vunpack.c.l.s4 1966171168
      %v4640 = vunpack.c.0.s8 %v4639
      %v4641 = vlaneseq
      %v4642 = vshrl.u32 %v4641, 7
      %v4643 = vsub.s32 %v4640, %v4642
      %v4644 = vrot.slane %v4637, %v4643
      %v4646 = vmul.f32 %v4511, %v4644
      %v4648 = vlaneseq
      %v4649 = vshrl.u32 %v4648, 7
      %v4650 = vsub.s32 0, %v4649
      %v4651 = vrot.slane %v4646, %v4650
      %v4652 = vlaneseq
      %v4653 = vshrl.u32 %v4652, 7
      %v4654 = vsub.s32 1, %v4653
      %v4655 = vrot.slane %v4646, %v4654
      %v4656 = vlaneseq
      %v4657 = vshrl.u32 %v4656, 7
      %v4658 = vsub.s32 2, %v4657
      %v4659 = vrot.slane %v4646, %v4658
      %v4660 = vlaneseq
      %v4661 = vshrl.u32 %v4660, 7
      %v4662 = vsub.s32 3, %v4661
      %v4663 = vrot.slane %v4646, %v4662
      %v4668 = vmul.f32 %v4331, %v4651
      %v4669 = vmul.f32 %v4333, %v4655
      %v4670 = vmul.f32 %v4503, %v4659
      %v4671 = vmul.f32 %v4505, %v4663
      %v4672 = vmul.f32 %v4335, %v4651
      %v4673 = vmul.f32 %v4337, %v4655
      %v4674 = vmul.f32 %v4507, %v4659
      %v4675 = vmul.f32 %v4509, %v4663
      %v4676 = vmul.f32 %v4549, %v4651
      %v4677 = vmul.f32 %v4550, %v4655
      %v4678 = vmul.f32 %v4551, %v4659
      %v4679 = vmul.f32 %v4552, %v4663
      %v4684 = vcombine.low %v4676, %v4677
      %v4685 = vcombine.low %v4678, %v4679
      %v4687 = vunpack.c.l.s4 1966171168
      %v4688 = vunpack.c.0.s8 %v4687
      %v4689 = vlaneseq
      %v4690 = vshrl.u32 %v4689, 7
      %v4691 = vsub.s32 %v4688, %v4690
      %v4692 = vrot.slane %v4684, %v4691
      %v4694 = vunpack.c.l.s4 1966171168
      %v4695 = vunpack.c.0.s8 %v4694
      %v4696 = vlaneseq
      %v4697 = vshrl.u32 %v4696, 7
      %v4698 = vsub.s32 %v4695, %v4697
      %v4699 = vrot.slane %v4685, %v4698
      %v4700 = vcombine.low %v4692, %v4699
      %v4702 = vunpack.c.l.s4 1966171168
      %v4703 = vunpack.c.0.s8 %v4702
      %v4704 = vlaneseq
      %v4705 = vshrl.u32 %v4704, 7
      %v4706 = vsub.s32 %v4703, %v4705
      %v4707 = vrot.slane %v4700, %v4706
      %v4709 = vsub.f32 %v4512, %v4707
      %v4711 = vlaneseq
      %v4712 = vshrl.u32 %v4711, 7
      %v4713 = vsub.s32 0, %v4712
      %v4714 = vrot.slane %v4709, %v4713
      %v4715 = vlaneseq
      %v4716 = vshrl.u32 %v4715, 7
      %v4717 = vsub.s32 1, %v4716
      %v4718 = vrot.slane %v4709, %v4717
      %v4719 = vlaneseq
      %v4720 = vshrl.u32 %v4719, 7
      %v4721 = vsub.s32 2, %v4720
      %v4722 = vrot.slane %v4709, %v4721
      %v4723 = vlaneseq
      %v4724 = vshrl.u32 %v4723, 7
      %v4725 = vsub.s32 3, %v4724
      %v4726 = vrot.slane %v4709, %v4725
      %v4731 = vadd.f32 %v4668, %v4714
      %v4732 = vadd.f32 %v4669, %v4718
      %v4733 = vadd.f32 %v4670, %v4722
      %v4734 = vadd.f32 %v4671, %v4726
      %v4735 = vadd.f32 %v4672, %v4714
      %v4736 = vadd.f32 %v4673, %v4718
      %v4737 = vadd.f32 %v4674, %v4722
      %v4738 = vadd.f32 %v4675, %v4726
      %v4739 = vmax.f32 %v4731, 0.0
      %v4740 = vmax.f32 %v4732, 0.0
      %v4741 = vmax.f32 %v4733, 0.0
      %v4742 = vmax.f32 %v4734, 0.0
      %v4743 = vmax.f32 %v4735, 0.0
      %v4744 = vmax.f32 %v4736, 0.0
      %v4745 = vmax.f32 %v4737, 0.0
      %v4746 = vmax.f32 %v4738, 0.0
      %v4747 = vpack.c.bf16 %v4743, %v4739
      %v4748 = vpack.c.bf16 %v4744, %v4740
      %v4749 = vpack.c.bf16 %v4745, %v4741
      %v4750 = vpack.c.bf16 %v4746, %v4742
      %v4751 = vld [vmem:[#allocation8] sm:$0xf]
      %v4752 = vld [vmem:[#allocation8 + $0x4] sm:$0xf]
      %v4753 = vld [vmem:[#allocation8 + $0x8] sm:$0xf]
      %v4754 = vld [vmem:[#allocation8 + $0xc] sm:$0xf]
      %v4755 = vld [vmem:[#allocation8 + $0x10] sm:$0xf]
      %v4756 = vld [vmem:[#allocation8 + $0x14] sm:$0xf]
      %v4757 = vld [vmem:[#allocation8 + $0x18] sm:$0xf]
      %v4758 = vld [vmem:[#allocation8 + $0x1c] sm:$0xf]
      %v4759 = vld [vmem:[#allocation8 + $0x20] sm:$0xf]
      %v4760 = vld [vmem:[#allocation8 + $0x24] sm:$0xf]
      %v4761 = vld [vmem:[#allocation8 + $0x28] sm:$0xf]
      %v4762 = vld [vmem:[#allocation8 + $0x2c] sm:$0xf]
      %v4763 = vld [vmem:[#allocation8 + $0x30] sm:$0xf]
      %v4764 = vld [vmem:[#allocation8 + $0x34] sm:$0xf]
      %v4765 = vld [vmem:[#allocation8 + $0x38] sm:$0xf]
      %v4766 = vld [vmem:[#allocation8 + $0x3c] sm:$0xf]
      %v4767 = vld [vmem:[#allocation8 + $0x40] sm:$0xf]
      %v4768 = vld [vmem:[#allocation8 + $0x44] sm:$0xf]
      %v4769 = vld [vmem:[#allocation8 + $0x48] sm:$0xf]
      %v4770 = vld [vmem:[#allocation8 + $0x4c] sm:$0xf]
      %v4771 = vld [vmem:[#allocation8 + $0x50] sm:$0xf]
      %v4772 = vld [vmem:[#allocation8 + $0x54] sm:$0xf]
      %v4773 = vld [vmem:[#allocation8 + $0x58] sm:$0xf]
      %v4774 = vld [vmem:[#allocation8 + $0x5c] sm:$0xf]
      %v4775 = vld [vmem:[#allocation8 + $0x60] sm:$0xf]
      %v4776 = vld [vmem:[#allocation8 + $0x64] sm:$0xf]
      %v4777 = vld [vmem:[#allocation8 + $0x68] sm:$0xf]
      %v4778 = vld [vmem:[#allocation8 + $0x6c] sm:$0xf]
      %v4779 = vld [vmem:[#allocation8 + $0x70] sm:$0xf]
      %v4780 = vld [vmem:[#allocation8 + $0x74] sm:$0xf]
      %v4781 = vld [vmem:[#allocation8 + $0x78] sm:$0xf]
      %v4782 = vld [vmem:[#allocation8 + $0x7c] sm:$0xf]
      %v4783 = vld [vmem:[#allocation8 + $0x80] sm:$0xf]
      %v4784 = vld [vmem:[#allocation8 + $0x84] sm:$0xf]
      %v4785 = vld [vmem:[#allocation8 + $0x88] sm:$0xf]
      %v4786 = vld [vmem:[#allocation8 + $0x8c] sm:$0xf]
      %v4787 = vld [vmem:[#allocation8 + $0x90] sm:$0xf]
      %v4788 = vld [vmem:[#allocation8 + $0x94] sm:$0xf]
      %v4789 = vld [vmem:[#allocation8 + $0x98] sm:$0xf]
      %v4790 = vld [vmem:[#allocation8 + $0x9c] sm:$0xf]
      %v4791 = vld [vmem:[#allocation8 + $0xa0] sm:$0xf]
      %v4792 = vld [vmem:[#allocation8 + $0xa4] sm:$0xf]
      %v4793 = vld [vmem:[#allocation8 + $0xa8] sm:$0xf]
      %v4794 = vld [vmem:[#allocation8 + $0xac] sm:$0xf]
      %v4795 = vld [vmem:[#allocation8 + $0xb0] sm:$0xf]
      %v4796 = vld [vmem:[#allocation8 + $0xb4] sm:$0xf]
      %v4797 = vld [vmem:[#allocation8 + $0xb8] sm:$0xf]
      %v4798 = vld [vmem:[#allocation8 + $0xbc] sm:$0xf]
      %v4799 = vld [vmem:[#allocation8 + $0xc0] sm:$0xf]
      %v4800 = vld [vmem:[#allocation8 + $0xc4] sm:$0xf]
      %v4801 = vld [vmem:[#allocation8 + $0xc8] sm:$0xf]
      %v4802 = vld [vmem:[#allocation8 + $0xcc] sm:$0xf]
      %v4803 = vld [vmem:[#allocation8 + $0xd0] sm:$0xf]
      %v4804 = vld [vmem:[#allocation8 + $0xd4] sm:$0xf]
      %v4805 = vld [vmem:[#allocation8 + $0xd8] sm:$0xf]
      %v4806 = vld [vmem:[#allocation8 + $0xdc] sm:$0xf]
      %v4807 = vld [vmem:[#allocation8 + $0xe0] sm:$0xf]
      %v4808 = vld [vmem:[#allocation8 + $0xe4] sm:$0xf]
      %v4809 = vld [vmem:[#allocation8 + $0xe8] sm:$0xf]
      %v4810 = vld [vmem:[#allocation8 + $0xec] sm:$0xf]
      %v4811 = vld [vmem:[#allocation8 + $0xf0] sm:$0xf]
      %v4812 = vld [vmem:[#allocation8 + $0xf4] sm:$0xf]
      %v4813 = vld [vmem:[#allocation8 + $0xf8] sm:$0xf]
      %v4814 = vld [vmem:[#allocation8 + $0xfc] sm:$0xf]
      %v4815 = vld [vmem:[%s10] sm:$0x1]
      %v4817 = vlaneseq
      %v4818 = vshrl.u32 %v4817, 7
      %v4819 = vsub.s32 0, %v4818
      %v4820 = vrot.slane %v4815, %v4819
      %v4886 = vunpack.c.l.b16 %v4751
      %v4887 = vunpack.c.l.b16 %v4752
      %v4888 = vunpack.c.l.b16 %v4753
      %v4889 = vunpack.c.l.b16 %v4754
      %v4890 = vunpack.c.l.b16 %v4755
      %v4891 = vunpack.c.l.b16 %v4756
      %v4892 = vunpack.c.l.b16 %v4757
      %v4893 = vunpack.c.l.b16 %v4758
      %v4894 = vunpack.c.l.b16 %v4759
      %v4895 = vunpack.c.l.b16 %v4760
      %v4896 = vunpack.c.l.b16 %v4761
      %v4897 = vunpack.c.l.b16 %v4762
      %v4898 = vunpack.c.l.b16 %v4763
      %v4899 = vunpack.c.l.b16 %v4764
      %v4900 = vunpack.c.l.b16 %v4765
      %v4901 = vunpack.c.l.b16 %v4766
      %v4902 = vunpack.c.l.b16 %v4767
      %v4903 = vunpack.c.l.b16 %v4768
      %v4904 = vunpack.c.l.b16 %v4769
      %v4905 = vunpack.c.l.b16 %v4770
      %v4906 = vunpack.c.l.b16 %v4771
      %v4907 = vunpack.c.l.b16 %v4772
      %v4908 = vunpack.c.l.b16 %v4773
      %v4909 = vunpack.c.l.b16 %v4774
      %v4910 = vunpack.c.l.b16 %v4775
      %v4911 = vunpack.c.l.b16 %v4776
      %v4912 = vunpack.c.l.b16 %v4777
      %v4913 = vunpack.c.l.b16 %v4778
      %v4914 = vunpack.c.l.b16 %v4779
      %v4915 = vunpack.c.l.b16 %v4780
      %v4916 = vunpack.c.l.b16 %v4781
      %v4917 = vunpack.c.l.b16 %v4782
      %v4918 = vunpack.c.l.b16 %v4783
      %v4919 = vunpack.c.l.b16 %v4784
      %v4920 = vunpack.c.l.b16 %v4785
      %v4921 = vunpack.c.l.b16 %v4786
      %v4922 = vunpack.c.l.b16 %v4787
      %v4923 = vunpack.c.l.b16 %v4788
      %v4924 = vunpack.c.l.b16 %v4789
      %v4925 = vunpack.c.l.b16 %v4790
      %v4926 = vunpack.c.l.b16 %v4791
      %v4927 = vunpack.c.l.b16 %v4792
      %v4928 = vunpack.c.l.b16 %v4793
      %v4929 = vunpack.c.l.b16 %v4794
      %v4930 = vunpack.c.l.b16 %v4795
      %v4931 = vunpack.c.l.b16 %v4796
      %v4932 = vunpack.c.l.b16 %v4797
      %v4933 = vunpack.c.l.b16 %v4798
      %v4934 = vunpack.c.l.b16 %v4799
      %v4935 = vunpack.c.l.b16 %v4800
      %v4936 = vunpack.c.l.b16 %v4801
      %v4937 = vunpack.c.l.b16 %v4802
      %v4938 = vunpack.c.l.b16 %v4803
      %v4939 = vunpack.c.l.b16 %v4804
      %v4940 = vunpack.c.l.b16 %v4805
      %v4941 = vunpack.c.l.b16 %v4806
      %v4942 = vunpack.c.l.b16 %v4807
      %v4943 = vunpack.c.l.b16 %v4808
      %v4944 = vunpack.c.l.b16 %v4809
      %v4945 = vunpack.c.l.b16 %v4810
      %v4946 = vunpack.c.l.b16 %v4811
      %v4947 = vunpack.c.l.b16 %v4812
      %v4948 = vunpack.c.l.b16 %v4813
      %v4949 = vunpack.c.l.b16 %v4814
      %v4950 = vpack.c.b16 %v4887, %v4886
      %v4951 = vpack.c.b16 %v4889, %v4888
      %v4952 = vpack.c.b16 %v4891, %v4890
      %v4953 = vpack.c.b16 %v4893, %v4892
      %v4954 = vpack.c.b16 %v4895, %v4894
      %v4955 = vpack.c.b16 %v4897, %v4896
      %v4956 = vpack.c.b16 %v4899, %v4898
      %v4957 = vpack.c.b16 %v4901, %v4900
      %v4958 = vpack.c.b16 %v4903, %v4902
      %v4959 = vpack.c.b16 %v4905, %v4904
      %v4960 = vpack.c.b16 %v4907, %v4906
      %v4961 = vpack.c.b16 %v4909, %v4908
      %v4962 = vpack.c.b16 %v4911, %v4910
      %v4963 = vpack.c.b16 %v4913, %v4912
      %v4964 = vpack.c.b16 %v4915, %v4914
      %v4965 = vpack.c.b16 %v4917, %v4916
      %v4966 = vpack.c.b16 %v4919, %v4918
      %v4967 = vpack.c.b16 %v4921, %v4920
      %v4968 = vpack.c.b16 %v4923, %v4922
      %v4969 = vpack.c.b16 %v4925, %v4924
      %v4970 = vpack.c.b16 %v4927, %v4926
      %v4971 = vpack.c.b16 %v4929, %v4928
      %v4972 = vpack.c.b16 %v4931, %v4930
      %v4973 = vpack.c.b16 %v4933, %v4932
      %v4974 = vpack.c.b16 %v4935, %v4934
      %v4975 = vpack.c.b16 %v4937, %v4936
      %v4976 = vpack.c.b16 %v4939, %v4938
      %v4977 = vpack.c.b16 %v4941, %v4940
      %v4978 = vpack.c.b16 %v4943, %v4942
      %v4979 = vpack.c.b16 %v4945, %v4944
      %v4980 = vpack.c.b16 %v4947, %v4946
      %v4981 = vpack.c.b16 %v4949, %v4948
      %5014 = vmatprep.subr.bf16.mxu0 0
      %5015 = vmatpush1.bf16.msra.mxu0 %v4950
      %5016 = vmatprep.subr.bf16.mxu0 0
      %5017 = vmatpush1.bf16.msra.mxu0 %v4951
      %5018 = vmatprep.subr.bf16.mxu0 0
      %5019 = vmatpush1.bf16.msra.mxu0 %v4952
      %5020 = vmatprep.subr.bf16.mxu0 0
      %5021 = vmatpush1.bf16.msra.mxu0 %v4953
      %5022 = vmatprep.subr.bf16.mxu0 0
      %5023 = vmatpush1.bf16.msra.mxu0 %v4954
      %5024 = vmatprep.subr.bf16.mxu0 0
      %5025 = vmatpush1.bf16.msra.mxu0 %v4955
      %5026 = vmatprep.subr.bf16.mxu0 0
      %5027 = vmatpush1.bf16.msra.mxu0 %v4956
      %5028 = vmatprep.subr.bf16.mxu0 0
      %5029 = vmatpush1.bf16.msra.mxu0 %v4957
      %5030 = vmatprep.subr.bf16.mxu0 0
      %5031 = vmatpush1.bf16.msra.mxu0 %v4958
      %5032 = vmatprep.subr.bf16.mxu0 0
      %5033 = vmatpush1.bf16.msra.mxu0 %v4959
      %5034 = vmatprep.subr.bf16.mxu0 0
      %5035 = vmatpush1.bf16.msra.mxu0 %v4960
      %5036 = vmatprep.subr.bf16.mxu0 0
      %5037 = vmatpush1.bf16.msra.mxu0 %v4961
      %5038 = vmatprep.subr.bf16.mxu0 0
      %5039 = vmatpush1.bf16.msra.mxu0 %v4962
      %5040 = vmatprep.subr.bf16.mxu0 0
      %5041 = vmatpush1.bf16.msra.mxu0 %v4963
      %5042 = vmatprep.subr.bf16.mxu0 0
      %5043 = vmatpush1.bf16.msra.mxu0 %v4964
      %5044 = vmatprep.subr.bf16.mxu0 0
      %5045 = vmatpush1.bf16.msra.mxu0 %v4965
      %5046 = vmatprep.mubr.bf16.mxu0 %v4748
      %5047 = vmatmul.mubr.bf16.gmra.mrb[0].mxu0 %v4747
      %v5048 = vpop.f32.mrb[0].mxu0
      %v5049 = vadd.f32 %v4820, %v5048
      %v5050 = vpop.f32.mrb[0].mxu0
      %v5051 = vpop.f32.mrb[0].mxu0
      %v5052 = vadd.f32 %v4820, %v5051
      %v5053 = vpop.f32.mrb[0].mxu0
      %5054 = vdwg.mxu0
      %5055 = vmatprep.subr.bf16.mxu0 0
      %5056 = vmatpush1.bf16.msra.mxu0 %v4966
      %5057 = vmatprep.subr.bf16.mxu0 0
      %5058 = vmatpush1.bf16.msra.mxu0 %v4967
      %5059 = vmatprep.subr.bf16.mxu0 0
      %5060 = vmatpush1.bf16.msra.mxu0 %v4968
      %5061 = vmatprep.subr.bf16.mxu0 0
      %5062 = vmatpush1.bf16.msra.mxu0 %v4969
      %5063 = vmatprep.subr.bf16.mxu0 0
      %5064 = vmatpush1.bf16.msra.mxu0 %v4970
      %5065 = vmatprep.subr.bf16.mxu0 0
      %5066 = vmatpush1.bf16.msra.mxu0 %v4971
      %5067 = vmatprep.subr.bf16.mxu0 0
      %5068 = vmatpush1.bf16.msra.mxu0 %v4972
      %5069 = vmatprep.subr.bf16.mxu0 0
      %5070 = vmatpush1.bf16.msra.mxu0 %v4973
      %5071 = vmatprep.subr.bf16.mxu0 0
      %5072 = vmatpush1.bf16.msra.mxu0 %v4974
      %5073 = vmatprep.subr.bf16.mxu0 0
      %5074 = vmatpush1.bf16.msra.mxu0 %v4975
      %5075 = vmatprep.subr.bf16.mxu0 0
      %5076 = vmatpush1.bf16.msra.mxu0 %v4976
      %5077 = vmatprep.subr.bf16.mxu0 0
      %5078 = vmatpush1.bf16.msra.mxu0 %v4977
      %5079 = vmatprep.subr.bf16.mxu0 0
      %5080 = vmatpush1.bf16.msra.mxu0 %v4978
      %5081 = vmatprep.subr.bf16.mxu0 0
      %5082 = vmatpush1.bf16.msra.mxu0 %v4979
      %5083 = vmatprep.subr.bf16.mxu0 0
      %5084 = vmatpush1.bf16.msra.mxu0 %v4980
      %5085 = vmatprep.subr.bf16.mxu0 0
      %5086 = vmatpush1.bf16.msra.mxu0 %v4981
      %5087 = vmatprep.mubr.bf16.mxu0 %v4750
      %5088 = vmatmul.mubr.bf16.gmra.mrb[0].mxu0 %v4749
      %v5089 = vpop.f32.mrb[0].mxu0
      %v5090 = vadd.f32 %v5049, %v5089
      %v5091 = vpop.f32.mrb[0].mxu0
      %v5092 = vpop.f32.mrb[0].mxu0
      %v5093 = vadd.f32 %v5052, %v5092
      %v5094 = vpop.f32.mrb[0].mxu0
      %5095 = vdwg.mxu0
      %v5096 = vlaneseq
      %v5097 = vand.u32 %v5096, 127
      %vm5098 = vcmp.lt.s32.totalorder %v5097, 101
      %v5099 = vsel %vm5098, %v5090, -3.4028235e+38
      %v5100 = vsel %vm5098, %v5093, -3.4028235e+38
      %5101 = vmax.xlane.f32.xlu0 %v5099
      %v5102 = vpop.xlane.xlu0 %5101
      %5103 = vmax.xlane.f32.xlu0 %v5100
      %v5104 = vpop.xlane.xlu0 %5103
      %v5105 = vsub.f32 %v5099, %v5102
      %v5106 = vsub.f32 %v5100, %v5104
      %v5107 = vmul.f32 %v5105, 1.442695
      %v5108 = vpow.pop %v5107
      %v5109 = vmul.f32 %v5106, 1.442695
      %v5110 = vpow.pop %v5109
      %5111 = vadd.xlane.f32.xlu0 %v5108
      %v5112 = vpop.xlane.xlu0 %5111
      %5113 = vadd.xlane.f32.xlu0 %v5110
      %v5114 = vpop.xlane.xlu0 %5113
      %v5115 = vrcp.pop %v5112
      %v5116 = vrcp.pop %v5114
      %v5117 = vmul.f32 %v5108, %v5115
      %v5118 = vmul.f32 %v5110, %v5116
      %5119 = vst [vmem:[#allocation9] sm:$0xff] %v5117
      %5120 = vst [vmem:[#allocation9 + $0x8] sm:$0xff] %v5118
    $region65: #{food101k_classifier.1} parent=1 // pred_fallthru
      _
    // Predicated region
    $region66: #{food101k_classifier.1} parent=1 // pred_check
      _
    $region67: #{food101k_classifier.1} parent=1 // pred_check_branch
      %5122 = sbr.rel (0) target = $region69
    $region68: #{food101k_classifier.1} parent=1 // pred_region
      %s5124 = ssub.s32 256, 256
      %5125 = vsyncadd [#allocation5], %s5124
      %s5126 = sshll.u32 [#allocation9], 4
      %s5127 = int_to_ptr.vmem [resolvable:$true] %s5126
      %5132 = dma.vmem_to_hbm [thread:$0]  %s5127, 256, %s11, [#allocation5], 128, 128, 8
    $region69: #{food101k_classifier.1} parent=1 // pred_fallthru
      _
    // Predicated region
    $region70: #{food101k_classifier.1} parent=1 // pred_check
      _
    $region71: #{food101k_classifier.1} parent=1 // pred_check_branch
      %5134 = sbr.rel (0) target = $region73
    $region72: #{food101k_classifier.1} parent=1 // pred_region
      %5135 = dma.done [#allocation5], 256
    $region73: #{food101k_classifier.1} parent=1 // pred_fallthru
      _
    %5136 = vsyncpa [#allocation4], 1
    %5137 = vsyncpa [#allocation7], 1
    %5138 = vsyncpa [#allocation5], 1

</llo_original>
